<compile_context>
chip_gen: v6e
topology: v6e:2x2x1
jax: 0.10.0
libtpu: 0.0.40
codegen_flags: <defaults>
</compile_context>

<pallas_src>
import functools

import jax
import jax.numpy as jnp
from jax.experimental import pallas as pl
from jax.experimental.pallas import tpu as pltpu


# --------------------------------- kernel -----------------------------------
def _gat_layer(x, w, att, bias, neg_bias, heads):
    """One dense GATConv layer (all heads) as traced in-kernel compute.

    x:        [Np, F_in]
    w:        [F_in, H*C]
    att:      [H*C, 2H]  block-diagonal: col h = att_dst[h], col H+h = att_src[h]
    bias:     [1, H*C]
    neg_bias: [Np, Np]   additive mask (0 on edges incl. self loops, -1e30 else)
    returns   [Np, H*C]
    """
    hc = w.shape[1]
    c = hc // heads

    # Feature transform for all heads at once (MXU).
    xw = jnp.dot(x, w, preferred_element_type=jnp.float32)            # [Np, H*C]

    # All per-head <x', att_dst> and <x', att_src> in ONE matmul.
    alphas = jnp.dot(xw, att, preferred_element_type=jnp.float32)     # [Np, 2H]
    a_dst = jnp.transpose(alphas[:, :heads])                          # [H, Np]
    a_src = jnp.transpose(alphas[:, heads:])                          # [H, Np]

    # e[h, i, j] = LeakyReLU(a_dst[i] + a_src[j], 0.2) + mask  (batched heads)
    e = a_dst[:, :, None] + a_src[:, None, :]                         # [H, Np, Np]
    e = jnp.where(e > 0, e, 0.2 * e)
    e = e + neg_bias[None, :, :]

    # Batched softmax over source nodes j (one max/exp/sum stream for all heads).
    m = jnp.max(e, axis=-1, keepdims=True)
    p = jnp.exp(e - m)                                                # non-edges -> 0
    denom = jnp.sum(p, axis=-1, keepdims=True)
    attn = p * pl.reciprocal(denom, approx=True)                      # [H, Np, Np]

    # Aggregate neighbor features per head (MXU), concatenate locally.
    outs = [
        jnp.dot(attn[h], xw[:, h * c:(h + 1) * c],
                preferred_element_type=jnp.float32)
        for h in range(heads)
    ]
    out = outs[0] if heads == 1 else jnp.concatenate(outs, axis=-1)   # [Np, H*C]
    return out + bias


def _gat2_fused_kernel(x_ref, w1_ref, a1_ref, b1_ref, w2_ref, a2_ref, b2_ref,
                       nb_ref, out_ref, *, heads1):
    """Both GATConv layers + ReLUs fused; single full-width store at the end."""
    neg_bias = nb_ref[...]

    h1 = _gat_layer(x_ref[...], w1_ref[...], a1_ref[...], b1_ref[...],
                    neg_bias, heads1)
    h1 = jnp.maximum(h1, 0.0)          # activation (ReLU), fused
    # F.dropout(..., training=False) -> identity in eval mode

    h2 = _gat_layer(h1, w2_ref[...], a2_ref[...], b2_ref[...], neg_bias, 1)
    out_ref[...] = jnp.maximum(h2, 0.0)  # activation (ReLU) folded into store


# --------------------------------- wrapper ----------------------------------
def _block_diag_att(att_src, att_dst):
    """Build [H*C, 2H] block-diagonal matrix: alphas = xw @ A -> [N, 2H]."""
    H, C = att_src.shape
    A = jnp.zeros((H * C, 2 * H), jnp.float32)
    for h in range(H):
        A = A.at[h * C:(h + 1) * C, h].set(att_dst[h])
        A = A.at[h * C:(h + 1) * C, H + h].set(att_src[h])
    return A


def _build_neg_bias(edge_index, num_nodes_padded):
    """Additive edge mask [Np, Np]: 0 where edge j->i (self loops on ALL rows,
    incl. padded rows, so no softmax row is empty), -1e30 elsewhere."""
    # TODO(synk): duplicate edges collapse to one entry in the dense mask; true
    # GATConv softmax counts parallel edges as distinct messages.
    src, dst = edge_index[0], edge_index[1]
    adj = jnp.zeros((num_nodes_padded, num_nodes_padded), jnp.bool_)
    adj = adj.at[dst, src].set(True)
    diag = jnp.arange(num_nodes_padded)
    adj = adj.at[diag, diag].set(True)
    return jnp.where(adj, 0.0, -1e30).astype(jnp.float32)


def gat_forward(edge_index_list, node_feats_list, edge_feats_list,
                nodes_mask_list, params):
    """Mirrors GAT.forward (eval mode; activation = ReLU)."""
    x = node_feats_list[-1]
    edge_index = edge_index_list[-1]
    _ = edge_feats_list[-1]          # unused, as in the torch forward
    del nodes_mask_list              # unused, as in the torch forward

    N = x.shape[0]
    Np = max(128, ((N + 127) // 128) * 128)   # lane-dense node padding
    x_pad = jnp.zeros((Np, x.shape[1]), jnp.float32).at[:N].set(x)
    neg_bias = _build_neg_bias(edge_index, Np)

    a1 = _block_diag_att(params["att_src1"], params["att_dst1"])
    a2 = _block_diag_att(params["att_src2"], params["att_dst2"])
    H1 = params["att_src1"].shape[0]
    C2 = params["w2"].shape[1]

    kernel = functools.partial(_gat2_fused_kernel, heads1=H1)
    vmem = lambda: pl.BlockSpec(memory_space=pltpu.MemorySpace.VMEM)

    # TODO(synk): with multiple graph snapshots, add a leading "parallel" grid
    # axis over snapshots to use v7x's second TensorCore.
    out_pad = pl.pallas_call(
        kernel,
        out_shape=jax.ShapeDtypeStruct((Np, C2), jnp.float32),
        in_specs=[vmem() for _ in range(8)],
        out_specs=vmem(),
    )(x_pad, params["w1"], a1, params["b1"],
      params["w2"], a2, params["b2"], neg_bias)

    return out_pad[:N]


# ----------------------------- pure-JAX reference ----------------------------
def _dense_adj_ref(edge_index, num_nodes):
    src, dst = edge_index[0], edge_index[1]
    adj = jnp.zeros((num_nodes, num_nodes), jnp.float32)
    adj = adj.at[dst, src].set(1.0)
    diag = jnp.arange(num_nodes)
    adj = adj.at[diag, diag].set(1.0)  # GATConv add_self_loops=True
    return adj


def _gat_conv_ref(x, w, att_src, att_dst, bias, adj):
    H, C = att_src.shape
    xw = x @ w
    outs = []
    mask = adj > 0.0
    for h in range(H):
        xh = xw[:, h * C:(h + 1) * C]
        a_src = (xh * att_src[h][None, :]).sum(-1)[None, :]   # [1, N]
        a_dst = (xh * att_dst[h][None, :]).sum(-1)[:, None]   # [N, 1]
        e = a_dst + a_src
        e = jnp.where(e > 0, e, 0.2 * e)
        e = jnp.where(mask, e, -1e30)
        p = jnp.where(mask, jnp.exp(e - e.max(-1, keepdims=True)), 0.0)
        attn = p / p.sum(-1, keepdims=True)
        outs.append(attn @ xh + bias[0, h * C:(h + 1) * C][None, :])
    return jnp.concatenate(outs, axis=-1)


def _gat_forward_ref(edge_index, x, params):
    adj = _dense_adj_ref(edge_index, x.shape[0])
    h = jax.nn.relu(_gat_conv_ref(x, params["w1"], params["att_src1"],
                                  params["att_dst1"], params["b1"], adj))
    h = jax.nn.relu(_gat_conv_ref(h, params["w2"], params["att_src2"],
                                  params["att_dst2"], params["b2"], adj))
    return h


def _glorot(key, shape):
    fan_in, fan_out = shape[0], shape[-1]
    limit = (6.0 / (fan_in + fan_out)) ** 0.5
    return jax.random.uniform(key, shape, jnp.float32, -limit, limit)


if __name__ == "__main__":
    # args: feats_per_node=16, layer_1_feats=16, attention_heads=4, layer_2_feats=32
    N, F_IN, C1, H1, C2, E = 64, 16, 16, 4, 32, 256

    key = jax.random.PRNGKey(0)
    ks = jax.random.split(key, 12)

    node_feats = jax.random.normal(ks[0], (N, F_IN), jnp.float32)
    src = jax.random.randint(ks[1], (E,), 0, N)
    dst = jax.random.randint(ks[2], (E,), 0, N)
    edge_index = jnp.stack([src, dst]).astype(jnp.int32)
    edge_feats = jax.random.normal(ks[3], (E, 4), jnp.float32)   # unused by forward
    nodes_mask = jnp.ones((N,), jnp.float32)                     # unused by forward

    params = dict(
        w1=_glorot(ks[4], (F_IN, H1 * C1)),
        att_src1=0.1 * jax.random.normal(ks[5], (H1, C1), jnp.float32),
        att_dst1=0.1 * jax.random.normal(ks[6], (H1, C1), jnp.float32),
        b1=0.01 * jax.random.normal(ks[7], (1, H1 * C1), jnp.float32),
        w2=_glorot(ks[8], (H1 * C1, C2)),
        att_src2=0.1 * jax.random.normal(ks[9], (1, C2), jnp.float32),
        att_dst2=0.1 * jax.random.normal(ks[10], (1, C2), jnp.float32),
        b2=0.01 * jax.random.normal(ks[11], (1, C2), jnp.float32),
    )

    out = gat_forward([edge_index], [node_feats], [edge_feats], [nodes_mask],
                      params)
    out = jax.block_until_ready(out)

    ref = _gat_forward_ref(edge_index, node_feats, params)
    assert out.shape == (N, C2), out.shape
    # Tolerance accounts for the approx (EUP) reciprocal in the softmax.
    max_err = float(jnp.max(jnp.abs(out - ref)))
    assert jnp.allclose(out, ref, rtol=5e-3, atol=5e-3), max_err

    print("KERNEL_OK")
</pallas_src>

<mosaic_0001>
module attributes {stable_mosaic.version = 11 : i64} {
  func.func @_gat2_fused_kernel(%arg0: memref<128x16xf32, #tpu.memory_space<vmem>>, %arg1: memref<16x64xf32, #tpu.memory_space<vmem>>, %arg2: memref<64x8xf32, #tpu.memory_space<vmem>>, %arg3: memref<1x64xf32, #tpu.memory_space<vmem>>, %arg4: memref<64x32xf32, #tpu.memory_space<vmem>>, %arg5: memref<32x2xf32, #tpu.memory_space<vmem>>, %arg6: memref<1x32xf32, #tpu.memory_space<vmem>>, %arg7: memref<128x128xf32, #tpu.memory_space<vmem>>, %arg8: memref<128x32xf32, #tpu.memory_space<vmem>>) attributes {dimension_semantics = [], scalar_prefetch = 0 : i64, scratch_operands = 0 : i64, tpu.core_type = #tpu.core_type<tc>} {
    %c0 = arith.constant 0 : index
    %c0_0 = arith.constant 0 : index
    %0 = vector.load %arg7[%c0, %c0_0] : memref<128x128xf32, #tpu.memory_space<vmem>>, vector<128x128xf32>
    %c0_1 = arith.constant 0 : index
    %c0_2 = arith.constant 0 : index
    %1 = vector.load %arg0[%c0_1, %c0_2] : memref<128x16xf32, #tpu.memory_space<vmem>>, vector<128x16xf32>
    %c0_3 = arith.constant 0 : index
    %c0_4 = arith.constant 0 : index
    %2 = vector.load %arg1[%c0_3, %c0_4] : memref<16x64xf32, #tpu.memory_space<vmem>>, vector<16x64xf32>
    %c0_5 = arith.constant 0 : index
    %c0_6 = arith.constant 0 : index
    %3 = vector.load %arg2[%c0_5, %c0_6] : memref<64x8xf32, #tpu.memory_space<vmem>>, vector<64x8xf32>
    %c0_7 = arith.constant 0 : index
    %c0_8 = arith.constant 0 : index
    %4 = vector.load %arg3[%c0_7, %c0_8] : memref<1x64xf32, #tpu.memory_space<vmem>>, vector<1x64xf32>
    %cst = arith.constant dense<0.000000e+00> : vector<128x64xf32>
    %5 = tpu.matmul %1, %2, %cst {dimension_numbers = #tpu.dot_dimension_numbers<[1], [0], [0], [1], [0, 0, 1, 1], [], []>} : vector<128x16xf32>, vector<16x64xf32>, vector<128x64xf32> -> vector<128x64xf32>
    %cst_9 = arith.constant dense<0.000000e+00> : vector<128x8xf32>
    %6 = tpu.matmul %5, %3, %cst_9 {dimension_numbers = #tpu.dot_dimension_numbers<[1], [0], [0], [1], [0, 0, 1, 1], [], []>} : vector<128x64xf32>, vector<64x8xf32>, vector<128x8xf32> -> vector<128x8xf32>
    %7 = vector.extract_strided_slice %6 {offsets = [0, 0], sizes = [128, 4], strides = [1, 1]} : vector<128x8xf32> to vector<128x4xf32>
    %8 = tpu.transpose %7, [1, 0] : vector<128x4xf32> -> vector<4x128xf32>
    %9 = vector.extract_strided_slice %6 {offsets = [0, 4], sizes = [128, 4], strides = [1, 1]} : vector<128x8xf32> to vector<128x4xf32>
    %10 = tpu.transpose %9, [1, 0] : vector<128x4xf32> -> vector<4x128xf32>
    %11 = vector.shape_cast %8 : vector<4x128xf32> to vector<4x128x1xf32>
    %12 = vector.shape_cast %10 : vector<4x128xf32> to vector<4x1x128xf32>
    %13 = vector.broadcast %11 : vector<4x128x1xf32> to vector<4x128x128xf32>
    %14 = vector.broadcast %12 : vector<4x1x128xf32> to vector<4x128x128xf32>
    %15 = arith.addf %13, %14 : vector<4x128x128xf32>
    %cst_10 = arith.constant 0.000000e+00 : f32
    %16 = vector.broadcast %cst_10 : f32 to vector<4x128x128xf32>
    %17 = arith.cmpf ogt, %15, %16 : vector<4x128x128xf32>
    %cst_11 = arith.constant 2.000000e-01 : f32
    %18 = vector.broadcast %cst_11 : f32 to vector<4x128x128xf32>
    %19 = arith.mulf %18, %15 : vector<4x128x128xf32>
    %20 = arith.select %17, %15, %19 : vector<4x128x128xi1>, vector<4x128x128xf32>
    %21 = vector.shape_cast %0 : vector<128x128xf32> to vector<1x128x128xf32>
    %22 = vector.broadcast %21 : vector<1x128x128xf32> to vector<4x128x128xf32>
    %23 = arith.addf %20, %22 : vector<4x128x128xf32>
    %cst_12 = arith.constant dense<0xFF800000> : vector<4x128xf32>
    %24 = vector.multi_reduction <maximumf>, %23, %cst_12 [2] : vector<4x128x128xf32> to vector<4x128xf32>
    %25 = vector.shape_cast %24 : vector<4x128xf32> to vector<4x128x1xf32>
    %26 = vector.broadcast %25 : vector<4x128x1xf32> to vector<4x128x128xf32>
    %27 = arith.subf %23, %26 : vector<4x128x128xf32>
    %28 = math.exp %27 : vector<4x128x128xf32>
    %cst_13 = arith.constant dense<0.000000e+00> : vector<4x128xf32>
    %29 = vector.multi_reduction <add>, %28, %cst_13 [2] : vector<4x128x128xf32> to vector<4x128xf32>
    %30 = vector.shape_cast %29 : vector<4x128xf32> to vector<4x128x1xf32>
    %31 = tpu.reciprocal %30 {approx = true} : vector<4x128x1xf32> -> vector<4x128x1xf32>
    %32 = vector.broadcast %31 : vector<4x128x1xf32> to vector<4x128x128xf32>
    %33 = arith.mulf %28, %32 : vector<4x128x128xf32>
    %34 = vector.extract_strided_slice %33 {offsets = [0, 0, 0], sizes = [1, 128, 128], strides = [1, 1, 1]} : vector<4x128x128xf32> to vector<1x128x128xf32>
    %35 = vector.shape_cast %34 : vector<1x128x128xf32> to vector<128x128xf32>
    %36 = vector.extract_strided_slice %5 {offsets = [0, 0], sizes = [128, 16], strides = [1, 1]} : vector<128x64xf32> to vector<128x16xf32>
    %cst_14 = arith.constant dense<0.000000e+00> : vector<128x16xf32>
    %37 = tpu.matmul %35, %36, %cst_14 {dimension_numbers = #tpu.dot_dimension_numbers<[1], [0], [0], [1], [0, 0, 1, 1], [], []>} : vector<128x128xf32>, vector<128x16xf32>, vector<128x16xf32> -> vector<128x16xf32>
    %38 = vector.extract_strided_slice %33 {offsets = [1, 0, 0], sizes = [1, 128, 128], strides = [1, 1, 1]} : vector<4x128x128xf32> to vector<1x128x128xf32>
    %39 = vector.shape_cast %38 : vector<1x128x128xf32> to vector<128x128xf32>
    %40 = vector.extract_strided_slice %5 {offsets = [0, 16], sizes = [128, 16], strides = [1, 1]} : vector<128x64xf32> to vector<128x16xf32>
    %cst_15 = arith.constant dense<0.000000e+00> : vector<128x16xf32>
    %41 = tpu.matmul %39, %40, %cst_15 {dimension_numbers = #tpu.dot_dimension_numbers<[1], [0], [0], [1], [0, 0, 1, 1], [], []>} : vector<128x128xf32>, vector<128x16xf32>, vector<128x16xf32> -> vector<128x16xf32>
    %42 = vector.extract_strided_slice %33 {offsets = [2, 0, 0], sizes = [1, 128, 128], strides = [1, 1, 1]} : vector<4x128x128xf32> to vector<1x128x128xf32>
    %43 = vector.shape_cast %42 : vector<1x128x128xf32> to vector<128x128xf32>
    %44 = vector.extract_strided_slice %5 {offsets = [0, 32], sizes = [128, 16], strides = [1, 1]} : vector<128x64xf32> to vector<128x16xf32>
    %cst_16 = arith.constant dense<0.000000e+00> : vector<128x16xf32>
    %45 = tpu.matmul %43, %44, %cst_16 {dimension_numbers = #tpu.dot_dimension_numbers<[1], [0], [0], [1], [0, 0, 1, 1], [], []>} : vector<128x128xf32>, vector<128x16xf32>, vector<128x16xf32> -> vector<128x16xf32>
    %46 = vector.extract_strided_slice %33 {offsets = [3, 0, 0], sizes = [1, 128, 128], strides = [1, 1, 1]} : vector<4x128x128xf32> to vector<1x128x128xf32>
    %47 = vector.shape_cast %46 : vector<1x128x128xf32> to vector<128x128xf32>
    %48 = vector.extract_strided_slice %5 {offsets = [0, 48], sizes = [128, 16], strides = [1, 1]} : vector<128x64xf32> to vector<128x16xf32>
    %cst_17 = arith.constant dense<0.000000e+00> : vector<128x16xf32>
    %49 = tpu.matmul %47, %48, %cst_17 {dimension_numbers = #tpu.dot_dimension_numbers<[1], [0], [0], [1], [0, 0, 1, 1], [], []>} : vector<128x128xf32>, vector<128x16xf32>, vector<128x16xf32> -> vector<128x16xf32>
    %50 = tpu.concatenate %37, %41, %45, %49 in 1 : vector<128x16xf32>, vector<128x16xf32>, vector<128x16xf32>, vector<128x16xf32> -> vector<128x64xf32>
    %51 = vector.broadcast %4 : vector<1x64xf32> to vector<128x64xf32>
    %52 = arith.addf %50, %51 : vector<128x64xf32>
    %cst_18 = arith.constant 0.000000e+00 : f32
    %53 = vector.broadcast %cst_18 : f32 to vector<128x64xf32>
    %54 = arith.maximumf %52, %53 : vector<128x64xf32>
    %c0_19 = arith.constant 0 : index
    %c0_20 = arith.constant 0 : index
    %55 = vector.load %arg4[%c0_19, %c0_20] : memref<64x32xf32, #tpu.memory_space<vmem>>, vector<64x32xf32>
    %c0_21 = arith.constant 0 : index
    %c0_22 = arith.constant 0 : index
    %56 = vector.load %arg5[%c0_21, %c0_22] : memref<32x2xf32, #tpu.memory_space<vmem>>, vector<32x2xf32>
    %c0_23 = arith.constant 0 : index
    %c0_24 = arith.constant 0 : index
    %57 = vector.load %arg6[%c0_23, %c0_24] : memref<1x32xf32, #tpu.memory_space<vmem>>, vector<1x32xf32>
    %cst_25 = arith.constant dense<0.000000e+00> : vector<128x32xf32>
    %58 = tpu.matmul %54, %55, %cst_25 {dimension_numbers = #tpu.dot_dimension_numbers<[1], [0], [0], [1], [0, 0, 1, 1], [], []>} : vector<128x64xf32>, vector<64x32xf32>, vector<128x32xf32> -> vector<128x32xf32>
    %cst_26 = arith.constant dense<0.000000e+00> : vector<128x2xf32>
    %59 = tpu.matmul %58, %56, %cst_26 {dimension_numbers = #tpu.dot_dimension_numbers<[1], [0], [0], [1], [0, 0, 1, 1], [], []>} : vector<128x32xf32>, vector<32x2xf32>, vector<128x2xf32> -> vector<128x2xf32>
    %60 = vector.extract_strided_slice %59 {offsets = [0, 0], sizes = [128, 1], strides = [1, 1]} : vector<128x2xf32> to vector<128x1xf32>
    %61 = tpu.transpose %60, [1, 0] : vector<128x1xf32> -> vector<1x128xf32>
    %62 = vector.extract_strided_slice %59 {offsets = [0, 1], sizes = [128, 1], strides = [1, 1]} : vector<128x2xf32> to vector<128x1xf32>
    %63 = tpu.transpose %62, [1, 0] : vector<128x1xf32> -> vector<1x128xf32>
    %64 = vector.shape_cast %61 : vector<1x128xf32> to vector<1x128x1xf32>
    %65 = vector.shape_cast %63 : vector<1x128xf32> to vector<1x1x128xf32>
    %66 = vector.broadcast %64 : vector<1x128x1xf32> to vector<1x128x128xf32>
    %67 = vector.broadcast %65 : vector<1x1x128xf32> to vector<1x128x128xf32>
    %68 = arith.addf %66, %67 : vector<1x128x128xf32>
    %cst_27 = arith.constant 0.000000e+00 : f32
    %69 = vector.broadcast %cst_27 : f32 to vector<1x128x128xf32>
    %70 = arith.cmpf ogt, %68, %69 : vector<1x128x128xf32>
    %cst_28 = arith.constant 2.000000e-01 : f32
    %71 = vector.broadcast %cst_28 : f32 to vector<1x128x128xf32>
    %72 = arith.mulf %71, %68 : vector<1x128x128xf32>
    %73 = arith.select %70, %68, %72 : vector<1x128x128xi1>, vector<1x128x128xf32>
    %74 = vector.shape_cast %0 : vector<128x128xf32> to vector<1x128x128xf32>
    %75 = arith.addf %73, %74 : vector<1x128x128xf32>
    %cst_29 = arith.constant dense<0xFF800000> : vector<1x128xf32>
    %76 = vector.multi_reduction <maximumf>, %75, %cst_29 [2] : vector<1x128x128xf32> to vector<1x128xf32>
    %77 = vector.shape_cast %76 : vector<1x128xf32> to vector<1x128x1xf32>
    %78 = vector.broadcast %77 : vector<1x128x1xf32> to vector<1x128x128xf32>
    %79 = arith.subf %75, %78 : vector<1x128x128xf32>
    %80 = math.exp %79 : vector<1x128x128xf32>
    %cst_30 = arith.constant dense<0.000000e+00> : vector<1x128xf32>
    %81 = vector.multi_reduction <add>, %80, %cst_30 [2] : vector<1x128x128xf32> to vector<1x128xf32>
    %82 = vector.shape_cast %81 : vector<1x128xf32> to vector<1x128x1xf32>
    %83 = tpu.reciprocal %82 {approx = true} : vector<1x128x1xf32> -> vector<1x128x1xf32>
    %84 = vector.broadcast %83 : vector<1x128x1xf32> to vector<1x128x128xf32>
    %85 = arith.mulf %80, %84 : vector<1x128x128xf32>
    %86 = vector.shape_cast %85 : vector<1x128x128xf32> to vector<128x128xf32>
    %cst_31 = arith.constant dense<0.000000e+00> : vector<128x32xf32>
    %87 = tpu.matmul %86, %58, %cst_31 {dimension_numbers = #tpu.dot_dimension_numbers<[1], [0], [0], [1], [0, 0, 1, 1], [], []>} : vector<128x128xf32>, vector<128x32xf32>, vector<128x32xf32> -> vector<128x32xf32>
    %88 = vector.broadcast %57 : vector<1x32xf32> to vector<128x32xf32>
    %89 = arith.addf %87, %88 : vector<128x32xf32>
    %cst_32 = arith.constant 0.000000e+00 : f32
    %90 = vector.broadcast %cst_32 : f32 to vector<128x32xf32>
    %91 = arith.maximumf %89, %90 : vector<128x32xf32>
    %c0_33 = arith.constant 0 : index
    %c0_34 = arith.constant 0 : index
    %92 = vector.load %arg8[%c0_33, %c0_34] : memref<128x32xf32, #tpu.memory_space<vmem>>, vector<128x32xf32>
    tpu.vector_store %arg8[%c0_33, %c0_34], %91 {strides = array<i32>} : memref<128x32xf32, #tpu.memory_space<vmem>>, vector<128x32xf32>,
    return
  }
}

</mosaic_0001>

<llo_original>
// kernel: tpu_custom_call.1
$region0: #{tpu_custom_call.1}
  #allocation0 [shape = 'u32[]', space=smem, size = 0x4, offset = 0x4, fixed_abs, tag = 'smem constant byte address 0x4 - core index']
  #allocation1 [shape = 'u32[144,128]{1,0:T(1,128)}', space=vmem, size = 0x12000, scoped, tag = 'internal scratch']
  %s0 = inlined_call_operand.vmem [shape: f32[128,16], index: 0, kind: input, shape index: {}]
  %s1 = inlined_call_operand.vmem [shape: f32[16,64], index: 1, kind: input, shape index: {}]
  %s2 = inlined_call_operand.vmem [shape: f32[64,8], index: 2, kind: input, shape index: {}]
  %s3 = inlined_call_operand.vmem [shape: f32[1,64], index: 3, kind: input, shape index: {}]
  %s4 = inlined_call_operand.vmem [shape: f32[64,32], index: 4, kind: input, shape index: {}]
  %s5 = inlined_call_operand.vmem [shape: f32[32,2], index: 5, kind: input, shape index: {}]
  %s6 = inlined_call_operand.vmem [shape: f32[1,32], index: 6, kind: input, shape index: {}]
  %s7 = inlined_call_operand.vmem [shape: f32[128,128], index: 7, kind: input, shape index: {}]
  %s8 = inlined_call_operand.vmem [shape: f32[128,32], index: 8, kind: output, shape index: {}]
  %s9 = sld [smem:[#allocation0]]
  $region42: #{tpu_custom_call.1} parent=0
    _
  %s11 = ssub.s32 1, %s9
  %s12 = scalar_select 0, %s11, %s9
  // Predicated region
  $region2: #{tpu_custom_call.1} parent=0 // pred_check
    _
  $region3: #{tpu_custom_call.1} parent=0 // pred_check_branch
    %14 = sbr.rel (0) target = $region5
  $region4: #{tpu_custom_call.1} parent=0 // pred_region
    _
  $region5: #{tpu_custom_call.1} parent=0 // pred_fallthru
    _
  // Predicated region
  $region6: #{tpu_custom_call.1} parent=0 // pred_check
    _
  $region7: #{tpu_custom_call.1} parent=0 // pred_check_branch
    %16 = sbr.rel (0) target = $region9
  $region8: #{tpu_custom_call.1} parent=0 // pred_region
    _
  $region9: #{tpu_custom_call.1} parent=0 // pred_fallthru
    _
  // Predicated region
  $region10: #{tpu_custom_call.1} parent=0 // pred_check
    _
  $region11: #{tpu_custom_call.1} parent=0 // pred_check_branch
    %18 = sbr.rel (0) target = $region13
  $region12: #{tpu_custom_call.1} parent=0 // pred_region
    _
  $region13: #{tpu_custom_call.1} parent=0 // pred_fallthru
    _
  // Predicated region
  $region14: #{tpu_custom_call.1} parent=0 // pred_check
    _
  $region15: #{tpu_custom_call.1} parent=0 // pred_check_branch
    %20 = sbr.rel (0) target = $region17
  $region16: #{tpu_custom_call.1} parent=0 // pred_region
    _
  $region17: #{tpu_custom_call.1} parent=0 // pred_fallthru
    _
  // Predicated region
  $region18: #{tpu_custom_call.1} parent=0 // pred_check
    _
  $region19: #{tpu_custom_call.1} parent=0 // pred_check_branch
    %22 = sbr.rel (0) target = $region21
  $region20: #{tpu_custom_call.1} parent=0 // pred_region
    _
  $region21: #{tpu_custom_call.1} parent=0 // pred_fallthru
    _
  // Predicated region
  $region22: #{tpu_custom_call.1} parent=0 // pred_check
    _
  $region23: #{tpu_custom_call.1} parent=0 // pred_check_branch
    %24 = sbr.rel (0) target = $region25
  $region24: #{tpu_custom_call.1} parent=0 // pred_region
    _
  $region25: #{tpu_custom_call.1} parent=0 // pred_fallthru
    _
  // Predicated region
  $region26: #{tpu_custom_call.1} parent=0 // pred_check
    _
  $region27: #{tpu_custom_call.1} parent=0 // pred_check_branch
    %26 = sbr.rel (0) target = $region29
  $region28: #{tpu_custom_call.1} parent=0 // pred_region
    _
  $region29: #{tpu_custom_call.1} parent=0 // pred_fallthru
    _
  // Predicated region
  $region30: #{tpu_custom_call.1} parent=0 // pred_check
    _
  $region31: #{tpu_custom_call.1} parent=0 // pred_check_branch
    %28 = sbr.rel (0) target = $region33
  $region32: #{tpu_custom_call.1} parent=0 // pred_region
    _
  $region33: #{tpu_custom_call.1} parent=0 // pred_fallthru
    _
  %v29 = vld [vmem:[%s7] sm:$0xff]
  %v30 = vld [vmem:[%s7 + $0x8] sm:$0xff]
  %v31 = vld [vmem:[%s7 + $0x10] sm:$0xff]
  %v32 = vld [vmem:[%s7 + $0x18] sm:$0xff]
  %v33 = vld [vmem:[%s7 + $0x20] sm:$0xff]
  %v34 = vld [vmem:[%s7 + $0x28] sm:$0xff]
  %v35 = vld [vmem:[%s7 + $0x30] sm:$0xff]
  %v36 = vld [vmem:[%s7 + $0x38] sm:$0xff]
  %v37 = vld [vmem:[%s7 + $0x40] sm:$0xff]
  %v38 = vld [vmem:[%s7 + $0x48] sm:$0xff]
  %v39 = vld [vmem:[%s7 + $0x50] sm:$0xff]
  %v40 = vld [vmem:[%s7 + $0x58] sm:$0xff]
  %v41 = vld [vmem:[%s7 + $0x60] sm:$0xff]
  %v42 = vld [vmem:[%s7 + $0x68] sm:$0xff]
  %v43 = vld [vmem:[%s7 + $0x70] sm:$0xff]
  %v44 = vld [vmem:[%s7 + $0x78] sm:$0xff]
  %v45 = vld [vmem:[%s0] sm:$0xff]
  %v46 = vld [vmem:[%s0 + $0x8] sm:$0xff]
  %v47 = vld [vmem:[%s0 + $0x10] sm:$0xff]
  %v48 = vld [vmem:[%s0 + $0x18] sm:$0xff]
  %v49 = vld [vmem:[%s0 + $0x20] sm:$0xff]
  %v50 = vld [vmem:[%s0 + $0x28] sm:$0xff]
  %v51 = vld [vmem:[%s0 + $0x30] sm:$0xff]
  %v52 = vld [vmem:[%s0 + $0x38] sm:$0xff]
  %v53 = vld [vmem:[%s0 + $0x40] sm:$0xff]
  %v54 = vld [vmem:[%s0 + $0x48] sm:$0xff]
  %v55 = vld [vmem:[%s0 + $0x50] sm:$0xff]
  %v56 = vld [vmem:[%s0 + $0x58] sm:$0xff]
  %v57 = vld [vmem:[%s0 + $0x60] sm:$0xff]
  %v58 = vld [vmem:[%s0 + $0x68] sm:$0xff]
  %v59 = vld [vmem:[%s0 + $0x70] sm:$0xff]
  %v60 = vld [vmem:[%s0 + $0x78] sm:$0xff]
  %v61 = vld [vmem:[%s1] sm:$0xff]
  %v62 = vld [vmem:[%s1 + $0x8] sm:$0xff]
  %v63 = vld [vmem:[%s2] sm:$0xff]
  %v64 = vld [vmem:[%s2 + $0x8] sm:$0xff]
  %v65 = vld [vmem:[%s2 + $0x10] sm:$0xff]
  %v66 = vld [vmem:[%s2 + $0x18] sm:$0xff]
  %v67 = vld [vmem:[%s2 + $0x20] sm:$0xff]
  %v68 = vld [vmem:[%s2 + $0x28] sm:$0xff]
  %v69 = vld [vmem:[%s2 + $0x30] sm:$0xff]
  %v70 = vld [vmem:[%s2 + $0x38] sm:$0xff]
  %v71 = vld [vmem:[%s3] sm:$0x1]
  %vm72 = vcmask 130048
  %v74 = vsel %vm72, %v45, 0
  %v77 = vsel %vm72, %v46, 0
  %v80 = vsel %vm72, %v47, 0
  %v83 = vsel %vm72, %v48, 0
  %v86 = vsel %vm72, %v49, 0
  %v89 = vsel %vm72, %v50, 0
  %v92 = vsel %vm72, %v51, 0
  %v95 = vsel %vm72, %v52, 0
  %v98 = vsel %vm72, %v53, 0
  %v101 = vsel %vm72, %v54, 0
  %v104 = vsel %vm72, %v55, 0
  %v107 = vsel %vm72, %v56, 0
  %v110 = vsel %vm72, %v57, 0
  %v113 = vsel %vm72, %v58, 0
  %v116 = vsel %vm72, %v59, 0
  %v119 = vsel %vm72, %v60, 0
  %121 = vmatprep.subr.mxu0 0.0
  %122 = vmatpush1.msra.mxu0 0.0
  %123 = vmatprep.subr.mxu0 0.0
  %124 = vmatpush1.msra.mxu0 0.0
  %125 = vmatprep.subr.mxu0 0.0
  %126 = vmatpush1.msra.mxu0 0.0
  %127 = vmatprep.subr.mxu0 0.0
  %128 = vmatpush1.msra.mxu0 0.0
  %129 = vmatprep.subr.mxu0 0.0
  %130 = vmatpush1.msra.mxu0 0.0
  %131 = vmatprep.subr.mxu0 0.0
  %132 = vmatpush1.msra.mxu0 0.0
  %133 = vmatprep.subr.mxu0 0.0
  %134 = vmatpush1.msra.mxu0 0.0
  %135 = vmatprep.subr.mxu0 0.0
  %136 = vmatpush1.msra.mxu0 0.0
  %137 = vmatprep.subr.mxu0 0.0
  %138 = vmatpush1.msra.mxu0 0.0
  %139 = vmatprep.subr.mxu0 0.0
  %140 = vmatpush1.msra.mxu0 0.0
  %141 = vmatprep.subr.mxu0 0.0
  %142 = vmatpush1.msra.mxu0 0.0
  %143 = vmatprep.subr.mxu0 0.0
  %144 = vmatpush1.msra.mxu0 0.0
  %145 = vmatprep.subr.mxu0 0.0
  %146 = vmatpush1.msra.mxu0 0.0
  %147 = vmatprep.subr.mxu0 0.0
  %148 = vmatpush1.msra.mxu0 0.0
  %149 = vmatprep.subr.mxu0 0.0
  %150 = vmatpush1.msra.mxu0 %v62
  %151 = vmatprep.subr.mxu0 0.0
  %152 = vmatpush1.msra.mxu0 %v61
  %153 = vmatprep.subr.mxu0 0.0
  %154 = vmatpush2.msra.mxu0 0.0
  %155 = vmatprep.subr.mxu0 0.0
  %156 = vmatpush2.msra.mxu0 0.0
  %157 = vmatprep.subr.mxu0 0.0
  %158 = vmatpush2.msra.mxu0 0.0
  %159 = vmatprep.subr.mxu0 0.0
  %160 = vmatpush2.msra.mxu0 0.0
  %161 = vmatprep.subr.mxu0 0.0
  %162 = vmatpush2.msra.mxu0 0.0
  %163 = vmatprep.subr.mxu0 0.0
  %164 = vmatpush2.msra.mxu0 0.0
  %165 = vmatprep.subr.mxu0 0.0
  %166 = vmatpush2.msra.mxu0 0.0
  %167 = vmatprep.subr.mxu0 0.0
  %168 = vmatpush2.msra.mxu0 0.0
  %169 = vmatprep.subr.mxu0 0.0
  %170 = vmatpush2.msra.mxu0 0.0
  %171 = vmatprep.subr.mxu0 0.0
  %172 = vmatpush2.msra.mxu0 0.0
  %173 = vmatprep.subr.mxu0 0.0
  %174 = vmatpush2.msra.mxu0 0.0
  %175 = vmatprep.subr.mxu0 0.0
  %176 = vmatpush2.msra.mxu0 0.0
  %177 = vmatprep.subr.mxu0 0.0
  %178 = vmatpush2.msra.mxu0 0.0
  %179 = vmatprep.subr.mxu0 0.0
  %180 = vmatpush2.msra.mxu0 0.0
  %181 = vmatprep.subr.mxu0 0.0
  %182 = vmatpush2.msra.mxu0 0.0
  %183 = vmatprep.subr.mxu0 0.0
  %184 = vmatpush2.msra.mxu0 0.0
  %185 = vmatprep.mubr.f32.mxu0 0.0
  %186 = vmatmul.mubr.f32.gmra.mxu0 %v74
  %v187 = vpop.f32.mrf.mxu0
  %v188 = vadd.f32 0.0, %v187
  %v189 = vpop.f32.mrf.mxu0
  %190 = vmatprep.mubr.f32.mxu0 0.0
  %191 = vmatmul.mubr.f32.gmra.mxu0 %v77
  %v192 = vpop.f32.mrf.mxu0
  %v193 = vadd.f32 0.0, %v192
  %v194 = vpop.f32.mrf.mxu0
  %195 = vmatprep.mubr.f32.mxu0 0.0
  %196 = vmatmul.mubr.f32.gmra.mxu0 %v80
  %v197 = vpop.f32.mrf.mxu0
  %v198 = vadd.f32 0.0, %v197
  %v199 = vpop.f32.mrf.mxu0
  %200 = vmatprep.mubr.f32.mxu0 0.0
  %201 = vmatmul.mubr.f32.gmra.mxu0 %v83
  %v202 = vpop.f32.mrf.mxu0
  %v203 = vadd.f32 0.0, %v202
  %v204 = vpop.f32.mrf.mxu0
  %205 = vmatprep.mubr.f32.mxu0 0.0
  %206 = vmatmul.mubr.f32.gmra.mxu0 %v86
  %v207 = vpop.f32.mrf.mxu0
  %v208 = vadd.f32 0.0, %v207
  %v209 = vpop.f32.mrf.mxu0
  %210 = vmatprep.mubr.f32.mxu0 0.0
  %211 = vmatmul.mubr.f32.gmra.mxu0 %v89
  %v212 = vpop.f32.mrf.mxu0
  %v213 = vadd.f32 0.0, %v212
  %v214 = vpop.f32.mrf.mxu0
  %215 = vmatprep.mubr.f32.mxu0 0.0
  %216 = vmatmul.mubr.f32.gmra.mxu0 %v92
  %v217 = vpop.f32.mrf.mxu0
  %v218 = vadd.f32 0.0, %v217
  %v219 = vpop.f32.mrf.mxu0
  %220 = vmatprep.mubr.f32.mxu0 0.0
  %221 = vmatmul.mubr.f32.gmra.mxu0 %v95
  %v222 = vpop.f32.mrf.mxu0
  %v223 = vadd.f32 0.0, %v222
  %v224 = vpop.f32.mrf.mxu0
  %225 = vmatprep.mubr.f32.mxu0 0.0
  %226 = vmatmul.mubr.f32.gmra.mxu0 %v98
  %v227 = vpop.f32.mrf.mxu0
  %v228 = vadd.f32 0.0, %v227
  %v229 = vpop.f32.mrf.mxu0
  %230 = vmatprep.mubr.f32.mxu0 0.0
  %231 = vmatmul.mubr.f32.gmra.mxu0 %v101
  %v232 = vpop.f32.mrf.mxu0
  %v233 = vadd.f32 0.0, %v232
  %v234 = vpop.f32.mrf.mxu0
  %235 = vmatprep.mubr.f32.mxu0 0.0
  %236 = vmatmul.mubr.f32.gmra.mxu0 %v104
  %v237 = vpop.f32.mrf.mxu0
  %v238 = vadd.f32 0.0, %v237
  %v239 = vpop.f32.mrf.mxu0
  %240 = vmatprep.mubr.f32.mxu0 0.0
  %241 = vmatmul.mubr.f32.gmra.mxu0 %v107
  %v242 = vpop.f32.mrf.mxu0
  %v243 = vadd.f32 0.0, %v242
  %v244 = vpop.f32.mrf.mxu0
  %245 = vmatprep.mubr.f32.mxu0 0.0
  %246 = vmatmul.mubr.f32.gmra.mxu0 %v110
  %v247 = vpop.f32.mrf.mxu0
  %v248 = vadd.f32 0.0, %v247
  %v249 = vpop.f32.mrf.mxu0
  %250 = vmatprep.mubr.f32.mxu0 0.0
  %251 = vmatmul.mubr.f32.gmra.mxu0 %v113
  %v252 = vpop.f32.mrf.mxu0
  %v253 = vadd.f32 0.0, %v252
  %v254 = vpop.f32.mrf.mxu0
  %255 = vmatprep.mubr.f32.mxu0 0.0
  %256 = vmatmul.mubr.f32.gmra.mxu0 %v116
  %v257 = vpop.f32.mrf.mxu0
  %v258 = vadd.f32 0.0, %v257
  %v259 = vpop.f32.mrf.mxu0
  %260 = vmatprep.mubr.f32.mxu0 0.0
  %261 = vmatmul.mubr.f32.gmra.mxu0 %v119
  %v262 = vpop.f32.mrf.mxu0
  %v263 = vadd.f32 0.0, %v262
  %v264 = vpop.f32.mrf.mxu0
  %265 = vdwg.mxu0
  %vm266 = vcmask 523264
  %v268 = vsel %vm266, %v188, 0
  %v271 = vsel %vm266, %v193, 0
  %v274 = vsel %vm266, %v198, 0
  %v277 = vsel %vm266, %v203, 0
  %v280 = vsel %vm266, %v208, 0
  %v283 = vsel %vm266, %v213, 0
  %v286 = vsel %vm266, %v218, 0
  %v289 = vsel %vm266, %v223, 0
  %v292 = vsel %vm266, %v228, 0
  %v295 = vsel %vm266, %v233, 0
  %v298 = vsel %vm266, %v238, 0
  %v301 = vsel %vm266, %v243, 0
  %v304 = vsel %vm266, %v248, 0
  %v307 = vsel %vm266, %v253, 0
  %v310 = vsel %vm266, %v258, 0
  %v313 = vsel %vm266, %v263, 0
  %315 = vmatprep.subr.mxu0 0.0
  %316 = vmatpush1.msra.mxu0 0.0
  %317 = vmatprep.subr.mxu0 0.0
  %318 = vmatpush1.msra.mxu0 0.0
  %319 = vmatprep.subr.mxu0 0.0
  %320 = vmatpush1.msra.mxu0 0.0
  %321 = vmatprep.subr.mxu0 0.0
  %322 = vmatpush1.msra.mxu0 0.0
  %323 = vmatprep.subr.mxu0 0.0
  %324 = vmatpush1.msra.mxu0 0.0
  %325 = vmatprep.subr.mxu0 0.0
  %326 = vmatpush1.msra.mxu0 0.0
  %327 = vmatprep.subr.mxu0 0.0
  %328 = vmatpush1.msra.mxu0 0.0
  %329 = vmatprep.subr.mxu0 0.0
  %330 = vmatpush1.msra.mxu0 0.0
  %331 = vmatprep.subr.mxu0 0.0
  %332 = vmatpush1.msra.mxu0 %v70
  %333 = vmatprep.subr.mxu0 0.0
  %334 = vmatpush1.msra.mxu0 %v69
  %335 = vmatprep.subr.mxu0 0.0
  %336 = vmatpush1.msra.mxu0 %v68
  %337 = vmatprep.subr.mxu0 0.0
  %338 = vmatpush1.msra.mxu0 %v67
  %339 = vmatprep.subr.mxu0 0.0
  %340 = vmatpush1.msra.mxu0 %v66
  %341 = vmatprep.subr.mxu0 0.0
  %342 = vmatpush1.msra.mxu0 %v65
  %343 = vmatprep.subr.mxu0 0.0
  %344 = vmatpush1.msra.mxu0 %v64
  %345 = vmatprep.subr.mxu0 0.0
  %346 = vmatpush1.msra.mxu0 %v63
  %347 = vmatprep.subr.mxu0 0.0
  %348 = vmatpush2.msra.mxu0 0.0
  %349 = vmatprep.subr.mxu0 0.0
  %350 = vmatpush2.msra.mxu0 0.0
  %351 = vmatprep.subr.mxu0 0.0
  %352 = vmatpush2.msra.mxu0 0.0
  %353 = vmatprep.subr.mxu0 0.0
  %354 = vmatpush2.msra.mxu0 0.0
  %355 = vmatprep.subr.mxu0 0.0
  %356 = vmatpush2.msra.mxu0 0.0
  %357 = vmatprep.subr.mxu0 0.0
  %358 = vmatpush2.msra.mxu0 0.0
  %359 = vmatprep.subr.mxu0 0.0
  %360 = vmatpush2.msra.mxu0 0.0
  %361 = vmatprep.subr.mxu0 0.0
  %362 = vmatpush2.msra.mxu0 0.0
  %363 = vmatprep.subr.mxu0 0.0
  %364 = vmatpush2.msra.mxu0 0.0
  %365 = vmatprep.subr.mxu0 0.0
  %366 = vmatpush2.msra.mxu0 0.0
  %367 = vmatprep.subr.mxu0 0.0
  %368 = vmatpush2.msra.mxu0 0.0
  %369 = vmatprep.subr.mxu0 0.0
  %370 = vmatpush2.msra.mxu0 0.0
  %371 = vmatprep.subr.mxu0 0.0
  %372 = vmatpush2.msra.mxu0 0.0
  %373 = vmatprep.subr.mxu0 0.0
  %374 = vmatpush2.msra.mxu0 0.0
  %375 = vmatprep.subr.mxu0 0.0
  %376 = vmatpush2.msra.mxu0 0.0
  %377 = vmatprep.subr.mxu0 0.0
  %378 = vmatpush2.msra.mxu0 0.0
  %379 = vmatprep.mubr.f32.mxu0 0.0
  %380 = vmatmul.mubr.f32.gmra.mxu0 %v268
  %v381 = vpop.f32.mrf.mxu0
  %v382 = vadd.f32 0.0, %v381
  %v383 = vpop.f32.mrf.mxu0
  %384 = vmatprep.mubr.f32.mxu0 0.0
  %385 = vmatmul.mubr.f32.gmra.mxu0 %v271
  %v386 = vpop.f32.mrf.mxu0
  %v387 = vadd.f32 0.0, %v386
  %v388 = vpop.f32.mrf.mxu0
  %389 = vmatprep.mubr.f32.mxu0 0.0
  %390 = vmatmul.mubr.f32.gmra.mxu0 %v274
  %v391 = vpop.f32.mrf.mxu0
  %v392 = vadd.f32 0.0, %v391
  %v393 = vpop.f32.mrf.mxu0
  %394 = vmatprep.mubr.f32.mxu0 0.0
  %395 = vmatmul.mubr.f32.gmra.mxu0 %v277
  %v396 = vpop.f32.mrf.mxu0
  %v397 = vadd.f32 0.0, %v396
  %v398 = vpop.f32.mrf.mxu0
  %399 = vmatprep.mubr.f32.mxu0 0.0
  %400 = vmatmul.mubr.f32.gmra.mxu0 %v280
  %v401 = vpop.f32.mrf.mxu0
  %v402 = vadd.f32 0.0, %v401
  %v403 = vpop.f32.mrf.mxu0
  %404 = vmatprep.mubr.f32.mxu0 0.0
  %405 = vmatmul.mubr.f32.gmra.mxu0 %v283
  %v406 = vpop.f32.mrf.mxu0
  %v407 = vadd.f32 0.0, %v406
  %v408 = vpop.f32.mrf.mxu0
  %409 = vmatprep.mubr.f32.mxu0 0.0
  %410 = vmatmul.mubr.f32.gmra.mxu0 %v286
  %v411 = vpop.f32.mrf.mxu0
  %v412 = vadd.f32 0.0, %v411
  %v413 = vpop.f32.mrf.mxu0
  %414 = vmatprep.mubr.f32.mxu0 0.0
  %415 = vmatmul.mubr.f32.gmra.mxu0 %v289
  %v416 = vpop.f32.mrf.mxu0
  %v417 = vadd.f32 0.0, %v416
  %v418 = vpop.f32.mrf.mxu0
  %419 = vmatprep.mubr.f32.mxu0 0.0
  %420 = vmatmul.mubr.f32.gmra.mxu0 %v292
  %v421 = vpop.f32.mrf.mxu0
  %v422 = vadd.f32 0.0, %v421
  %v423 = vpop.f32.mrf.mxu0
  %424 = vmatprep.mubr.f32.mxu0 0.0
  %425 = vmatmul.mubr.f32.gmra.mxu0 %v295
  %v426 = vpop.f32.mrf.mxu0
  %v427 = vadd.f32 0.0, %v426
  %v428 = vpop.f32.mrf.mxu0
  %429 = vmatprep.mubr.f32.mxu0 0.0
  %430 = vmatmul.mubr.f32.gmra.mxu0 %v298
  %v431 = vpop.f32.mrf.mxu0
  %v432 = vadd.f32 0.0, %v431
  %v433 = vpop.f32.mrf.mxu0
  %434 = vmatprep.mubr.f32.mxu0 0.0
  %435 = vmatmul.mubr.f32.gmra.mxu0 %v301
  %v436 = vpop.f32.mrf.mxu0
  %v437 = vadd.f32 0.0, %v436
  %v438 = vpop.f32.mrf.mxu0
  %439 = vmatprep.mubr.f32.mxu0 0.0
  %440 = vmatmul.mubr.f32.gmra.mxu0 %v304
  %v441 = vpop.f32.mrf.mxu0
  %v442 = vadd.f32 0.0, %v441
  %v443 = vpop.f32.mrf.mxu0
  %444 = vmatprep.mubr.f32.mxu0 0.0
  %445 = vmatmul.mubr.f32.gmra.mxu0 %v307
  %v446 = vpop.f32.mrf.mxu0
  %v447 = vadd.f32 0.0, %v446
  %v448 = vpop.f32.mrf.mxu0
  %449 = vmatprep.mubr.f32.mxu0 0.0
  %450 = vmatmul.mubr.f32.gmra.mxu0 %v310
  %v451 = vpop.f32.mrf.mxu0
  %v452 = vadd.f32 0.0, %v451
  %v453 = vpop.f32.mrf.mxu0
  %454 = vmatprep.mubr.f32.mxu0 0.0
  %455 = vmatmul.mubr.f32.gmra.mxu0 %v313
  %v456 = vpop.f32.mrf.mxu0
  %v457 = vadd.f32 0.0, %v456
  %v458 = vpop.f32.mrf.mxu0
  %459 = vdwg.mxu0
  %460 = vxpose.xlu0.b32.start [1/16] %v382, 128
  %461 = vxpose.xlu0.b32.cont [2/16] %v387, 128
  %462 = vxpose.xlu0.b32.cont [3/16] %v392, 128
  %463 = vxpose.xlu0.b32.cont [4/16] %v397, 128
  %464 = vxpose.xlu0.b32.cont [5/16] %v402, 128
  %465 = vxpose.xlu0.b32.cont [6/16] %v407, 128
  %466 = vxpose.xlu0.b32.cont [7/16] %v412, 128
  %467 = vxpose.xlu0.b32.cont [8/16] %v417, 128
  %468 = vxpose.xlu0.b32.cont [9/16] %v422, 128
  %469 = vxpose.xlu0.b32.cont [10/16] %v427, 128
  %470 = vxpose.xlu0.b32.cont [11/16] %v432, 128
  %471 = vxpose.xlu0.b32.cont [12/16] %v437, 128
  %472 = vxpose.xlu0.b32.cont [13/16] %v442, 128
  %473 = vxpose.xlu0.b32.cont [14/16] %v447, 128
  %474 = vxpose.xlu0.b32.cont [15/16] %v452, 128
  %475 = vxpose.xlu0.b32.end [16/16] %v457, 128
  %v476 = vpop.trf.xlu0
  %v477 = vpop.trf.xlu0
  %v478 = vpop.trf.xlu0
  %v479 = vpop.trf.xlu0
  %v480 = vpop.trf.xlu0
  %v481 = vpop.trf.xlu0
  %v482 = vpop.trf.xlu0
  %v483 = vpop.trf.xlu0
  %v484 = vpop.trf.xlu0
  %v485 = vpop.trf.xlu0
  %v486 = vpop.trf.xlu0
  %v487 = vpop.trf.xlu0
  %v488 = vpop.trf.xlu0
  %v489 = vpop.trf.xlu0
  %v490 = vpop.trf.xlu0
  %v491 = vpop.trf.xlu0
  %508 = vrot.lane.b32.xlu0 %v382, 124
  %v509 = vpop.permute.xlu0 %508
  %510 = vrot.lane.b32.xlu0 %v387, 124
  %v511 = vpop.permute.xlu0 %510
  %512 = vrot.lane.b32.xlu0 %v392, 124
  %v513 = vpop.permute.xlu0 %512
  %514 = vrot.lane.b32.xlu0 %v397, 124
  %v515 = vpop.permute.xlu0 %514
  %516 = vrot.lane.b32.xlu0 %v402, 124
  %v517 = vpop.permute.xlu0 %516
  %518 = vrot.lane.b32.xlu0 %v407, 124
  %v519 = vpop.permute.xlu0 %518
  %520 = vrot.lane.b32.xlu0 %v412, 124
  %v521 = vpop.permute.xlu0 %520
  %522 = vrot.lane.b32.xlu0 %v417, 124
  %v523 = vpop.permute.xlu0 %522
  %524 = vrot.lane.b32.xlu0 %v422, 124
  %v525 = vpop.permute.xlu0 %524
  %526 = vrot.lane.b32.xlu0 %v427, 124
  %v527 = vpop.permute.xlu0 %526
  %528 = vrot.lane.b32.xlu0 %v432, 124
  %v529 = vpop.permute.xlu0 %528
  %530 = vrot.lane.b32.xlu0 %v437, 124
  %v531 = vpop.permute.xlu0 %530
  %532 = vrot.lane.b32.xlu0 %v442, 124
  %v533 = vpop.permute.xlu0 %532
  %534 = vrot.lane.b32.xlu0 %v447, 124
  %v535 = vpop.permute.xlu0 %534
  %536 = vrot.lane.b32.xlu0 %v452, 124
  %v537 = vpop.permute.xlu0 %536
  %538 = vrot.lane.b32.xlu0 %v457, 124
  %v539 = vpop.permute.xlu0 %538
  %556 = vxpose.xlu0.b32.start [1/16] %v509, 128
  %557 = vxpose.xlu0.b32.cont [2/16] %v511, 128
  %558 = vxpose.xlu0.b32.cont [3/16] %v513, 128
  %559 = vxpose.xlu0.b32.cont [4/16] %v515, 128
  %560 = vxpose.xlu0.b32.cont [5/16] %v517, 128
  %561 = vxpose.xlu0.b32.cont [6/16] %v519, 128
  %562 = vxpose.xlu0.b32.cont [7/16] %v521, 128
  %563 = vxpose.xlu0.b32.cont [8/16] %v523, 128
  %564 = vxpose.xlu0.b32.cont [9/16] %v525, 128
  %565 = vxpose.xlu0.b32.cont [10/16] %v527, 128
  %566 = vxpose.xlu0.b32.cont [11/16] %v529, 128
  %567 = vxpose.xlu0.b32.cont [12/16] %v531, 128
  %568 = vxpose.xlu0.b32.cont [13/16] %v533, 128
  %569 = vxpose.xlu0.b32.cont [14/16] %v535, 128
  %570 = vxpose.xlu0.b32.cont [15/16] %v537, 128
  %571 = vxpose.xlu0.b32.end [16/16] %v539, 128
  %v572 = vpop.trf.xlu0
  %v573 = vpop.trf.xlu0
  %v574 = vpop.trf.xlu0
  %v575 = vpop.trf.xlu0
  %v576 = vpop.trf.xlu0
  %v577 = vpop.trf.xlu0
  %v578 = vpop.trf.xlu0
  %v579 = vpop.trf.xlu0
  %v580 = vpop.trf.xlu0
  %v581 = vpop.trf.xlu0
  %v582 = vpop.trf.xlu0
  %v583 = vpop.trf.xlu0
  %v584 = vpop.trf.xlu0
  %v585 = vpop.trf.xlu0
  %v586 = vpop.trf.xlu0
  %v587 = vpop.trf.xlu0
  %v588 = vlaneseq
  %v589 = vshrl.u32 %v588, 7
  %v590 = vsub.s32 0, %v589
  %v591 = vrot.slane %v476, %v590
  %593 = vbcast.lane.b32.xlu0 %v591, 256
  %v594 = vpop.permute.xlu0 %593
  %s596 = sor.u32 256, 8
  %597 = vbcast.lane.b32.xlu0 %v591, %s596
  %v598 = vpop.permute.xlu0 %597
  %s600 = sor.u32 256, 16
  %601 = vbcast.lane.b32.xlu0 %v591, %s600
  %v602 = vpop.permute.xlu0 %601
  %s604 = sor.u32 256, 24
  %605 = vbcast.lane.b32.xlu0 %v591, %s604
  %v606 = vpop.permute.xlu0 %605
  %s608 = sor.u32 256, 32
  %609 = vbcast.lane.b32.xlu0 %v591, %s608
  %v610 = vpop.permute.xlu0 %609
  %s612 = sor.u32 256, 40
  %613 = vbcast.lane.b32.xlu0 %v591, %s612
  %v614 = vpop.permute.xlu0 %613
  %s616 = sor.u32 256, 48
  %617 = vbcast.lane.b32.xlu0 %v591, %s616
  %v618 = vpop.permute.xlu0 %617
  %s620 = sor.u32 256, 56
  %621 = vbcast.lane.b32.xlu0 %v591, %s620
  %v622 = vpop.permute.xlu0 %621
  %s624 = sor.u32 256, 64
  %625 = vbcast.lane.b32.xlu0 %v591, %s624
  %v626 = vpop.permute.xlu0 %625
  %s628 = sor.u32 256, 72
  %629 = vbcast.lane.b32.xlu0 %v591, %s628
  %v630 = vpop.permute.xlu0 %629
  %s632 = sor.u32 256, 80
  %633 = vbcast.lane.b32.xlu0 %v591, %s632
  %v634 = vpop.permute.xlu0 %633
  %s636 = sor.u32 256, 88
  %637 = vbcast.lane.b32.xlu0 %v591, %s636
  %v638 = vpop.permute.xlu0 %637
  %s640 = sor.u32 256, 96
  %641 = vbcast.lane.b32.xlu0 %v591, %s640
  %v642 = vpop.permute.xlu0 %641
  %s644 = sor.u32 256, 104
  %645 = vbcast.lane.b32.xlu0 %v591, %s644
  %v646 = vpop.permute.xlu0 %645
  %s648 = sor.u32 256, 112
  %649 = vbcast.lane.b32.xlu0 %v591, %s648
  %v650 = vpop.permute.xlu0 %649
  %s652 = sor.u32 256, 120
  %653 = vbcast.lane.b32.xlu0 %v591, %s652
  %v654 = vpop.permute.xlu0 %653
  %v655 = vlaneseq
  %v656 = vshrl.u32 %v655, 7
  %v657 = vsub.s32 1, %v656
  %v658 = vrot.slane %v476, %v657
  %660 = vbcast.lane.b32.xlu0 %v658, 256
  %v661 = vpop.permute.xlu0 %660
  %s663 = sor.u32 256, 8
  %664 = vbcast.lane.b32.xlu0 %v658, %s663
  %v665 = vpop.permute.xlu0 %664
  %s667 = sor.u32 256, 16
  %668 = vbcast.lane.b32.xlu0 %v658, %s667
  %v669 = vpop.permute.xlu0 %668
  %s671 = sor.u32 256, 24
  %672 = vbcast.lane.b32.xlu0 %v658, %s671
  %v673 = vpop.permute.xlu0 %672
  %s675 = sor.u32 256, 32
  %676 = vbcast.lane.b32.xlu0 %v658, %s675
  %v677 = vpop.permute.xlu0 %676
  %s679 = sor.u32 256, 40
  %680 = vbcast.lane.b32.xlu0 %v658, %s679
  %v681 = vpop.permute.xlu0 %680
  %s683 = sor.u32 256, 48
  %684 = vbcast.lane.b32.xlu0 %v658, %s683
  %v685 = vpop.permute.xlu0 %684
  %s687 = sor.u32 256, 56
  %688 = vbcast.lane.b32.xlu0 %v658, %s687
  %v689 = vpop.permute.xlu0 %688
  %s691 = sor.u32 256, 64
  %692 = vbcast.lane.b32.xlu0 %v658, %s691
  %v693 = vpop.permute.xlu0 %692
  %s695 = sor.u32 256, 72
  %696 = vbcast.lane.b32.xlu0 %v658, %s695
  %v697 = vpop.permute.xlu0 %696
  %s699 = sor.u32 256, 80
  %700 = vbcast.lane.b32.xlu0 %v658, %s699
  %v701 = vpop.permute.xlu0 %700
  %s703 = sor.u32 256, 88
  %704 = vbcast.lane.b32.xlu0 %v658, %s703
  %v705 = vpop.permute.xlu0 %704
  %s707 = sor.u32 256, 96
  %708 = vbcast.lane.b32.xlu0 %v658, %s707
  %v709 = vpop.permute.xlu0 %708
  %s711 = sor.u32 256, 104
  %712 = vbcast.lane.b32.xlu0 %v658, %s711
  %v713 = vpop.permute.xlu0 %712
  %s715 = sor.u32 256, 112
  %716 = vbcast.lane.b32.xlu0 %v658, %s715
  %v717 = vpop.permute.xlu0 %716
  %s719 = sor.u32 256, 120
  %720 = vbcast.lane.b32.xlu0 %v658, %s719
  %v721 = vpop.permute.xlu0 %720
  %v722 = vlaneseq
  %v723 = vshrl.u32 %v722, 7
  %v724 = vsub.s32 2, %v723
  %v725 = vrot.slane %v476, %v724
  %727 = vbcast.lane.b32.xlu0 %v725, 256
  %v728 = vpop.permute.xlu0 %727
  %s730 = sor.u32 256, 8
  %731 = vbcast.lane.b32.xlu0 %v725, %s730
  %v732 = vpop.permute.xlu0 %731
  %s734 = sor.u32 256, 16
  %735 = vbcast.lane.b32.xlu0 %v725, %s734
  %v736 = vpop.permute.xlu0 %735
  %s738 = sor.u32 256, 24
  %739 = vbcast.lane.b32.xlu0 %v725, %s738
  %v740 = vpop.permute.xlu0 %739
  %s742 = sor.u32 256, 32
  %743 = vbcast.lane.b32.xlu0 %v725, %s742
  %v744 = vpop.permute.xlu0 %743
  %s746 = sor.u32 256, 40
  %747 = vbcast.lane.b32.xlu0 %v725, %s746
  %v748 = vpop.permute.xlu0 %747
  %s750 = sor.u32 256, 48
  %751 = vbcast.lane.b32.xlu0 %v725, %s750
  %v752 = vpop.permute.xlu0 %751
  %s754 = sor.u32 256, 56
  %755 = vbcast.lane.b32.xlu0 %v725, %s754
  %v756 = vpop.permute.xlu0 %755
  %s758 = sor.u32 256, 64
  %759 = vbcast.lane.b32.xlu0 %v725, %s758
  %v760 = vpop.permute.xlu0 %759
  %s762 = sor.u32 256, 72
  %763 = vbcast.lane.b32.xlu0 %v725, %s762
  %v764 = vpop.permute.xlu0 %763
  %s766 = sor.u32 256, 80
  %767 = vbcast.lane.b32.xlu0 %v725, %s766
  %v768 = vpop.permute.xlu0 %767
  %s770 = sor.u32 256, 88
  %771 = vbcast.lane.b32.xlu0 %v725, %s770
  %v772 = vpop.permute.xlu0 %771
  %s774 = sor.u32 256, 96
  %775 = vbcast.lane.b32.xlu0 %v725, %s774
  %v776 = vpop.permute.xlu0 %775
  %s778 = sor.u32 256, 104
  %779 = vbcast.lane.b32.xlu0 %v725, %s778
  %v780 = vpop.permute.xlu0 %779
  %s782 = sor.u32 256, 112
  %783 = vbcast.lane.b32.xlu0 %v725, %s782
  %v784 = vpop.permute.xlu0 %783
  %s786 = sor.u32 256, 120
  %787 = vbcast.lane.b32.xlu0 %v725, %s786
  %v788 = vpop.permute.xlu0 %787
  %v789 = vlaneseq
  %v790 = vshrl.u32 %v789, 7
  %v791 = vsub.s32 3, %v790
  %v792 = vrot.slane %v476, %v791
  %794 = vbcast.lane.b32.xlu0 %v792, 256
  %v795 = vpop.permute.xlu0 %794
  %s797 = sor.u32 256, 8
  %798 = vbcast.lane.b32.xlu0 %v792, %s797
  %v799 = vpop.permute.xlu0 %798
  %s801 = sor.u32 256, 16
  %802 = vbcast.lane.b32.xlu0 %v792, %s801
  %v803 = vpop.permute.xlu0 %802
  %s805 = sor.u32 256, 24
  %806 = vbcast.lane.b32.xlu0 %v792, %s805
  %v807 = vpop.permute.xlu0 %806
  %s809 = sor.u32 256, 32
  %810 = vbcast.lane.b32.xlu0 %v792, %s809
  %v811 = vpop.permute.xlu0 %810
  %s813 = sor.u32 256, 40
  %814 = vbcast.lane.b32.xlu0 %v792, %s813
  %v815 = vpop.permute.xlu0 %814
  %s817 = sor.u32 256, 48
  %818 = vbcast.lane.b32.xlu0 %v792, %s817
  %v819 = vpop.permute.xlu0 %818
  %s821 = sor.u32 256, 56
  %822 = vbcast.lane.b32.xlu0 %v792, %s821
  %v823 = vpop.permute.xlu0 %822
  %s825 = sor.u32 256, 64
  %826 = vbcast.lane.b32.xlu0 %v792, %s825
  %v827 = vpop.permute.xlu0 %826
  %s829 = sor.u32 256, 72
  %830 = vbcast.lane.b32.xlu0 %v792, %s829
  %v831 = vpop.permute.xlu0 %830
  %s833 = sor.u32 256, 80
  %834 = vbcast.lane.b32.xlu0 %v792, %s833
  %v835 = vpop.permute.xlu0 %834
  %s837 = sor.u32 256, 88
  %838 = vbcast.lane.b32.xlu0 %v792, %s837
  %v839 = vpop.permute.xlu0 %838
  %s841 = sor.u32 256, 96
  %842 = vbcast.lane.b32.xlu0 %v792, %s841
  %v843 = vpop.permute.xlu0 %842
  %s845 = sor.u32 256, 104
  %846 = vbcast.lane.b32.xlu0 %v792, %s845
  %v847 = vpop.permute.xlu0 %846
  %s849 = sor.u32 256, 112
  %850 = vbcast.lane.b32.xlu0 %v792, %s849
  %v851 = vpop.permute.xlu0 %850
  %s853 = sor.u32 256, 120
  %854 = vbcast.lane.b32.xlu0 %v792, %s853
  %v855 = vpop.permute.xlu0 %854
  %v858 = vunpack.c.l.s4 1966171168
  %v859 = vunpack.c.0.s8 %v858
  %v860 = vlaneseq
  %v861 = vshrl.u32 %v860, 7
  %v862 = vsub.s32 %v859, %v861
  %v863 = vrot.slane %v572, %v862
  %v864 = vcombine.high %v863, %v863
  %v866 = vunpack.c.l.s4 1966171168
  %v867 = vunpack.c.0.s8 %v866
  %v868 = vlaneseq
  %v869 = vshrl.u32 %v868, 7
  %v870 = vsub.s32 %v867, %v869
  %v871 = vrot.slane %v863, %v870
  %v873 = vunpack.c.l.s4 1966171168
  %v874 = vunpack.c.0.s8 %v873
  %v875 = vlaneseq
  %v876 = vshrl.u32 %v875, 7
  %v877 = vsub.s32 %v874, %v876
  %v878 = vrot.slane %v864, %v877
  %v879 = vcombine.high %v871, %v871
  %v880 = vcombine.high %v878, %v878
  %v881 = vlaneseq
  %v882 = vshrl.u32 %v881, 7
  %v883 = vsub.s32 0, %v882
  %v884 = vrot.slane %v871, %v883
  %v885 = vlaneseq
  %v886 = vshrl.u32 %v885, 7
  %v887 = vsub.s32 0, %v886
  %v888 = vrot.slane %v878, %v887
  %v889 = vlaneseq
  %v890 = vshrl.u32 %v889, 7
  %v891 = vsub.s32 0, %v890
  %v892 = vrot.slane %v879, %v891
  %v893 = vlaneseq
  %v894 = vshrl.u32 %v893, 7
  %v895 = vsub.s32 0, %v894
  %v896 = vrot.slane %v880, %v895
  %v901 = vadd.f32 %v594, %v884
  %v902 = vadd.f32 %v598, %v884
  %v903 = vadd.f32 %v602, %v884
  %v904 = vadd.f32 %v606, %v884
  %v905 = vadd.f32 %v610, %v884
  %v906 = vadd.f32 %v614, %v884
  %v907 = vadd.f32 %v618, %v884
  %v908 = vadd.f32 %v622, %v884
  %v909 = vadd.f32 %v626, %v884
  %v910 = vadd.f32 %v630, %v884
  %v911 = vadd.f32 %v634, %v884
  %v912 = vadd.f32 %v638, %v884
  %v913 = vadd.f32 %v642, %v884
  %v914 = vadd.f32 %v646, %v884
  %v915 = vadd.f32 %v650, %v884
  %v916 = vadd.f32 %v654, %v884
  %v917 = vadd.f32 %v661, %v888
  %v918 = vadd.f32 %v665, %v888
  %v919 = vadd.f32 %v669, %v888
  %v920 = vadd.f32 %v673, %v888
  %v921 = vadd.f32 %v677, %v888
  %v922 = vadd.f32 %v681, %v888
  %v923 = vadd.f32 %v685, %v888
  %v924 = vadd.f32 %v689, %v888
  %v925 = vadd.f32 %v693, %v888
  %v926 = vadd.f32 %v697, %v888
  %v927 = vadd.f32 %v701, %v888
  %v928 = vadd.f32 %v705, %v888
  %v929 = vadd.f32 %v709, %v888
  %v930 = vadd.f32 %v713, %v888
  %v931 = vadd.f32 %v717, %v888
  %v932 = vadd.f32 %v721, %v888
  %v933 = vadd.f32 %v728, %v892
  %v934 = vadd.f32 %v732, %v892
  %v935 = vadd.f32 %v736, %v892
  %v936 = vadd.f32 %v740, %v892
  %v937 = vadd.f32 %v744, %v892
  %v938 = vadd.f32 %v748, %v892
  %v939 = vadd.f32 %v752, %v892
  %v940 = vadd.f32 %v756, %v892
  %v941 = vadd.f32 %v760, %v892
  %v942 = vadd.f32 %v764, %v892
  %v943 = vadd.f32 %v768, %v892
  %v944 = vadd.f32 %v772, %v892
  %v945 = vadd.f32 %v776, %v892
  %v946 = vadd.f32 %v780, %v892
  %v947 = vadd.f32 %v784, %v892
  %v948 = vadd.f32 %v788, %v892
  %v949 = vadd.f32 %v795, %v896
  %v950 = vadd.f32 %v799, %v896
  %v951 = vadd.f32 %v803, %v896
  %v952 = vadd.f32 %v807, %v896
  %v953 = vadd.f32 %v811, %v896
  %v954 = vadd.f32 %v815, %v896
  %v955 = vadd.f32 %v819, %v896
  %v956 = vadd.f32 %v823, %v896
  %v957 = vadd.f32 %v827, %v896
  %v958 = vadd.f32 %v831, %v896
  %v959 = vadd.f32 %v835, %v896
  %v960 = vadd.f32 %v839, %v896
  %v961 = vadd.f32 %v843, %v896
  %v962 = vadd.f32 %v847, %v896
  %v963 = vadd.f32 %v851, %v896
  %v964 = vadd.f32 %v855, %v896
  %vm965 = vcmp.gt.f32.partialorder %v901, 0.0
  %vm966 = vcmp.gt.f32.partialorder %v902, 0.0
  %vm967 = vcmp.gt.f32.partialorder %v903, 0.0
  %vm968 = vcmp.gt.f32.partialorder %v904, 0.0
  %vm969 = vcmp.gt.f32.partialorder %v905, 0.0
  %vm970 = vcmp.gt.f32.partialorder %v906, 0.0
  %vm971 = vcmp.gt.f32.partialorder %v907, 0.0
  %vm972 = vcmp.gt.f32.partialorder %v908, 0.0
  %vm973 = vcmp.gt.f32.partialorder %v909, 0.0
  %vm974 = vcmp.gt.f32.partialorder %v910, 0.0
  %vm975 = vcmp.gt.f32.partialorder %v911, 0.0
  %vm976 = vcmp.gt.f32.partialorder %v912, 0.0
  %vm977 = vcmp.gt.f32.partialorder %v913, 0.0
  %vm978 = vcmp.gt.f32.partialorder %v914, 0.0
  %vm979 = vcmp.gt.f32.partialorder %v915, 0.0
  %vm980 = vcmp.gt.f32.partialorder %v916, 0.0
  %vm981 = vcmp.gt.f32.partialorder %v917, 0.0
  %vm982 = vcmp.gt.f32.partialorder %v918, 0.0
  %vm983 = vcmp.gt.f32.partialorder %v919, 0.0
  %vm984 = vcmp.gt.f32.partialorder %v920, 0.0
  %vm985 = vcmp.gt.f32.partialorder %v921, 0.0
  %vm986 = vcmp.gt.f32.partialorder %v922, 0.0
  %vm987 = vcmp.gt.f32.partialorder %v923, 0.0
  %vm988 = vcmp.gt.f32.partialorder %v924, 0.0
  %vm989 = vcmp.gt.f32.partialorder %v925, 0.0
  %vm990 = vcmp.gt.f32.partialorder %v926, 0.0
  %vm991 = vcmp.gt.f32.partialorder %v927, 0.0
  %vm992 = vcmp.gt.f32.partialorder %v928, 0.0
  %vm993 = vcmp.gt.f32.partialorder %v929, 0.0
  %vm994 = vcmp.gt.f32.partialorder %v930, 0.0
  %vm995 = vcmp.gt.f32.partialorder %v931, 0.0
  %vm996 = vcmp.gt.f32.partialorder %v932, 0.0
  %vm997 = vcmp.gt.f32.partialorder %v933, 0.0
  %vm998 = vcmp.gt.f32.partialorder %v934, 0.0
  %vm999 = vcmp.gt.f32.partialorder %v935, 0.0
  %vm1000 = vcmp.gt.f32.partialorder %v936, 0.0
  %vm1001 = vcmp.gt.f32.partialorder %v937, 0.0
  %vm1002 = vcmp.gt.f32.partialorder %v938, 0.0
  %vm1003 = vcmp.gt.f32.partialorder %v939, 0.0
  %vm1004 = vcmp.gt.f32.partialorder %v940, 0.0
  %vm1005 = vcmp.gt.f32.partialorder %v941, 0.0
  %vm1006 = vcmp.gt.f32.partialorder %v942, 0.0
  %vm1007 = vcmp.gt.f32.partialorder %v943, 0.0
  %vm1008 = vcmp.gt.f32.partialorder %v944, 0.0
  %vm1009 = vcmp.gt.f32.partialorder %v945, 0.0
  %vm1010 = vcmp.gt.f32.partialorder %v946, 0.0
  %vm1011 = vcmp.gt.f32.partialorder %v947, 0.0
  %vm1012 = vcmp.gt.f32.partialorder %v948, 0.0
  %vm1013 = vcmp.gt.f32.partialorder %v949, 0.0
  %vm1014 = vcmp.gt.f32.partialorder %v950, 0.0
  %vm1015 = vcmp.gt.f32.partialorder %v951, 0.0
  %vm1016 = vcmp.gt.f32.partialorder %v952, 0.0
  %vm1017 = vcmp.gt.f32.partialorder %v953, 0.0
  %vm1018 = vcmp.gt.f32.partialorder %v954, 0.0
  %vm1019 = vcmp.gt.f32.partialorder %v955, 0.0
  %vm1020 = vcmp.gt.f32.partialorder %v956, 0.0
  %vm1021 = vcmp.gt.f32.partialorder %v957, 0.0
  %vm1022 = vcmp.gt.f32.partialorder %v958, 0.0
  %vm1023 = vcmp.gt.f32.partialorder %v959, 0.0
  %vm1024 = vcmp.gt.f32.partialorder %v960, 0.0
  %vm1025 = vcmp.gt.f32.partialorder %v961, 0.0
  %vm1026 = vcmp.gt.f32.partialorder %v962, 0.0
  %vm1027 = vcmp.gt.f32.partialorder %v963, 0.0
  %vm1028 = vcmp.gt.f32.partialorder %v964, 0.0
  %v1029 = vmul.f32 %v901, 0.2
  %v1030 = vmul.f32 %v902, 0.2
  %v1031 = vmul.f32 %v903, 0.2
  %v1032 = vmul.f32 %v904, 0.2
  %v1033 = vmul.f32 %v905, 0.2
  %v1034 = vmul.f32 %v906, 0.2
  %v1035 = vmul.f32 %v907, 0.2
  %v1036 = vmul.f32 %v908, 0.2
  %v1037 = vmul.f32 %v909, 0.2
  %v1038 = vmul.f32 %v910, 0.2
  %v1039 = vmul.f32 %v911, 0.2
  %v1040 = vmul.f32 %v912, 0.2
  %v1041 = vmul.f32 %v913, 0.2
  %v1042 = vmul.f32 %v914, 0.2
  %v1043 = vmul.f32 %v915, 0.2
  %v1044 = vmul.f32 %v916, 0.2
  %v1045 = vmul.f32 %v917, 0.2
  %v1046 = vmul.f32 %v918, 0.2
  %v1047 = vmul.f32 %v919, 0.2
  %v1048 = vmul.f32 %v920, 0.2
  %v1049 = vmul.f32 %v921, 0.2
  %v1050 = vmul.f32 %v922, 0.2
  %v1051 = vmul.f32 %v923, 0.2
  %v1052 = vmul.f32 %v924, 0.2
  %v1053 = vmul.f32 %v925, 0.2
  %v1054 = vmul.f32 %v926, 0.2
  %v1055 = vmul.f32 %v927, 0.2
  %v1056 = vmul.f32 %v928, 0.2
  %v1057 = vmul.f32 %v929, 0.2
  %v1058 = vmul.f32 %v930, 0.2
  %v1059 = vmul.f32 %v931, 0.2
  %v1060 = vmul.f32 %v932, 0.2
  %v1061 = vmul.f32 %v933, 0.2
  %v1062 = vmul.f32 %v934, 0.2
  %v1063 = vmul.f32 %v935, 0.2
  %v1064 = vmul.f32 %v936, 0.2
  %v1065 = vmul.f32 %v937, 0.2
  %v1066 = vmul.f32 %v938, 0.2
  %v1067 = vmul.f32 %v939, 0.2
  %v1068 = vmul.f32 %v940, 0.2
  %v1069 = vmul.f32 %v941, 0.2
  %v1070 = vmul.f32 %v942, 0.2
  %v1071 = vmul.f32 %v943, 0.2
  %v1072 = vmul.f32 %v944, 0.2
  %v1073 = vmul.f32 %v945, 0.2
  %v1074 = vmul.f32 %v946, 0.2
  %v1075 = vmul.f32 %v947, 0.2
  %v1076 = vmul.f32 %v948, 0.2
  %v1077 = vmul.f32 %v949, 0.2
  %v1078 = vmul.f32 %v950, 0.2
  %v1079 = vmul.f32 %v951, 0.2
  %v1080 = vmul.f32 %v952, 0.2
  %v1081 = vmul.f32 %v953, 0.2
  %v1082 = vmul.f32 %v954, 0.2
  %v1083 = vmul.f32 %v955, 0.2
  %v1084 = vmul.f32 %v956, 0.2
  %v1085 = vmul.f32 %v957, 0.2
  %v1086 = vmul.f32 %v958, 0.2
  %v1087 = vmul.f32 %v959, 0.2
  %v1088 = vmul.f32 %v960, 0.2
  %v1089 = vmul.f32 %v961, 0.2
  %v1090 = vmul.f32 %v962, 0.2
  %v1091 = vmul.f32 %v963, 0.2
  %v1092 = vmul.f32 %v964, 0.2
  %v1093 = vsel %vm965, %v901, %v1029
  %v1094 = vsel %vm966, %v902, %v1030
  %v1095 = vsel %vm967, %v903, %v1031
  %v1096 = vsel %vm968, %v904, %v1032
  %v1097 = vsel %vm969, %v905, %v1033
  %v1098 = vsel %vm970, %v906, %v1034
  %v1099 = vsel %vm971, %v907, %v1035
  %v1100 = vsel %vm972, %v908, %v1036
  %v1101 = vsel %vm973, %v909, %v1037
  %v1102 = vsel %vm974, %v910, %v1038
  %v1103 = vsel %vm975, %v911, %v1039
  %v1104 = vsel %vm976, %v912, %v1040
  %v1105 = vsel %vm977, %v913, %v1041
  %v1106 = vsel %vm978, %v914, %v1042
  %v1107 = vsel %vm979, %v915, %v1043
  %v1108 = vsel %vm980, %v916, %v1044
  %v1109 = vsel %vm981, %v917, %v1045
  %v1110 = vsel %vm982, %v918, %v1046
  %v1111 = vsel %vm983, %v919, %v1047
  %v1112 = vsel %vm984, %v920, %v1048
  %v1113 = vsel %vm985, %v921, %v1049
  %v1114 = vsel %vm986, %v922, %v1050
  %v1115 = vsel %vm987, %v923, %v1051
  %v1116 = vsel %vm988, %v924, %v1052
  %v1117 = vsel %vm989, %v925, %v1053
  %v1118 = vsel %vm990, %v926, %v1054
  %v1119 = vsel %vm991, %v927, %v1055
  %v1120 = vsel %vm992, %v928, %v1056
  %v1121 = vsel %vm993, %v929, %v1057
  %v1122 = vsel %vm994, %v930, %v1058
  %v1123 = vsel %vm995, %v931, %v1059
  %v1124 = vsel %vm996, %v932, %v1060
  %v1125 = vsel %vm997, %v933, %v1061
  %v1126 = vsel %vm998, %v934, %v1062
  %v1127 = vsel %vm999, %v935, %v1063
  %v1128 = vsel %vm1000, %v936, %v1064
  %v1129 = vsel %vm1001, %v937, %v1065
  %v1130 = vsel %vm1002, %v938, %v1066
  %v1131 = vsel %vm1003, %v939, %v1067
  %v1132 = vsel %vm1004, %v940, %v1068
  %v1133 = vsel %vm1005, %v941, %v1069
  %v1134 = vsel %vm1006, %v942, %v1070
  %v1135 = vsel %vm1007, %v943, %v1071
  %v1136 = vsel %vm1008, %v944, %v1072
  %v1137 = vsel %vm1009, %v945, %v1073
  %v1138 = vsel %vm1010, %v946, %v1074
  %v1139 = vsel %vm1011, %v947, %v1075
  %v1140 = vsel %vm1012, %v948, %v1076
  %v1141 = vsel %vm1013, %v949, %v1077
  %v1142 = vsel %vm1014, %v950, %v1078
  %v1143 = vsel %vm1015, %v951, %v1079
  %v1144 = vsel %vm1016, %v952, %v1080
  %v1145 = vsel %vm1017, %v953, %v1081
  %v1146 = vsel %vm1018, %v954, %v1082
  %v1147 = vsel %vm1019, %v955, %v1083
  %v1148 = vsel %vm1020, %v956, %v1084
  %v1149 = vsel %vm1021, %v957, %v1085
  %v1150 = vsel %vm1022, %v958, %v1086
  %v1151 = vsel %vm1023, %v959, %v1087
  %v1152 = vsel %vm1024, %v960, %v1088
  %v1153 = vsel %vm1025, %v961, %v1089
  %v1154 = vsel %vm1026, %v962, %v1090
  %v1155 = vsel %vm1027, %v963, %v1091
  %v1156 = vsel %vm1028, %v964, %v1092
  %v1157 = vadd.f32 %v1093, %v29
  %v1158 = vadd.f32 %v1094, %v30
  %v1159 = vadd.f32 %v1095, %v31
  %v1160 = vadd.f32 %v1096, %v32
  %v1161 = vadd.f32 %v1097, %v33
  %v1162 = vadd.f32 %v1098, %v34
  %v1163 = vadd.f32 %v1099, %v35
  %v1164 = vadd.f32 %v1100, %v36
  %v1165 = vadd.f32 %v1101, %v37
  %v1166 = vadd.f32 %v1102, %v38
  %v1167 = vadd.f32 %v1103, %v39
  %v1168 = vadd.f32 %v1104, %v40
  %v1169 = vadd.f32 %v1105, %v41
  %v1170 = vadd.f32 %v1106, %v42
  %v1171 = vadd.f32 %v1107, %v43
  %v1172 = vadd.f32 %v1108, %v44
  %v1173 = vadd.f32 %v1109, %v29
  %v1174 = vadd.f32 %v1110, %v30
  %v1175 = vadd.f32 %v1111, %v31
  %v1176 = vadd.f32 %v1112, %v32
  %v1177 = vadd.f32 %v1113, %v33
  %v1178 = vadd.f32 %v1114, %v34
  %v1179 = vadd.f32 %v1115, %v35
  %v1180 = vadd.f32 %v1116, %v36
  %v1181 = vadd.f32 %v1117, %v37
  %v1182 = vadd.f32 %v1118, %v38
  %v1183 = vadd.f32 %v1119, %v39
  %v1184 = vadd.f32 %v1120, %v40
  %v1185 = vadd.f32 %v1121, %v41
  %v1186 = vadd.f32 %v1122, %v42
  %v1187 = vadd.f32 %v1123, %v43
  %v1188 = vadd.f32 %v1124, %v44
  %v1189 = vadd.f32 %v1125, %v29
  %v1190 = vadd.f32 %v1126, %v30
  %v1191 = vadd.f32 %v1127, %v31
  %v1192 = vadd.f32 %v1128, %v32
  %v1193 = vadd.f32 %v1129, %v33
  %v1194 = vadd.f32 %v1130, %v34
  %v1195 = vadd.f32 %v1131, %v35
  %v1196 = vadd.f32 %v1132, %v36
  %v1197 = vadd.f32 %v1133, %v37
  %v1198 = vadd.f32 %v1134, %v38
  %v1199 = vadd.f32 %v1135, %v39
  %v1200 = vadd.f32 %v1136, %v40
  %v1201 = vadd.f32 %v1137, %v41
  %v1202 = vadd.f32 %v1138, %v42
  %v1203 = vadd.f32 %v1139, %v43
  %v1204 = vadd.f32 %v1140, %v44
  %v1205 = vadd.f32 %v1141, %v29
  %v1206 = vadd.f32 %v1142, %v30
  %v1207 = vadd.f32 %v1143, %v31
  %v1208 = vadd.f32 %v1144, %v32
  %v1209 = vadd.f32 %v1145, %v33
  %v1210 = vadd.f32 %v1146, %v34
  %v1211 = vadd.f32 %v1147, %v35
  %v1212 = vadd.f32 %v1148, %v36
  %v1213 = vadd.f32 %v1149, %v37
  %v1214 = vadd.f32 %v1150, %v38
  %v1215 = vadd.f32 %v1151, %v39
  %v1216 = vadd.f32 %v1152, %v40
  %v1217 = vadd.f32 %v1153, %v41
  %v1218 = vadd.f32 %v1154, %v42
  %v1219 = vadd.f32 %v1155, %v43
  %v1220 = vadd.f32 %v1156, %v44
  %1221 = vmax.xlane.f32.xlu0 %v1157
  %v1222 = vpop.xlane.xlu0 %1221
  %1223 = vmax.xlane.f32.xlu0 %v1158
  %v1224 = vpop.xlane.xlu0 %1223
  %1225 = vmax.xlane.f32.xlu0 %v1159
  %v1226 = vpop.xlane.xlu0 %1225
  %1227 = vmax.xlane.f32.xlu0 %v1160
  %v1228 = vpop.xlane.xlu0 %1227
  %1229 = vmax.xlane.f32.xlu0 %v1161
  %v1230 = vpop.xlane.xlu0 %1229
  %1231 = vmax.xlane.f32.xlu0 %v1162
  %v1232 = vpop.xlane.xlu0 %1231
  %1233 = vmax.xlane.f32.xlu0 %v1163
  %v1234 = vpop.xlane.xlu0 %1233
  %1235 = vmax.xlane.f32.xlu0 %v1164
  %v1236 = vpop.xlane.xlu0 %1235
  %1237 = vmax.xlane.f32.xlu0 %v1165
  %v1238 = vpop.xlane.xlu0 %1237
  %1239 = vmax.xlane.f32.xlu0 %v1166
  %v1240 = vpop.xlane.xlu0 %1239
  %1241 = vmax.xlane.f32.xlu0 %v1167
  %v1242 = vpop.xlane.xlu0 %1241
  %1243 = vmax.xlane.f32.xlu0 %v1168
  %v1244 = vpop.xlane.xlu0 %1243
  %1245 = vmax.xlane.f32.xlu0 %v1169
  %v1246 = vpop.xlane.xlu0 %1245
  %1247 = vmax.xlane.f32.xlu0 %v1170
  %v1248 = vpop.xlane.xlu0 %1247
  %1249 = vmax.xlane.f32.xlu0 %v1171
  %v1250 = vpop.xlane.xlu0 %1249
  %1251 = vmax.xlane.f32.xlu0 %v1172
  %v1252 = vpop.xlane.xlu0 %1251
  %1253 = vmax.xlane.f32.xlu0 %v1173
  %v1254 = vpop.xlane.xlu0 %1253
  %1255 = vmax.xlane.f32.xlu0 %v1174
  %v1256 = vpop.xlane.xlu0 %1255
  %1257 = vmax.xlane.f32.xlu0 %v1175
  %v1258 = vpop.xlane.xlu0 %1257
  %1259 = vmax.xlane.f32.xlu0 %v1176
  %v1260 = vpop.xlane.xlu0 %1259
  %1261 = vmax.xlane.f32.xlu0 %v1177
  %v1262 = vpop.xlane.xlu0 %1261
  %1263 = vmax.xlane.f32.xlu0 %v1178
  %v1264 = vpop.xlane.xlu0 %1263
  %1265 = vmax.xlane.f32.xlu0 %v1179
  %v1266 = vpop.xlane.xlu0 %1265
  %1267 = vmax.xlane.f32.xlu0 %v1180
  %v1268 = vpop.xlane.xlu0 %1267
  %1269 = vmax.xlane.f32.xlu0 %v1181
  %v1270 = vpop.xlane.xlu0 %1269
  %1271 = vmax.xlane.f32.xlu0 %v1182
  %v1272 = vpop.xlane.xlu0 %1271
  %1273 = vmax.xlane.f32.xlu0 %v1183
  %v1274 = vpop.xlane.xlu0 %1273
  %1275 = vmax.xlane.f32.xlu0 %v1184
  %v1276 = vpop.xlane.xlu0 %1275
  %1277 = vmax.xlane.f32.xlu0 %v1185
  %v1278 = vpop.xlane.xlu0 %1277
  %1279 = vmax.xlane.f32.xlu0 %v1186
  %v1280 = vpop.xlane.xlu0 %1279
  %1281 = vmax.xlane.f32.xlu0 %v1187
  %v1282 = vpop.xlane.xlu0 %1281
  %1283 = vmax.xlane.f32.xlu0 %v1188
  %v1284 = vpop.xlane.xlu0 %1283
  %1285 = vmax.xlane.f32.xlu0 %v1189
  %v1286 = vpop.xlane.xlu0 %1285
  %1287 = vmax.xlane.f32.xlu0 %v1190
  %v1288 = vpop.xlane.xlu0 %1287
  %1289 = vmax.xlane.f32.xlu0 %v1191
  %v1290 = vpop.xlane.xlu0 %1289
  %1291 = vmax.xlane.f32.xlu0 %v1192
  %v1292 = vpop.xlane.xlu0 %1291
  %1293 = vmax.xlane.f32.xlu0 %v1193
  %v1294 = vpop.xlane.xlu0 %1293
  %1295 = vmax.xlane.f32.xlu0 %v1194
  %v1296 = vpop.xlane.xlu0 %1295
  %1297 = vmax.xlane.f32.xlu0 %v1195
  %v1298 = vpop.xlane.xlu0 %1297
  %1299 = vmax.xlane.f32.xlu0 %v1196
  %v1300 = vpop.xlane.xlu0 %1299
  %1301 = vmax.xlane.f32.xlu0 %v1197
  %v1302 = vpop.xlane.xlu0 %1301
  %1303 = vmax.xlane.f32.xlu0 %v1198
  %v1304 = vpop.xlane.xlu0 %1303
  %1305 = vmax.xlane.f32.xlu0 %v1199
  %v1306 = vpop.xlane.xlu0 %1305
  %1307 = vmax.xlane.f32.xlu0 %v1200
  %v1308 = vpop.xlane.xlu0 %1307
  %1309 = vmax.xlane.f32.xlu0 %v1201
  %v1310 = vpop.xlane.xlu0 %1309
  %1311 = vmax.xlane.f32.xlu0 %v1202
  %v1312 = vpop.xlane.xlu0 %1311
  %1313 = vmax.xlane.f32.xlu0 %v1203
  %v1314 = vpop.xlane.xlu0 %1313
  %1315 = vmax.xlane.f32.xlu0 %v1204
  %v1316 = vpop.xlane.xlu0 %1315
  %1317 = vmax.xlane.f32.xlu0 %v1205
  %v1318 = vpop.xlane.xlu0 %1317
  %1319 = vmax.xlane.f32.xlu0 %v1206
  %v1320 = vpop.xlane.xlu0 %1319
  %1321 = vmax.xlane.f32.xlu0 %v1207
  %v1322 = vpop.xlane.xlu0 %1321
  %1323 = vmax.xlane.f32.xlu0 %v1208
  %v1324 = vpop.xlane.xlu0 %1323
  %1325 = vmax.xlane.f32.xlu0 %v1209
  %v1326 = vpop.xlane.xlu0 %1325
  %1327 = vmax.xlane.f32.xlu0 %v1210
  %v1328 = vpop.xlane.xlu0 %1327
  %1329 = vmax.xlane.f32.xlu0 %v1211
  %v1330 = vpop.xlane.xlu0 %1329
  %1331 = vmax.xlane.f32.xlu0 %v1212
  %v1332 = vpop.xlane.xlu0 %1331
  %1333 = vmax.xlane.f32.xlu0 %v1213
  %v1334 = vpop.xlane.xlu0 %1333
  %1335 = vmax.xlane.f32.xlu0 %v1214
  %v1336 = vpop.xlane.xlu0 %1335
  %1337 = vmax.xlane.f32.xlu0 %v1215
  %v1338 = vpop.xlane.xlu0 %1337
  %1339 = vmax.xlane.f32.xlu0 %v1216
  %v1340 = vpop.xlane.xlu0 %1339
  %1341 = vmax.xlane.f32.xlu0 %v1217
  %v1342 = vpop.xlane.xlu0 %1341
  %1343 = vmax.xlane.f32.xlu0 %v1218
  %v1344 = vpop.xlane.xlu0 %1343
  %1345 = vmax.xlane.f32.xlu0 %v1219
  %v1346 = vpop.xlane.xlu0 %1345
  %1347 = vmax.xlane.f32.xlu0 %v1220
  %v1348 = vpop.xlane.xlu0 %1347
  %v1349 = vsub.f32 %v1157, %v1222
  %v1350 = vsub.f32 %v1158, %v1224
  %v1351 = vsub.f32 %v1159, %v1226
  %v1352 = vsub.f32 %v1160, %v1228
  %v1353 = vsub.f32 %v1161, %v1230
  %v1354 = vsub.f32 %v1162, %v1232
  %v1355 = vsub.f32 %v1163, %v1234
  %v1356 = vsub.f32 %v1164, %v1236
  %v1357 = vsub.f32 %v1165, %v1238
  %v1358 = vsub.f32 %v1166, %v1240
  %v1359 = vsub.f32 %v1167, %v1242
  %v1360 = vsub.f32 %v1168, %v1244
  %v1361 = vsub.f32 %v1169, %v1246
  %v1362 = vsub.f32 %v1170, %v1248
  %v1363 = vsub.f32 %v1171, %v1250
  %v1364 = vsub.f32 %v1172, %v1252
  %v1365 = vsub.f32 %v1173, %v1254
  %v1366 = vsub.f32 %v1174, %v1256
  %v1367 = vsub.f32 %v1175, %v1258
  %v1368 = vsub.f32 %v1176, %v1260
  %v1369 = vsub.f32 %v1177, %v1262
  %v1370 = vsub.f32 %v1178, %v1264
  %v1371 = vsub.f32 %v1179, %v1266
  %v1372 = vsub.f32 %v1180, %v1268
  %v1373 = vsub.f32 %v1181, %v1270
  %v1374 = vsub.f32 %v1182, %v1272
  %v1375 = vsub.f32 %v1183, %v1274
  %v1376 = vsub.f32 %v1184, %v1276
  %v1377 = vsub.f32 %v1185, %v1278
  %v1378 = vsub.f32 %v1186, %v1280
  %v1379 = vsub.f32 %v1187, %v1282
  %v1380 = vsub.f32 %v1188, %v1284
  %v1381 = vsub.f32 %v1189, %v1286
  %v1382 = vsub.f32 %v1190, %v1288
  %v1383 = vsub.f32 %v1191, %v1290
  %v1384 = vsub.f32 %v1192, %v1292
  %v1385 = vsub.f32 %v1193, %v1294
  %v1386 = vsub.f32 %v1194, %v1296
  %v1387 = vsub.f32 %v1195, %v1298
  %v1388 = vsub.f32 %v1196, %v1300
  %v1389 = vsub.f32 %v1197, %v1302
  %v1390 = vsub.f32 %v1198, %v1304
  %v1391 = vsub.f32 %v1199, %v1306
  %v1392 = vsub.f32 %v1200, %v1308
  %v1393 = vsub.f32 %v1201, %v1310
  %v1394 = vsub.f32 %v1202, %v1312
  %v1395 = vsub.f32 %v1203, %v1314
  %v1396 = vsub.f32 %v1204, %v1316
  %v1397 = vsub.f32 %v1205, %v1318
  %v1398 = vsub.f32 %v1206, %v1320
  %v1399 = vsub.f32 %v1207, %v1322
  %v1400 = vsub.f32 %v1208, %v1324
  %v1401 = vsub.f32 %v1209, %v1326
  %v1402 = vsub.f32 %v1210, %v1328
  %v1403 = vsub.f32 %v1211, %v1330
  %v1404 = vsub.f32 %v1212, %v1332
  %v1405 = vsub.f32 %v1213, %v1334
  %v1406 = vsub.f32 %v1214, %v1336
  %v1407 = vsub.f32 %v1215, %v1338
  %v1408 = vsub.f32 %v1216, %v1340
  %v1409 = vsub.f32 %v1217, %v1342
  %v1410 = vsub.f32 %v1218, %v1344
  %v1411 = vsub.f32 %v1219, %v1346
  %v1412 = vsub.f32 %v1220, %v1348
  %v1413 = vmul.f32 %v1349, 1.442695
  %v1414 = vpow.pop %v1413
  %v1415 = vmul.f32 %v1350, 1.442695
  %v1416 = vpow.pop %v1415
  %v1417 = vmul.f32 %v1351, 1.442695
  %v1418 = vpow.pop %v1417
  %v1419 = vmul.f32 %v1352, 1.442695
  %v1420 = vpow.pop %v1419
  %v1421 = vmul.f32 %v1353, 1.442695
  %v1422 = vpow.pop %v1421
  %v1423 = vmul.f32 %v1354, 1.442695
  %v1424 = vpow.pop %v1423
  %v1425 = vmul.f32 %v1355, 1.442695
  %v1426 = vpow.pop %v1425
  %v1427 = vmul.f32 %v1356, 1.442695
  %v1428 = vpow.pop %v1427
  %v1429 = vmul.f32 %v1357, 1.442695
  %v1430 = vpow.pop %v1429
  %v1431 = vmul.f32 %v1358, 1.442695
  %v1432 = vpow.pop %v1431
  %v1433 = vmul.f32 %v1359, 1.442695
  %v1434 = vpow.pop %v1433
  %v1435 = vmul.f32 %v1360, 1.442695
  %v1436 = vpow.pop %v1435
  %v1437 = vmul.f32 %v1361, 1.442695
  %v1438 = vpow.pop %v1437
  %v1439 = vmul.f32 %v1362, 1.442695
  %v1440 = vpow.pop %v1439
  %v1441 = vmul.f32 %v1363, 1.442695
  %v1442 = vpow.pop %v1441
  %v1443 = vmul.f32 %v1364, 1.442695
  %v1444 = vpow.pop %v1443
  %v1445 = vmul.f32 %v1365, 1.442695
  %v1446 = vpow.pop %v1445
  %v1447 = vmul.f32 %v1366, 1.442695
  %v1448 = vpow.pop %v1447
  %v1449 = vmul.f32 %v1367, 1.442695
  %v1450 = vpow.pop %v1449
  %v1451 = vmul.f32 %v1368, 1.442695
  %v1452 = vpow.pop %v1451
  %v1453 = vmul.f32 %v1369, 1.442695
  %v1454 = vpow.pop %v1453
  %v1455 = vmul.f32 %v1370, 1.442695
  %v1456 = vpow.pop %v1455
  %v1457 = vmul.f32 %v1371, 1.442695
  %v1458 = vpow.pop %v1457
  %v1459 = vmul.f32 %v1372, 1.442695
  %v1460 = vpow.pop %v1459
  %v1461 = vmul.f32 %v1373, 1.442695
  %v1462 = vpow.pop %v1461
  %v1463 = vmul.f32 %v1374, 1.442695
  %v1464 = vpow.pop %v1463
  %v1465 = vmul.f32 %v1375, 1.442695
  %v1466 = vpow.pop %v1465
  %v1467 = vmul.f32 %v1376, 1.442695
  %v1468 = vpow.pop %v1467
  %v1469 = vmul.f32 %v1377, 1.442695
  %v1470 = vpow.pop %v1469
  %v1471 = vmul.f32 %v1378, 1.442695
  %v1472 = vpow.pop %v1471
  %v1473 = vmul.f32 %v1379, 1.442695
  %v1474 = vpow.pop %v1473
  %v1475 = vmul.f32 %v1380, 1.442695
  %v1476 = vpow.pop %v1475
  %v1477 = vmul.f32 %v1381, 1.442695
  %v1478 = vpow.pop %v1477
  %v1479 = vmul.f32 %v1382, 1.442695
  %v1480 = vpow.pop %v1479
  %v1481 = vmul.f32 %v1383, 1.442695
  %v1482 = vpow.pop %v1481
  %v1483 = vmul.f32 %v1384, 1.442695
  %v1484 = vpow.pop %v1483
  %v1485 = vmul.f32 %v1385, 1.442695
  %v1486 = vpow.pop %v1485
  %v1487 = vmul.f32 %v1386, 1.442695
  %v1488 = vpow.pop %v1487
  %v1489 = vmul.f32 %v1387, 1.442695
  %v1490 = vpow.pop %v1489
  %v1491 = vmul.f32 %v1388, 1.442695
  %v1492 = vpow.pop %v1491
  %v1493 = vmul.f32 %v1389, 1.442695
  %v1494 = vpow.pop %v1493
  %v1495 = vmul.f32 %v1390, 1.442695
  %v1496 = vpow.pop %v1495
  %v1497 = vmul.f32 %v1391, 1.442695
  %v1498 = vpow.pop %v1497
  %v1499 = vmul.f32 %v1392, 1.442695
  %v1500 = vpow.pop %v1499
  %v1501 = vmul.f32 %v1393, 1.442695
  %v1502 = vpow.pop %v1501
  %v1503 = vmul.f32 %v1394, 1.442695
  %v1504 = vpow.pop %v1503
  %v1505 = vmul.f32 %v1395, 1.442695
  %v1506 = vpow.pop %v1505
  %v1507 = vmul.f32 %v1396, 1.442695
  %v1508 = vpow.pop %v1507
  %v1509 = vmul.f32 %v1397, 1.442695
  %v1510 = vpow.pop %v1509
  %v1511 = vmul.f32 %v1398, 1.442695
  %v1512 = vpow.pop %v1511
  %v1513 = vmul.f32 %v1399, 1.442695
  %v1514 = vpow.pop %v1513
  %v1515 = vmul.f32 %v1400, 1.442695
  %v1516 = vpow.pop %v1515
  %v1517 = vmul.f32 %v1401, 1.442695
  %v1518 = vpow.pop %v1517
  %v1519 = vmul.f32 %v1402, 1.442695
  %v1520 = vpow.pop %v1519
  %v1521 = vmul.f32 %v1403, 1.442695
  %v1522 = vpow.pop %v1521
  %v1523 = vmul.f32 %v1404, 1.442695
  %v1524 = vpow.pop %v1523
  %v1525 = vmul.f32 %v1405, 1.442695
  %v1526 = vpow.pop %v1525
  %v1527 = vmul.f32 %v1406, 1.442695
  %v1528 = vpow.pop %v1527
  %v1529 = vmul.f32 %v1407, 1.442695
  %v1530 = vpow.pop %v1529
  %v1531 = vmul.f32 %v1408, 1.442695
  %v1532 = vpow.pop %v1531
  %v1533 = vmul.f32 %v1409, 1.442695
  %v1534 = vpow.pop %v1533
  %v1535 = vmul.f32 %v1410, 1.442695
  %v1536 = vpow.pop %v1535
  %v1537 = vmul.f32 %v1411, 1.442695
  %v1538 = vpow.pop %v1537
  %v1539 = vmul.f32 %v1412, 1.442695
  %v1540 = vpow.pop %v1539
  %1541 = vadd.xlane.f32.xlu0 %v1414
  %v1542 = vpop.xlane.xlu0 %1541
  %1543 = vadd.xlane.f32.xlu0 %v1416
  %v1544 = vpop.xlane.xlu0 %1543
  %1545 = vadd.xlane.f32.xlu0 %v1418
  %v1546 = vpop.xlane.xlu0 %1545
  %1547 = vadd.xlane.f32.xlu0 %v1420
  %v1548 = vpop.xlane.xlu0 %1547
  %1549 = vadd.xlane.f32.xlu0 %v1422
  %v1550 = vpop.xlane.xlu0 %1549
  %1551 = vadd.xlane.f32.xlu0 %v1424
  %v1552 = vpop.xlane.xlu0 %1551
  %1553 = vadd.xlane.f32.xlu0 %v1426
  %v1554 = vpop.xlane.xlu0 %1553
  %1555 = vadd.xlane.f32.xlu0 %v1428
  %v1556 = vpop.xlane.xlu0 %1555
  %1557 = vadd.xlane.f32.xlu0 %v1430
  %v1558 = vpop.xlane.xlu0 %1557
  %1559 = vadd.xlane.f32.xlu0 %v1432
  %v1560 = vpop.xlane.xlu0 %1559
  %1561 = vadd.xlane.f32.xlu0 %v1434
  %v1562 = vpop.xlane.xlu0 %1561
  %1563 = vadd.xlane.f32.xlu0 %v1436
  %v1564 = vpop.xlane.xlu0 %1563
  %1565 = vadd.xlane.f32.xlu0 %v1438
  %v1566 = vpop.xlane.xlu0 %1565
  %1567 = vadd.xlane.f32.xlu0 %v1440
  %v1568 = vpop.xlane.xlu0 %1567
  %1569 = vadd.xlane.f32.xlu0 %v1442
  %v1570 = vpop.xlane.xlu0 %1569
  %1571 = vadd.xlane.f32.xlu0 %v1444
  %v1572 = vpop.xlane.xlu0 %1571
  %1573 = vadd.xlane.f32.xlu0 %v1446
  %v1574 = vpop.xlane.xlu0 %1573
  %1575 = vadd.xlane.f32.xlu0 %v1448
  %v1576 = vpop.xlane.xlu0 %1575
  %1577 = vadd.xlane.f32.xlu0 %v1450
  %v1578 = vpop.xlane.xlu0 %1577
  %1579 = vadd.xlane.f32.xlu0 %v1452
  %v1580 = vpop.xlane.xlu0 %1579
  %1581 = vadd.xlane.f32.xlu0 %v1454
  %v1582 = vpop.xlane.xlu0 %1581
  %1583 = vadd.xlane.f32.xlu0 %v1456
  %v1584 = vpop.xlane.xlu0 %1583
  %1585 = vadd.xlane.f32.xlu0 %v1458
  %v1586 = vpop.xlane.xlu0 %1585
  %1587 = vadd.xlane.f32.xlu0 %v1460
  %v1588 = vpop.xlane.xlu0 %1587
  %1589 = vadd.xlane.f32.xlu0 %v1462
  %v1590 = vpop.xlane.xlu0 %1589
  %1591 = vadd.xlane.f32.xlu0 %v1464
  %v1592 = vpop.xlane.xlu0 %1591
  %1593 = vadd.xlane.f32.xlu0 %v1466
  %v1594 = vpop.xlane.xlu0 %1593
  %1595 = vadd.xlane.f32.xlu0 %v1468
  %v1596 = vpop.xlane.xlu0 %1595
  %1597 = vadd.xlane.f32.xlu0 %v1470
  %v1598 = vpop.xlane.xlu0 %1597
  %1599 = vadd.xlane.f32.xlu0 %v1472
  %v1600 = vpop.xlane.xlu0 %1599
  %1601 = vadd.xlane.f32.xlu0 %v1474
  %v1602 = vpop.xlane.xlu0 %1601
  %1603 = vadd.xlane.f32.xlu0 %v1476
  %v1604 = vpop.xlane.xlu0 %1603
  %1605 = vadd.xlane.f32.xlu0 %v1478
  %v1606 = vpop.xlane.xlu0 %1605
  %1607 = vadd.xlane.f32.xlu0 %v1480
  %v1608 = vpop.xlane.xlu0 %1607
  %1609 = vadd.xlane.f32.xlu0 %v1482
  %v1610 = vpop.xlane.xlu0 %1609
  %1611 = vadd.xlane.f32.xlu0 %v1484
  %v1612 = vpop.xlane.xlu0 %1611
  %1613 = vadd.xlane.f32.xlu0 %v1486
  %v1614 = vpop.xlane.xlu0 %1613
  %1615 = vadd.xlane.f32.xlu0 %v1488
  %v1616 = vpop.xlane.xlu0 %1615
  %1617 = vadd.xlane.f32.xlu0 %v1490
  %v1618 = vpop.xlane.xlu0 %1617
  %1619 = vadd.xlane.f32.xlu0 %v1492
  %v1620 = vpop.xlane.xlu0 %1619
  %1621 = vadd.xlane.f32.xlu0 %v1494
  %v1622 = vpop.xlane.xlu0 %1621
  %1623 = vadd.xlane.f32.xlu0 %v1496
  %v1624 = vpop.xlane.xlu0 %1623
  %1625 = vadd.xlane.f32.xlu0 %v1498
  %v1626 = vpop.xlane.xlu0 %1625
  %1627 = vadd.xlane.f32.xlu0 %v1500
  %v1628 = vpop.xlane.xlu0 %1627
  %1629 = vadd.xlane.f32.xlu0 %v1502
  %v1630 = vpop.xlane.xlu0 %1629
  %1631 = vadd.xlane.f32.xlu0 %v1504
  %v1632 = vpop.xlane.xlu0 %1631
  %1633 = vadd.xlane.f32.xlu0 %v1506
  %v1634 = vpop.xlane.xlu0 %1633
  %1635 = vadd.xlane.f32.xlu0 %v1508
  %v1636 = vpop.xlane.xlu0 %1635
  %1637 = vadd.xlane.f32.xlu0 %v1510
  %v1638 = vpop.xlane.xlu0 %1637
  %1639 = vadd.xlane.f32.xlu0 %v1512
  %v1640 = vpop.xlane.xlu0 %1639
  %1641 = vadd.xlane.f32.xlu0 %v1514
  %v1642 = vpop.xlane.xlu0 %1641
  %1643 = vadd.xlane.f32.xlu0 %v1516
  %v1644 = vpop.xlane.xlu0 %1643
  %1645 = vadd.xlane.f32.xlu0 %v1518
  %v1646 = vpop.xlane.xlu0 %1645
  %1647 = vadd.xlane.f32.xlu0 %v1520
  %v1648 = vpop.xlane.xlu0 %1647
  %1649 = vadd.xlane.f32.xlu0 %v1522
  %v1650 = vpop.xlane.xlu0 %1649
  %1651 = vadd.xlane.f32.xlu0 %v1524
  %v1652 = vpop.xlane.xlu0 %1651
  %1653 = vadd.xlane.f32.xlu0 %v1526
  %v1654 = vpop.xlane.xlu0 %1653
  %1655 = vadd.xlane.f32.xlu0 %v1528
  %v1656 = vpop.xlane.xlu0 %1655
  %1657 = vadd.xlane.f32.xlu0 %v1530
  %v1658 = vpop.xlane.xlu0 %1657
  %1659 = vadd.xlane.f32.xlu0 %v1532
  %v1660 = vpop.xlane.xlu0 %1659
  %1661 = vadd.xlane.f32.xlu0 %v1534
  %v1662 = vpop.xlane.xlu0 %1661
  %1663 = vadd.xlane.f32.xlu0 %v1536
  %v1664 = vpop.xlane.xlu0 %1663
  %1665 = vadd.xlane.f32.xlu0 %v1538
  %v1666 = vpop.xlane.xlu0 %1665
  %1667 = vadd.xlane.f32.xlu0 %v1540
  %v1668 = vpop.xlane.xlu0 %1667
  %v1669 = vrcp.pop %v1542
  %v1670 = vrcp.pop %v1544
  %v1671 = vrcp.pop %v1546
  %v1672 = vrcp.pop %v1548
  %v1673 = vrcp.pop %v1550
  %v1674 = vrcp.pop %v1552
  %v1675 = vrcp.pop %v1554
  %v1676 = vrcp.pop %v1556
  %v1677 = vrcp.pop %v1558
  %v1678 = vrcp.pop %v1560
  %v1679 = vrcp.pop %v1562
  %v1680 = vrcp.pop %v1564
  %v1681 = vrcp.pop %v1566
  %v1682 = vrcp.pop %v1568
  %v1683 = vrcp.pop %v1570
  %v1684 = vrcp.pop %v1572
  %v1685 = vrcp.pop %v1574
  %v1686 = vrcp.pop %v1576
  %v1687 = vrcp.pop %v1578
  %v1688 = vrcp.pop %v1580
  %v1689 = vrcp.pop %v1582
  %v1690 = vrcp.pop %v1584
  %v1691 = vrcp.pop %v1586
  %v1692 = vrcp.pop %v1588
  %v1693 = vrcp.pop %v1590
  %v1694 = vrcp.pop %v1592
  %v1695 = vrcp.pop %v1594
  %v1696 = vrcp.pop %v1596
  %v1697 = vrcp.pop %v1598
  %v1698 = vrcp.pop %v1600
  %v1699 = vrcp.pop %v1602
  %v1700 = vrcp.pop %v1604
  %v1701 = vrcp.pop %v1606
  %v1702 = vrcp.pop %v1608
  %v1703 = vrcp.pop %v1610
  %v1704 = vrcp.pop %v1612
  %v1705 = vrcp.pop %v1614
  %v1706 = vrcp.pop %v1616
  %v1707 = vrcp.pop %v1618
  %v1708 = vrcp.pop %v1620
  %v1709 = vrcp.pop %v1622
  %v1710 = vrcp.pop %v1624
  %v1711 = vrcp.pop %v1626
  %v1712 = vrcp.pop %v1628
  %v1713 = vrcp.pop %v1630
  %v1714 = vrcp.pop %v1632
  %v1715 = vrcp.pop %v1634
  %v1716 = vrcp.pop %v1636
  %v1717 = vrcp.pop %v1638
  %v1718 = vrcp.pop %v1640
  %v1719 = vrcp.pop %v1642
  %v1720 = vrcp.pop %v1644
  %v1721 = vrcp.pop %v1646
  %v1722 = vrcp.pop %v1648
  %v1723 = vrcp.pop %v1650
  %v1724 = vrcp.pop %v1652
  %v1725 = vrcp.pop %v1654
  %v1726 = vrcp.pop %v1656
  %v1727 = vrcp.pop %v1658
  %v1728 = vrcp.pop %v1660
  %v1729 = vrcp.pop %v1662
  %v1730 = vrcp.pop %v1664
  %v1731 = vrcp.pop %v1666
  %v1732 = vrcp.pop %v1668
  %v1733 = vmul.f32 %v1414, %v1669
  %v1734 = vmul.f32 %v1416, %v1670
  %v1735 = vmul.f32 %v1418, %v1671
  %v1736 = vmul.f32 %v1420, %v1672
  %v1737 = vmul.f32 %v1422, %v1673
  %v1738 = vmul.f32 %v1424, %v1674
  %v1739 = vmul.f32 %v1426, %v1675
  %v1740 = vmul.f32 %v1428, %v1676
  %v1741 = vmul.f32 %v1430, %v1677
  %v1742 = vmul.f32 %v1432, %v1678
  %v1743 = vmul.f32 %v1434, %v1679
  %v1744 = vmul.f32 %v1436, %v1680
  %v1745 = vmul.f32 %v1438, %v1681
  %v1746 = vmul.f32 %v1440, %v1682
  %v1747 = vmul.f32 %v1442, %v1683
  %v1748 = vmul.f32 %v1444, %v1684
  %v1749 = vmul.f32 %v1446, %v1685
  %v1750 = vmul.f32 %v1448, %v1686
  %v1751 = vmul.f32 %v1450, %v1687
  %v1752 = vmul.f32 %v1452, %v1688
  %v1753 = vmul.f32 %v1454, %v1689
  %v1754 = vmul.f32 %v1456, %v1690
  %v1755 = vmul.f32 %v1458, %v1691
  %v1756 = vmul.f32 %v1460, %v1692
  %v1757 = vmul.f32 %v1462, %v1693
  %v1758 = vmul.f32 %v1464, %v1694
  %v1759 = vmul.f32 %v1466, %v1695
  %v1760 = vmul.f32 %v1468, %v1696
  %v1761 = vmul.f32 %v1470, %v1697
  %v1762 = vmul.f32 %v1472, %v1698
  %v1763 = vmul.f32 %v1474, %v1699
  %v1764 = vmul.f32 %v1476, %v1700
  %v1765 = vmul.f32 %v1478, %v1701
  %v1766 = vmul.f32 %v1480, %v1702
  %v1767 = vmul.f32 %v1482, %v1703
  %v1768 = vmul.f32 %v1484, %v1704
  %v1769 = vmul.f32 %v1486, %v1705
  %v1770 = vmul.f32 %v1488, %v1706
  %v1771 = vmul.f32 %v1490, %v1707
  %v1772 = vmul.f32 %v1492, %v1708
  %v1773 = vmul.f32 %v1494, %v1709
  %v1774 = vmul.f32 %v1496, %v1710
  %v1775 = vmul.f32 %v1498, %v1711
  %v1776 = vmul.f32 %v1500, %v1712
  %v1777 = vmul.f32 %v1502, %v1713
  %v1778 = vmul.f32 %v1504, %v1714
  %v1779 = vmul.f32 %v1506, %v1715
  %v1780 = vmul.f32 %v1508, %v1716
  %v1781 = vmul.f32 %v1510, %v1717
  %v1782 = vmul.f32 %v1512, %v1718
  %v1783 = vmul.f32 %v1514, %v1719
  %v1784 = vmul.f32 %v1516, %v1720
  %v1785 = vmul.f32 %v1518, %v1721
  %v1786 = vmul.f32 %v1520, %v1722
  %v1787 = vmul.f32 %v1522, %v1723
  %v1788 = vmul.f32 %v1524, %v1724
  %v1789 = vmul.f32 %v1526, %v1725
  %v1790 = vmul.f32 %v1528, %v1726
  %v1791 = vmul.f32 %v1530, %v1727
  %v1792 = vmul.f32 %v1532, %v1728
  %v1793 = vmul.f32 %v1534, %v1729
  %v1794 = vmul.f32 %v1536, %v1730
  %v1795 = vmul.f32 %v1538, %v1731
  %v1796 = vmul.f32 %v1540, %v1732
  %1797 = vmatprep.subr.mxu0 0.0
  %1798 = vmatpush1.msra.mxu0 %v263
  %1799 = vmatprep.subr.mxu0 0.0
  %1800 = vmatpush1.msra.mxu0 %v258
  %1801 = vmatprep.subr.mxu0 0.0
  %1802 = vmatpush1.msra.mxu0 %v253
  %1803 = vmatprep.subr.mxu0 0.0
  %1804 = vmatpush1.msra.mxu0 %v248
  %1805 = vmatprep.subr.mxu0 0.0
  %1806 = vmatpush1.msra.mxu0 %v243
  %1807 = vmatprep.subr.mxu0 0.0
  %1808 = vmatpush1.msra.mxu0 %v238
  %1809 = vmatprep.subr.mxu0 0.0
  %1810 = vmatpush1.msra.mxu0 %v233
  %1811 = vmatprep.subr.mxu0 0.0
  %1812 = vmatpush1.msra.mxu0 %v228
  %1813 = vmatprep.subr.mxu0 0.0
  %1814 = vmatpush1.msra.mxu0 %v223
  %1815 = vmatprep.subr.mxu0 0.0
  %1816 = vmatpush1.msra.mxu0 %v218
  %1817 = vmatprep.subr.mxu0 0.0
  %1818 = vmatpush1.msra.mxu0 %v213
  %1819 = vmatprep.subr.mxu0 0.0
  %1820 = vmatpush1.msra.mxu0 %v208
  %1821 = vmatprep.subr.mxu0 0.0
  %1822 = vmatpush1.msra.mxu0 %v203
  %1823 = vmatprep.subr.mxu0 0.0
  %1824 = vmatpush1.msra.mxu0 %v198
  %1825 = vmatprep.subr.mxu0 0.0
  %1826 = vmatpush1.msra.mxu0 %v193
  %1827 = vmatprep.subr.mxu0 0.0
  %1828 = vmatpush1.msra.mxu0 %v188
  %1829 = vmatprep.subr.mxu0 0.0
  %1830 = vmatpush2.msra.mxu0 0.0
  %1831 = vmatprep.subr.mxu0 0.0
  %1832 = vmatpush2.msra.mxu0 0.0
  %1833 = vmatprep.subr.mxu0 0.0
  %1834 = vmatpush2.msra.mxu0 0.0
  %1835 = vmatprep.subr.mxu0 0.0
  %1836 = vmatpush2.msra.mxu0 0.0
  %1837 = vmatprep.subr.mxu0 0.0
  %1838 = vmatpush2.msra.mxu0 0.0
  %1839 = vmatprep.subr.mxu0 0.0
  %1840 = vmatpush2.msra.mxu0 0.0
  %1841 = vmatprep.subr.mxu0 0.0
  %1842 = vmatpush2.msra.mxu0 0.0
  %1843 = vmatprep.subr.mxu0 0.0
  %1844 = vmatpush2.msra.mxu0 0.0
  %1845 = vmatprep.subr.mxu0 0.0
  %1846 = vmatpush2.msra.mxu0 0.0
  %1847 = vmatprep.subr.mxu0 0.0
  %1848 = vmatpush2.msra.mxu0 0.0
  %1849 = vmatprep.subr.mxu0 0.0
  %1850 = vmatpush2.msra.mxu0 0.0
  %1851 = vmatprep.subr.mxu0 0.0
  %1852 = vmatpush2.msra.mxu0 0.0
  %1853 = vmatprep.subr.mxu0 0.0
  %1854 = vmatpush2.msra.mxu0 0.0
  %1855 = vmatprep.subr.mxu0 0.0
  %1856 = vmatpush2.msra.mxu0 0.0
  %1857 = vmatprep.subr.mxu0 0.0
  %1858 = vmatpush2.msra.mxu0 0.0
  %1859 = vmatprep.subr.mxu0 0.0
  %1860 = vmatpush2.msra.mxu0 0.0
  %1861 = vmatprep.mubr.f32.mxu0 0.0
  %1862 = vmatmul.mubr.f32.gmra.mxu0 %v1733
  %v1863 = vpop.f32.mrf.mxu0
  %v1864 = vadd.f32 0.0, %v1863
  %v1865 = vpop.f32.mrf.mxu0
  %1866 = vmatprep.mubr.f32.mxu0 0.0
  %1867 = vmatmul.mubr.f32.gmra.mxu0 %v1734
  %v1868 = vpop.f32.mrf.mxu0
  %v1869 = vadd.f32 0.0, %v1868
  %v1870 = vpop.f32.mrf.mxu0
  %1871 = vmatprep.mubr.f32.mxu0 0.0
  %1872 = vmatmul.mubr.f32.gmra.mxu0 %v1735
  %v1873 = vpop.f32.mrf.mxu0
  %v1874 = vadd.f32 0.0, %v1873
  %v1875 = vpop.f32.mrf.mxu0
  %1876 = vmatprep.mubr.f32.mxu0 0.0
  %1877 = vmatmul.mubr.f32.gmra.mxu0 %v1736
  %v1878 = vpop.f32.mrf.mxu0
  %v1879 = vadd.f32 0.0, %v1878
  %v1880 = vpop.f32.mrf.mxu0
  %1881 = vmatprep.mubr.f32.mxu0 0.0
  %1882 = vmatmul.mubr.f32.gmra.mxu0 %v1737
  %v1883 = vpop.f32.mrf.mxu0
  %v1884 = vadd.f32 0.0, %v1883
  %v1885 = vpop.f32.mrf.mxu0
  %1886 = vmatprep.mubr.f32.mxu0 0.0
  %1887 = vmatmul.mubr.f32.gmra.mxu0 %v1738
  %v1888 = vpop.f32.mrf.mxu0
  %v1889 = vadd.f32 0.0, %v1888
  %v1890 = vpop.f32.mrf.mxu0
  %1891 = vmatprep.mubr.f32.mxu0 0.0
  %1892 = vmatmul.mubr.f32.gmra.mxu0 %v1739
  %v1893 = vpop.f32.mrf.mxu0
  %v1894 = vadd.f32 0.0, %v1893
  %v1895 = vpop.f32.mrf.mxu0
  %1896 = vmatprep.mubr.f32.mxu0 0.0
  %1897 = vmatmul.mubr.f32.gmra.mxu0 %v1740
  %v1898 = vpop.f32.mrf.mxu0
  %v1899 = vadd.f32 0.0, %v1898
  %v1900 = vpop.f32.mrf.mxu0
  %1901 = vmatprep.mubr.f32.mxu0 0.0
  %1902 = vmatmul.mubr.f32.gmra.mxu0 %v1741
  %v1903 = vpop.f32.mrf.mxu0
  %v1904 = vadd.f32 0.0, %v1903
  %v1905 = vpop.f32.mrf.mxu0
  %1906 = vmatprep.mubr.f32.mxu0 0.0
  %1907 = vmatmul.mubr.f32.gmra.mxu0 %v1742
  %v1908 = vpop.f32.mrf.mxu0
  %v1909 = vadd.f32 0.0, %v1908
  %v1910 = vpop.f32.mrf.mxu0
  %1911 = vmatprep.mubr.f32.mxu0 0.0
  %1912 = vmatmul.mubr.f32.gmra.mxu0 %v1743
  %v1913 = vpop.f32.mrf.mxu0
  %v1914 = vadd.f32 0.0, %v1913
  %v1915 = vpop.f32.mrf.mxu0
  %1916 = vmatprep.mubr.f32.mxu0 0.0
  %1917 = vmatmul.mubr.f32.gmra.mxu0 %v1744
  %v1918 = vpop.f32.mrf.mxu0
  %v1919 = vadd.f32 0.0, %v1918
  %v1920 = vpop.f32.mrf.mxu0
  %1921 = vmatprep.mubr.f32.mxu0 0.0
  %1922 = vmatmul.mubr.f32.gmra.mxu0 %v1745
  %v1923 = vpop.f32.mrf.mxu0
  %v1924 = vadd.f32 0.0, %v1923
  %v1925 = vpop.f32.mrf.mxu0
  %1926 = vmatprep.mubr.f32.mxu0 0.0
  %1927 = vmatmul.mubr.f32.gmra.mxu0 %v1746
  %v1928 = vpop.f32.mrf.mxu0
  %v1929 = vadd.f32 0.0, %v1928
  %v1930 = vpop.f32.mrf.mxu0
  %1931 = vmatprep.mubr.f32.mxu0 0.0
  %1932 = vmatmul.mubr.f32.gmra.mxu0 %v1747
  %v1933 = vpop.f32.mrf.mxu0
  %v1934 = vadd.f32 0.0, %v1933
  %v1935 = vpop.f32.mrf.mxu0
  %1936 = vmatprep.mubr.f32.mxu0 0.0
  %1937 = vmatmul.mubr.f32.gmra.mxu0 %v1748
  %v1938 = vpop.f32.mrf.mxu0
  %v1939 = vadd.f32 0.0, %v1938
  %v1940 = vpop.f32.mrf.mxu0
  %1941 = vdwg.mxu0
  %1942 = vrot.lane.b32.xlu0 %v188, 112
  %v1943 = vpop.permute.xlu0 %1942
  %1944 = vrot.lane.b32.xlu0 %v193, 112
  %v1945 = vpop.permute.xlu0 %1944
  %1946 = vrot.lane.b32.xlu0 %v198, 112
  %v1947 = vpop.permute.xlu0 %1946
  %1948 = vrot.lane.b32.xlu0 %v203, 112
  %v1949 = vpop.permute.xlu0 %1948
  %1950 = vrot.lane.b32.xlu0 %v208, 112
  %v1951 = vpop.permute.xlu0 %1950
  %1952 = vrot.lane.b32.xlu0 %v213, 112
  %v1953 = vpop.permute.xlu0 %1952
  %1954 = vrot.lane.b32.xlu0 %v218, 112
  %v1955 = vpop.permute.xlu0 %1954
  %1956 = vrot.lane.b32.xlu0 %v223, 112
  %v1957 = vpop.permute.xlu0 %1956
  %1958 = vrot.lane.b32.xlu0 %v228, 112
  %v1959 = vpop.permute.xlu0 %1958
  %1960 = vrot.lane.b32.xlu0 %v233, 112
  %v1961 = vpop.permute.xlu0 %1960
  %1962 = vrot.lane.b32.xlu0 %v238, 112
  %v1963 = vpop.permute.xlu0 %1962
  %1964 = vrot.lane.b32.xlu0 %v243, 112
  %v1965 = vpop.permute.xlu0 %1964
  %1966 = vrot.lane.b32.xlu0 %v248, 112
  %v1967 = vpop.permute.xlu0 %1966
  %1968 = vrot.lane.b32.xlu0 %v253, 112
  %v1969 = vpop.permute.xlu0 %1968
  %1970 = vrot.lane.b32.xlu0 %v258, 112
  %v1971 = vpop.permute.xlu0 %1970
  %1972 = vrot.lane.b32.xlu0 %v263, 112
  %v1973 = vpop.permute.xlu0 %1972
  %1990 = vmatprep.subr.mxu0 0.0
  %1991 = vmatpush1.msra.mxu0 %v1973
  %1992 = vmatprep.subr.mxu0 0.0
  %1993 = vmatpush1.msra.mxu0 %v1971
  %1994 = vmatprep.subr.mxu0 0.0
  %1995 = vmatpush1.msra.mxu0 %v1969
  %1996 = vmatprep.subr.mxu0 0.0
  %1997 = vmatpush1.msra.mxu0 %v1967
  %1998 = vmatprep.subr.mxu0 0.0
  %1999 = vmatpush1.msra.mxu0 %v1965
  %2000 = vmatprep.subr.mxu0 0.0
  %2001 = vmatpush1.msra.mxu0 %v1963
  %2002 = vmatprep.subr.mxu0 0.0
  %2003 = vmatpush1.msra.mxu0 %v1961
  %2004 = vmatprep.subr.mxu0 0.0
  %2005 = vmatpush1.msra.mxu0 %v1959
  %2006 = vmatprep.subr.mxu0 0.0
  %2007 = vmatpush1.msra.mxu0 %v1957
  %2008 = vmatprep.subr.mxu0 0.0
  %2009 = vmatpush1.msra.mxu0 %v1955
  %2010 = vmatprep.subr.mxu0 0.0
  %2011 = vmatpush1.msra.mxu0 %v1953
  %2012 = vmatprep.subr.mxu0 0.0
  %2013 = vmatpush1.msra.mxu0 %v1951
  %2014 = vmatprep.subr.mxu0 0.0
  %2015 = vmatpush1.msra.mxu0 %v1949
  %2016 = vmatprep.subr.mxu0 0.0
  %2017 = vmatpush1.msra.mxu0 %v1947
  %2018 = vmatprep.subr.mxu0 0.0
  %2019 = vmatpush1.msra.mxu0 %v1945
  %2020 = vmatprep.subr.mxu0 0.0
  %2021 = vmatpush1.msra.mxu0 %v1943
  %2022 = vmatprep.subr.mxu0 0.0
  %2023 = vmatpush2.msra.mxu0 0.0
  %2024 = vmatprep.subr.mxu0 0.0
  %2025 = vmatpush2.msra.mxu0 0.0
  %2026 = vmatprep.subr.mxu0 0.0
  %2027 = vmatpush2.msra.mxu0 0.0
  %2028 = vmatprep.subr.mxu0 0.0
  %2029 = vmatpush2.msra.mxu0 0.0
  %2030 = vmatprep.subr.mxu0 0.0
  %2031 = vmatpush2.msra.mxu0 0.0
  %2032 = vmatprep.subr.mxu0 0.0
  %2033 = vmatpush2.msra.mxu0 0.0
  %2034 = vmatprep.subr.mxu0 0.0
  %2035 = vmatpush2.msra.mxu0 0.0
  %2036 = vmatprep.subr.mxu0 0.0
  %2037 = vmatpush2.msra.mxu0 0.0
  %2038 = vmatprep.subr.mxu0 0.0
  %2039 = vmatpush2.msra.mxu0 0.0
  %2040 = vmatprep.subr.mxu0 0.0
  %2041 = vmatpush2.msra.mxu0 0.0
  %2042 = vmatprep.subr.mxu0 0.0
  %2043 = vmatpush2.msra.mxu0 0.0
  %2044 = vmatprep.subr.mxu0 0.0
  %2045 = vmatpush2.msra.mxu0 0.0
  %2046 = vmatprep.subr.mxu0 0.0
  %2047 = vmatpush2.msra.mxu0 0.0
  %2048 = vmatprep.subr.mxu0 0.0
  %2049 = vmatpush2.msra.mxu0 0.0
  %2050 = vmatprep.subr.mxu0 0.0
  %2051 = vmatpush2.msra.mxu0 0.0
  %2052 = vmatprep.subr.mxu0 0.0
  %2053 = vmatpush2.msra.mxu0 0.0
  %2054 = vmatprep.mubr.f32.mxu0 0.0
  %2055 = vmatmul.mubr.f32.gmra.mxu0 %v1749
  %v2056 = vpop.f32.mrf.mxu0
  %v2057 = vadd.f32 0.0, %v2056
  %v2058 = vpop.f32.mrf.mxu0
  %2059 = vmatprep.mubr.f32.mxu0 0.0
  %2060 = vmatmul.mubr.f32.gmra.mxu0 %v1750
  %v2061 = vpop.f32.mrf.mxu0
  %v2062 = vadd.f32 0.0, %v2061
  %v2063 = vpop.f32.mrf.mxu0
  %2064 = vmatprep.mubr.f32.mxu0 0.0
  %2065 = vmatmul.mubr.f32.gmra.mxu0 %v1751
  %v2066 = vpop.f32.mrf.mxu0
  %v2067 = vadd.f32 0.0, %v2066
  %v2068 = vpop.f32.mrf.mxu0
  %2069 = vmatprep.mubr.f32.mxu0 0.0
  %2070 = vmatmul.mubr.f32.gmra.mxu0 %v1752
  %v2071 = vpop.f32.mrf.mxu0
  %v2072 = vadd.f32 0.0, %v2071
  %v2073 = vpop.f32.mrf.mxu0
  %2074 = vmatprep.mubr.f32.mxu0 0.0
  %2075 = vmatmul.mubr.f32.gmra.mxu0 %v1753
  %v2076 = vpop.f32.mrf.mxu0
  %v2077 = vadd.f32 0.0, %v2076
  %v2078 = vpop.f32.mrf.mxu0
  %2079 = vmatprep.mubr.f32.mxu0 0.0
  %2080 = vmatmul.mubr.f32.gmra.mxu0 %v1754
  %v2081 = vpop.f32.mrf.mxu0
  %v2082 = vadd.f32 0.0, %v2081
  %v2083 = vpop.f32.mrf.mxu0
  %2084 = vmatprep.mubr.f32.mxu0 0.0
  %2085 = vmatmul.mubr.f32.gmra.mxu0 %v1755
  %v2086 = vpop.f32.mrf.mxu0
  %v2087 = vadd.f32 0.0, %v2086
  %v2088 = vpop.f32.mrf.mxu0
  %2089 = vmatprep.mubr.f32.mxu0 0.0
  %2090 = vmatmul.mubr.f32.gmra.mxu0 %v1756
  %v2091 = vpop.f32.mrf.mxu0
  %v2092 = vadd.f32 0.0, %v2091
  %v2093 = vpop.f32.mrf.mxu0
  %2094 = vmatprep.mubr.f32.mxu0 0.0
  %2095 = vmatmul.mubr.f32.gmra.mxu0 %v1757
  %v2096 = vpop.f32.mrf.mxu0
  %v2097 = vadd.f32 0.0, %v2096
  %v2098 = vpop.f32.mrf.mxu0
  %2099 = vmatprep.mubr.f32.mxu0 0.0
  %2100 = vmatmul.mubr.f32.gmra.mxu0 %v1758
  %v2101 = vpop.f32.mrf.mxu0
  %v2102 = vadd.f32 0.0, %v2101
  %v2103 = vpop.f32.mrf.mxu0
  %2104 = vmatprep.mubr.f32.mxu0 0.0
  %2105 = vmatmul.mubr.f32.gmra.mxu0 %v1759
  %v2106 = vpop.f32.mrf.mxu0
  %v2107 = vadd.f32 0.0, %v2106
  %v2108 = vpop.f32.mrf.mxu0
  %2109 = vmatprep.mubr.f32.mxu0 0.0
  %2110 = vmatmul.mubr.f32.gmra.mxu0 %v1760
  %v2111 = vpop.f32.mrf.mxu0
  %v2112 = vadd.f32 0.0, %v2111
  %v2113 = vpop.f32.mrf.mxu0
  %2114 = vmatprep.mubr.f32.mxu0 0.0
  %2115 = vmatmul.mubr.f32.gmra.mxu0 %v1761
  %v2116 = vpop.f32.mrf.mxu0
  %v2117 = vadd.f32 0.0, %v2116
  %v2118 = vpop.f32.mrf.mxu0
  %2119 = vmatprep.mubr.f32.mxu0 0.0
  %2120 = vmatmul.mubr.f32.gmra.mxu0 %v1762
  %v2121 = vpop.f32.mrf.mxu0
  %v2122 = vadd.f32 0.0, %v2121
  %v2123 = vpop.f32.mrf.mxu0
  %2124 = vmatprep.mubr.f32.mxu0 0.0
  %2125 = vmatmul.mubr.f32.gmra.mxu0 %v1763
  %v2126 = vpop.f32.mrf.mxu0
  %v2127 = vadd.f32 0.0, %v2126
  %v2128 = vpop.f32.mrf.mxu0
  %2129 = vmatprep.mubr.f32.mxu0 0.0
  %2130 = vmatmul.mubr.f32.gmra.mxu0 %v1764
  %v2131 = vpop.f32.mrf.mxu0
  %v2132 = vadd.f32 0.0, %v2131
  %v2133 = vpop.f32.mrf.mxu0
  %2134 = vdwg.mxu0
  %2135 = vrot.lane.b32.xlu0 %v188, 96
  %v2136 = vpop.permute.xlu0 %2135
  %2137 = vrot.lane.b32.xlu0 %v193, 96
  %v2138 = vpop.permute.xlu0 %2137
  %2139 = vrot.lane.b32.xlu0 %v198, 96
  %v2140 = vpop.permute.xlu0 %2139
  %2141 = vrot.lane.b32.xlu0 %v203, 96
  %v2142 = vpop.permute.xlu0 %2141
  %2143 = vrot.lane.b32.xlu0 %v208, 96
  %v2144 = vpop.permute.xlu0 %2143
  %2145 = vrot.lane.b32.xlu0 %v213, 96
  %v2146 = vpop.permute.xlu0 %2145
  %2147 = vrot.lane.b32.xlu0 %v218, 96
  %v2148 = vpop.permute.xlu0 %2147
  %2149 = vrot.lane.b32.xlu0 %v223, 96
  %v2150 = vpop.permute.xlu0 %2149
  %2151 = vrot.lane.b32.xlu0 %v228, 96
  %v2152 = vpop.permute.xlu0 %2151
  %2153 = vrot.lane.b32.xlu0 %v233, 96
  %v2154 = vpop.permute.xlu0 %2153
  %2155 = vrot.lane.b32.xlu0 %v238, 96
  %v2156 = vpop.permute.xlu0 %2155
  %2157 = vrot.lane.b32.xlu0 %v243, 96
  %v2158 = vpop.permute.xlu0 %2157
  %2159 = vrot.lane.b32.xlu0 %v248, 96
  %v2160 = vpop.permute.xlu0 %2159
  %2161 = vrot.lane.b32.xlu0 %v253, 96
  %v2162 = vpop.permute.xlu0 %2161
  %2163 = vrot.lane.b32.xlu0 %v258, 96
  %v2164 = vpop.permute.xlu0 %2163
  %2165 = vrot.lane.b32.xlu0 %v263, 96
  %v2166 = vpop.permute.xlu0 %2165
  %2183 = vmatprep.subr.mxu0 0.0
  %2184 = vmatpush1.msra.mxu0 %v2166
  %2185 = vmatprep.subr.mxu0 0.0
  %2186 = vmatpush1.msra.mxu0 %v2164
  %2187 = vmatprep.subr.mxu0 0.0
  %2188 = vmatpush1.msra.mxu0 %v2162
  %2189 = vmatprep.subr.mxu0 0.0
  %2190 = vmatpush1.msra.mxu0 %v2160
  %2191 = vmatprep.subr.mxu0 0.0
  %2192 = vmatpush1.msra.mxu0 %v2158
  %2193 = vmatprep.subr.mxu0 0.0
  %2194 = vmatpush1.msra.mxu0 %v2156
  %2195 = vmatprep.subr.mxu0 0.0
  %2196 = vmatpush1.msra.mxu0 %v2154
  %2197 = vmatprep.subr.mxu0 0.0
  %2198 = vmatpush1.msra.mxu0 %v2152
  %2199 = vmatprep.subr.mxu0 0.0
  %2200 = vmatpush1.msra.mxu0 %v2150
  %2201 = vmatprep.subr.mxu0 0.0
  %2202 = vmatpush1.msra.mxu0 %v2148
  %2203 = vmatprep.subr.mxu0 0.0
  %2204 = vmatpush1.msra.mxu0 %v2146
  %2205 = vmatprep.subr.mxu0 0.0
  %2206 = vmatpush1.msra.mxu0 %v2144
  %2207 = vmatprep.subr.mxu0 0.0
  %2208 = vmatpush1.msra.mxu0 %v2142
  %2209 = vmatprep.subr.mxu0 0.0
  %2210 = vmatpush1.msra.mxu0 %v2140
  %2211 = vmatprep.subr.mxu0 0.0
  %2212 = vmatpush1.msra.mxu0 %v2138
  %2213 = vmatprep.subr.mxu0 0.0
  %2214 = vmatpush1.msra.mxu0 %v2136
  %2215 = vmatprep.subr.mxu0 0.0
  %2216 = vmatpush2.msra.mxu0 0.0
  %2217 = vmatprep.subr.mxu0 0.0
  %2218 = vmatpush2.msra.mxu0 0.0
  %2219 = vmatprep.subr.mxu0 0.0
  %2220 = vmatpush2.msra.mxu0 0.0
  %2221 = vmatprep.subr.mxu0 0.0
  %2222 = vmatpush2.msra.mxu0 0.0
  %2223 = vmatprep.subr.mxu0 0.0
  %2224 = vmatpush2.msra.mxu0 0.0
  %2225 = vmatprep.subr.mxu0 0.0
  %2226 = vmatpush2.msra.mxu0 0.0
  %2227 = vmatprep.subr.mxu0 0.0
  %2228 = vmatpush2.msra.mxu0 0.0
  %2229 = vmatprep.subr.mxu0 0.0
  %2230 = vmatpush2.msra.mxu0 0.0
  %2231 = vmatprep.subr.mxu0 0.0
  %2232 = vmatpush2.msra.mxu0 0.0
  %2233 = vmatprep.subr.mxu0 0.0
  %2234 = vmatpush2.msra.mxu0 0.0
  %2235 = vmatprep.subr.mxu0 0.0
  %2236 = vmatpush2.msra.mxu0 0.0
  %2237 = vmatprep.subr.mxu0 0.0
  %2238 = vmatpush2.msra.mxu0 0.0
  %2239 = vmatprep.subr.mxu0 0.0
  %2240 = vmatpush2.msra.mxu0 0.0
  %2241 = vmatprep.subr.mxu0 0.0
  %2242 = vmatpush2.msra.mxu0 0.0
  %2243 = vmatprep.subr.mxu0 0.0
  %2244 = vmatpush2.msra.mxu0 0.0
  %2245 = vmatprep.subr.mxu0 0.0
  %2246 = vmatpush2.msra.mxu0 0.0
  %2247 = vmatprep.mubr.f32.mxu0 0.0
  %2248 = vmatmul.mubr.f32.gmra.mxu0 %v1765
  %v2249 = vpop.f32.mrf.mxu0
  %v2250 = vadd.f32 0.0, %v2249
  %v2251 = vpop.f32.mrf.mxu0
  %2252 = vmatprep.mubr.f32.mxu0 0.0
  %2253 = vmatmul.mubr.f32.gmra.mxu0 %v1766
  %v2254 = vpop.f32.mrf.mxu0
  %v2255 = vadd.f32 0.0, %v2254
  %v2256 = vpop.f32.mrf.mxu0
  %2257 = vmatprep.mubr.f32.mxu0 0.0
  %2258 = vmatmul.mubr.f32.gmra.mxu0 %v1767
  %v2259 = vpop.f32.mrf.mxu0
  %v2260 = vadd.f32 0.0, %v2259
  %v2261 = vpop.f32.mrf.mxu0
  %2262 = vmatprep.mubr.f32.mxu0 0.0
  %2263 = vmatmul.mubr.f32.gmra.mxu0 %v1768
  %v2264 = vpop.f32.mrf.mxu0
  %v2265 = vadd.f32 0.0, %v2264
  %v2266 = vpop.f32.mrf.mxu0
  %2267 = vmatprep.mubr.f32.mxu0 0.0
  %2268 = vmatmul.mubr.f32.gmra.mxu0 %v1769
  %v2269 = vpop.f32.mrf.mxu0
  %v2270 = vadd.f32 0.0, %v2269
  %v2271 = vpop.f32.mrf.mxu0
  %2272 = vmatprep.mubr.f32.mxu0 0.0
  %2273 = vmatmul.mubr.f32.gmra.mxu0 %v1770
  %v2274 = vpop.f32.mrf.mxu0
  %v2275 = vadd.f32 0.0, %v2274
  %v2276 = vpop.f32.mrf.mxu0
  %2277 = vmatprep.mubr.f32.mxu0 0.0
  %2278 = vmatmul.mubr.f32.gmra.mxu0 %v1771
  %v2279 = vpop.f32.mrf.mxu0
  %v2280 = vadd.f32 0.0, %v2279
  %v2281 = vpop.f32.mrf.mxu0
  %2282 = vmatprep.mubr.f32.mxu0 0.0
  %2283 = vmatmul.mubr.f32.gmra.mxu0 %v1772
  %v2284 = vpop.f32.mrf.mxu0
  %v2285 = vadd.f32 0.0, %v2284
  %v2286 = vpop.f32.mrf.mxu0
  %2287 = vmatprep.mubr.f32.mxu0 0.0
  %2288 = vmatmul.mubr.f32.gmra.mxu0 %v1773
  %v2289 = vpop.f32.mrf.mxu0
  %v2290 = vadd.f32 0.0, %v2289
  %v2291 = vpop.f32.mrf.mxu0
  %2292 = vmatprep.mubr.f32.mxu0 0.0
  %2293 = vmatmul.mubr.f32.gmra.mxu0 %v1774
  %v2294 = vpop.f32.mrf.mxu0
  %v2295 = vadd.f32 0.0, %v2294
  %v2296 = vpop.f32.mrf.mxu0
  %2297 = vmatprep.mubr.f32.mxu0 0.0
  %2298 = vmatmul.mubr.f32.gmra.mxu0 %v1775
  %v2299 = vpop.f32.mrf.mxu0
  %v2300 = vadd.f32 0.0, %v2299
  %v2301 = vpop.f32.mrf.mxu0
  %2302 = vmatprep.mubr.f32.mxu0 0.0
  %2303 = vmatmul.mubr.f32.gmra.mxu0 %v1776
  %v2304 = vpop.f32.mrf.mxu0
  %v2305 = vadd.f32 0.0, %v2304
  %v2306 = vpop.f32.mrf.mxu0
  %2307 = vmatprep.mubr.f32.mxu0 0.0
  %2308 = vmatmul.mubr.f32.gmra.mxu0 %v1777
  %v2309 = vpop.f32.mrf.mxu0
  %v2310 = vadd.f32 0.0, %v2309
  %v2311 = vpop.f32.mrf.mxu0
  %2312 = vmatprep.mubr.f32.mxu0 0.0
  %2313 = vmatmul.mubr.f32.gmra.mxu0 %v1778
  %v2314 = vpop.f32.mrf.mxu0
  %v2315 = vadd.f32 0.0, %v2314
  %v2316 = vpop.f32.mrf.mxu0
  %2317 = vmatprep.mubr.f32.mxu0 0.0
  %2318 = vmatmul.mubr.f32.gmra.mxu0 %v1779
  %v2319 = vpop.f32.mrf.mxu0
  %v2320 = vadd.f32 0.0, %v2319
  %v2321 = vpop.f32.mrf.mxu0
  %2322 = vmatprep.mubr.f32.mxu0 0.0
  %2323 = vmatmul.mubr.f32.gmra.mxu0 %v1780
  %v2324 = vpop.f32.mrf.mxu0
  %v2325 = vadd.f32 0.0, %v2324
  %v2326 = vpop.f32.mrf.mxu0
  %2327 = vdwg.mxu0
  %2328 = vrot.lane.b32.xlu0 %v188, 80
  %v2329 = vpop.permute.xlu0 %2328
  %2330 = vrot.lane.b32.xlu0 %v193, 80
  %v2331 = vpop.permute.xlu0 %2330
  %2332 = vrot.lane.b32.xlu0 %v198, 80
  %v2333 = vpop.permute.xlu0 %2332
  %2334 = vrot.lane.b32.xlu0 %v203, 80
  %v2335 = vpop.permute.xlu0 %2334
  %2336 = vrot.lane.b32.xlu0 %v208, 80
  %v2337 = vpop.permute.xlu0 %2336
  %2338 = vrot.lane.b32.xlu0 %v213, 80
  %v2339 = vpop.permute.xlu0 %2338
  %2340 = vrot.lane.b32.xlu0 %v218, 80
  %v2341 = vpop.permute.xlu0 %2340
  %2342 = vrot.lane.b32.xlu0 %v223, 80
  %v2343 = vpop.permute.xlu0 %2342
  %2344 = vrot.lane.b32.xlu0 %v228, 80
  %v2345 = vpop.permute.xlu0 %2344
  %2346 = vrot.lane.b32.xlu0 %v233, 80
  %v2347 = vpop.permute.xlu0 %2346
  %2348 = vrot.lane.b32.xlu0 %v238, 80
  %v2349 = vpop.permute.xlu0 %2348
  %2350 = vrot.lane.b32.xlu0 %v243, 80
  %v2351 = vpop.permute.xlu0 %2350
  %2352 = vrot.lane.b32.xlu0 %v248, 80
  %v2353 = vpop.permute.xlu0 %2352
  %2354 = vrot.lane.b32.xlu0 %v253, 80
  %v2355 = vpop.permute.xlu0 %2354
  %2356 = vrot.lane.b32.xlu0 %v258, 80
  %v2357 = vpop.permute.xlu0 %2356
  %2358 = vrot.lane.b32.xlu0 %v263, 80
  %v2359 = vpop.permute.xlu0 %2358
  %2376 = vmatprep.subr.mxu0 0.0
  %2377 = vmatpush1.msra.mxu0 %v2359
  %2378 = vmatprep.subr.mxu0 0.0
  %2379 = vmatpush1.msra.mxu0 %v2357
  %2380 = vmatprep.subr.mxu0 0.0
  %2381 = vmatpush1.msra.mxu0 %v2355
  %2382 = vmatprep.subr.mxu0 0.0
  %2383 = vmatpush1.msra.mxu0 %v2353
  %2384 = vmatprep.subr.mxu0 0.0
  %2385 = vmatpush1.msra.mxu0 %v2351
  %2386 = vmatprep.subr.mxu0 0.0
  %2387 = vmatpush1.msra.mxu0 %v2349
  %2388 = vmatprep.subr.mxu0 0.0
  %2389 = vmatpush1.msra.mxu0 %v2347
  %2390 = vmatprep.subr.mxu0 0.0
  %2391 = vmatpush1.msra.mxu0 %v2345
  %2392 = vmatprep.subr.mxu0 0.0
  %2393 = vmatpush1.msra.mxu0 %v2343
  %2394 = vmatprep.subr.mxu0 0.0
  %2395 = vmatpush1.msra.mxu0 %v2341
  %2396 = vmatprep.subr.mxu0 0.0
  %2397 = vmatpush1.msra.mxu0 %v2339
  %2398 = vmatprep.subr.mxu0 0.0
  %2399 = vmatpush1.msra.mxu0 %v2337
  %2400 = vmatprep.subr.mxu0 0.0
  %2401 = vmatpush1.msra.mxu0 %v2335
  %2402 = vmatprep.subr.mxu0 0.0
  %2403 = vmatpush1.msra.mxu0 %v2333
  %2404 = vmatprep.subr.mxu0 0.0
  %2405 = vmatpush1.msra.mxu0 %v2331
  %2406 = vmatprep.subr.mxu0 0.0
  %2407 = vmatpush1.msra.mxu0 %v2329
  %2408 = vmatprep.subr.mxu0 0.0
  %2409 = vmatpush2.msra.mxu0 0.0
  %2410 = vmatprep.subr.mxu0 0.0
  %2411 = vmatpush2.msra.mxu0 0.0
  %2412 = vmatprep.subr.mxu0 0.0
  %2413 = vmatpush2.msra.mxu0 0.0
  %2414 = vmatprep.subr.mxu0 0.0
  %2415 = vmatpush2.msra.mxu0 0.0
  %2416 = vmatprep.subr.mxu0 0.0
  %2417 = vmatpush2.msra.mxu0 0.0
  %2418 = vmatprep.subr.mxu0 0.0
  %2419 = vmatpush2.msra.mxu0 0.0
  %2420 = vmatprep.subr.mxu0 0.0
  %2421 = vmatpush2.msra.mxu0 0.0
  %2422 = vmatprep.subr.mxu0 0.0
  %2423 = vmatpush2.msra.mxu0 0.0
  %2424 = vmatprep.subr.mxu0 0.0
  %2425 = vmatpush2.msra.mxu0 0.0
  %2426 = vmatprep.subr.mxu0 0.0
  %2427 = vmatpush2.msra.mxu0 0.0
  %2428 = vmatprep.subr.mxu0 0.0
  %2429 = vmatpush2.msra.mxu0 0.0
  %2430 = vmatprep.subr.mxu0 0.0
  %2431 = vmatpush2.msra.mxu0 0.0
  %2432 = vmatprep.subr.mxu0 0.0
  %2433 = vmatpush2.msra.mxu0 0.0
  %2434 = vmatprep.subr.mxu0 0.0
  %2435 = vmatpush2.msra.mxu0 0.0
  %2436 = vmatprep.subr.mxu0 0.0
  %2437 = vmatpush2.msra.mxu0 0.0
  %2438 = vmatprep.subr.mxu0 0.0
  %2439 = vmatpush2.msra.mxu0 0.0
  %2440 = vmatprep.mubr.f32.mxu0 0.0
  %2441 = vmatmul.mubr.f32.gmra.mxu0 %v1781
  %v2442 = vpop.f32.mrf.mxu0
  %v2443 = vadd.f32 0.0, %v2442
  %v2444 = vpop.f32.mrf.mxu0
  %2445 = vmatprep.mubr.f32.mxu0 0.0
  %2446 = vmatmul.mubr.f32.gmra.mxu0 %v1782
  %v2447 = vpop.f32.mrf.mxu0
  %v2448 = vadd.f32 0.0, %v2447
  %v2449 = vpop.f32.mrf.mxu0
  %2450 = vmatprep.mubr.f32.mxu0 0.0
  %2451 = vmatmul.mubr.f32.gmra.mxu0 %v1783
  %v2452 = vpop.f32.mrf.mxu0
  %v2453 = vadd.f32 0.0, %v2452
  %v2454 = vpop.f32.mrf.mxu0
  %2455 = vmatprep.mubr.f32.mxu0 0.0
  %2456 = vmatmul.mubr.f32.gmra.mxu0 %v1784
  %v2457 = vpop.f32.mrf.mxu0
  %v2458 = vadd.f32 0.0, %v2457
  %v2459 = vpop.f32.mrf.mxu0
  %2460 = vmatprep.mubr.f32.mxu0 0.0
  %2461 = vmatmul.mubr.f32.gmra.mxu0 %v1785
  %v2462 = vpop.f32.mrf.mxu0
  %v2463 = vadd.f32 0.0, %v2462
  %v2464 = vpop.f32.mrf.mxu0
  %2465 = vmatprep.mubr.f32.mxu0 0.0
  %2466 = vmatmul.mubr.f32.gmra.mxu0 %v1786
  %v2467 = vpop.f32.mrf.mxu0
  %v2468 = vadd.f32 0.0, %v2467
  %v2469 = vpop.f32.mrf.mxu0
  %2470 = vmatprep.mubr.f32.mxu0 0.0
  %2471 = vmatmul.mubr.f32.gmra.mxu0 %v1787
  %v2472 = vpop.f32.mrf.mxu0
  %v2473 = vadd.f32 0.0, %v2472
  %v2474 = vpop.f32.mrf.mxu0
  %2475 = vmatprep.mubr.f32.mxu0 0.0
  %2476 = vmatmul.mubr.f32.gmra.mxu0 %v1788
  %v2477 = vpop.f32.mrf.mxu0
  %v2478 = vadd.f32 0.0, %v2477
  %v2479 = vpop.f32.mrf.mxu0
  %2480 = vmatprep.mubr.f32.mxu0 0.0
  %2481 = vmatmul.mubr.f32.gmra.mxu0 %v1789
  %v2482 = vpop.f32.mrf.mxu0
  %v2483 = vadd.f32 0.0, %v2482
  %v2484 = vpop.f32.mrf.mxu0
  %2485 = vmatprep.mubr.f32.mxu0 0.0
  %2486 = vmatmul.mubr.f32.gmra.mxu0 %v1790
  %v2487 = vpop.f32.mrf.mxu0
  %v2488 = vadd.f32 0.0, %v2487
  %v2489 = vpop.f32.mrf.mxu0
  %2490 = vmatprep.mubr.f32.mxu0 0.0
  %2491 = vmatmul.mubr.f32.gmra.mxu0 %v1791
  %v2492 = vpop.f32.mrf.mxu0
  %v2493 = vadd.f32 0.0, %v2492
  %v2494 = vpop.f32.mrf.mxu0
  %2495 = vmatprep.mubr.f32.mxu0 0.0
  %2496 = vmatmul.mubr.f32.gmra.mxu0 %v1792
  %v2497 = vpop.f32.mrf.mxu0
  %v2498 = vadd.f32 0.0, %v2497
  %v2499 = vpop.f32.mrf.mxu0
  %2500 = vmatprep.mubr.f32.mxu0 0.0
  %2501 = vmatmul.mubr.f32.gmra.mxu0 %v1793
  %v2502 = vpop.f32.mrf.mxu0
  %v2503 = vadd.f32 0.0, %v2502
  %v2504 = vpop.f32.mrf.mxu0
  %2505 = vmatprep.mubr.f32.mxu0 0.0
  %2506 = vmatmul.mubr.f32.gmra.mxu0 %v1794
  %v2507 = vpop.f32.mrf.mxu0
  %v2508 = vadd.f32 0.0, %v2507
  %v2509 = vpop.f32.mrf.mxu0
  %2510 = vmatprep.mubr.f32.mxu0 0.0
  %2511 = vmatmul.mubr.f32.gmra.mxu0 %v1795
  %v2512 = vpop.f32.mrf.mxu0
  %v2513 = vadd.f32 0.0, %v2512
  %v2514 = vpop.f32.mrf.mxu0
  %2515 = vmatprep.mubr.f32.mxu0 0.0
  %2516 = vmatmul.mubr.f32.gmra.mxu0 %v1796
  %v2517 = vpop.f32.mrf.mxu0
  %v2518 = vadd.f32 0.0, %v2517
  %v2519 = vpop.f32.mrf.mxu0
  %2520 = vdwg.mxu0
  %2537 = vrot.lane.b32.xlu0 %v2057, 16
  %v2538 = vpop.permute.xlu0 %2537
  %2539 = vrot.lane.b32.xlu0 %v2062, 16
  %v2540 = vpop.permute.xlu0 %2539
  %2541 = vrot.lane.b32.xlu0 %v2067, 16
  %v2542 = vpop.permute.xlu0 %2541
  %2543 = vrot.lane.b32.xlu0 %v2072, 16
  %v2544 = vpop.permute.xlu0 %2543
  %2545 = vrot.lane.b32.xlu0 %v2077, 16
  %v2546 = vpop.permute.xlu0 %2545
  %2547 = vrot.lane.b32.xlu0 %v2082, 16
  %v2548 = vpop.permute.xlu0 %2547
  %2549 = vrot.lane.b32.xlu0 %v2087, 16
  %v2550 = vpop.permute.xlu0 %2549
  %2551 = vrot.lane.b32.xlu0 %v2092, 16
  %v2552 = vpop.permute.xlu0 %2551
  %2553 = vrot.lane.b32.xlu0 %v2097, 16
  %v2554 = vpop.permute.xlu0 %2553
  %2555 = vrot.lane.b32.xlu0 %v2102, 16
  %v2556 = vpop.permute.xlu0 %2555
  %2557 = vrot.lane.b32.xlu0 %v2107, 16
  %v2558 = vpop.permute.xlu0 %2557
  %2559 = vrot.lane.b32.xlu0 %v2112, 16
  %v2560 = vpop.permute.xlu0 %2559
  %2561 = vrot.lane.b32.xlu0 %v2117, 16
  %v2562 = vpop.permute.xlu0 %2561
  %2563 = vrot.lane.b32.xlu0 %v2122, 16
  %v2564 = vpop.permute.xlu0 %2563
  %2565 = vrot.lane.b32.xlu0 %v2127, 16
  %v2566 = vpop.permute.xlu0 %2565
  %2567 = vrot.lane.b32.xlu0 %v2132, 16
  %v2568 = vpop.permute.xlu0 %2567
  %2601 = vrot.lane.b32.xlu0 %v2250, 32
  %v2602 = vpop.permute.xlu0 %2601
  %2603 = vrot.lane.b32.xlu0 %v2255, 32
  %v2604 = vpop.permute.xlu0 %2603
  %2605 = vrot.lane.b32.xlu0 %v2260, 32
  %v2606 = vpop.permute.xlu0 %2605
  %2607 = vrot.lane.b32.xlu0 %v2265, 32
  %v2608 = vpop.permute.xlu0 %2607
  %2609 = vrot.lane.b32.xlu0 %v2270, 32
  %v2610 = vpop.permute.xlu0 %2609
  %2611 = vrot.lane.b32.xlu0 %v2275, 32
  %v2612 = vpop.permute.xlu0 %2611
  %2613 = vrot.lane.b32.xlu0 %v2280, 32
  %v2614 = vpop.permute.xlu0 %2613
  %2615 = vrot.lane.b32.xlu0 %v2285, 32
  %v2616 = vpop.permute.xlu0 %2615
  %2617 = vrot.lane.b32.xlu0 %v2290, 32
  %v2618 = vpop.permute.xlu0 %2617
  %2619 = vrot.lane.b32.xlu0 %v2295, 32
  %v2620 = vpop.permute.xlu0 %2619
  %2621 = vrot.lane.b32.xlu0 %v2300, 32
  %v2622 = vpop.permute.xlu0 %2621
  %2623 = vrot.lane.b32.xlu0 %v2305, 32
  %v2624 = vpop.permute.xlu0 %2623
  %2625 = vrot.lane.b32.xlu0 %v2310, 32
  %v2626 = vpop.permute.xlu0 %2625
  %2627 = vrot.lane.b32.xlu0 %v2315, 32
  %v2628 = vpop.permute.xlu0 %2627
  %2629 = vrot.lane.b32.xlu0 %v2320, 32
  %v2630 = vpop.permute.xlu0 %2629
  %2631 = vrot.lane.b32.xlu0 %v2325, 32
  %v2632 = vpop.permute.xlu0 %2631
  %2665 = vrot.lane.b32.xlu0 %v2443, 48
  %v2666 = vpop.permute.xlu0 %2665
  %2667 = vrot.lane.b32.xlu0 %v2448, 48
  %v2668 = vpop.permute.xlu0 %2667
  %2669 = vrot.lane.b32.xlu0 %v2453, 48
  %v2670 = vpop.permute.xlu0 %2669
  %2671 = vrot.lane.b32.xlu0 %v2458, 48
  %v2672 = vpop.permute.xlu0 %2671
  %2673 = vrot.lane.b32.xlu0 %v2463, 48
  %v2674 = vpop.permute.xlu0 %2673
  %2675 = vrot.lane.b32.xlu0 %v2468, 48
  %v2676 = vpop.permute.xlu0 %2675
  %2677 = vrot.lane.b32.xlu0 %v2473, 48
  %v2678 = vpop.permute.xlu0 %2677
  %2679 = vrot.lane.b32.xlu0 %v2478, 48
  %v2680 = vpop.permute.xlu0 %2679
  %2681 = vrot.lane.b32.xlu0 %v2483, 48
  %v2682 = vpop.permute.xlu0 %2681
  %2683 = vrot.lane.b32.xlu0 %v2488, 48
  %v2684 = vpop.permute.xlu0 %2683
  %2685 = vrot.lane.b32.xlu0 %v2493, 48
  %v2686 = vpop.permute.xlu0 %2685
  %2687 = vrot.lane.b32.xlu0 %v2498, 48
  %v2688 = vpop.permute.xlu0 %2687
  %2689 = vrot.lane.b32.xlu0 %v2503, 48
  %v2690 = vpop.permute.xlu0 %2689
  %2691 = vrot.lane.b32.xlu0 %v2508, 48
  %v2692 = vpop.permute.xlu0 %2691
  %2693 = vrot.lane.b32.xlu0 %v2513, 48
  %v2694 = vpop.permute.xlu0 %2693
  %2695 = vrot.lane.b32.xlu0 %v2518, 48
  %v2696 = vpop.permute.xlu0 %2695
  %v2713 = vsel %vm72, %v1864, %v2538
  %v2714 = vsel %vm72, %v1869, %v2540
  %v2715 = vsel %vm72, %v1874, %v2542
  %v2716 = vsel %vm72, %v1879, %v2544
  %v2717 = vsel %vm72, %v1884, %v2546
  %v2718 = vsel %vm72, %v1889, %v2548
  %v2719 = vsel %vm72, %v1894, %v2550
  %v2720 = vsel %vm72, %v1899, %v2552
  %v2721 = vsel %vm72, %v1904, %v2554
  %v2722 = vsel %vm72, %v1909, %v2556
  %v2723 = vsel %vm72, %v1914, %v2558
  %v2724 = vsel %vm72, %v1919, %v2560
  %v2725 = vsel %vm72, %v1924, %v2562
  %v2726 = vsel %vm72, %v1929, %v2564
  %v2727 = vsel %vm72, %v1934, %v2566
  %v2728 = vsel %vm72, %v1939, %v2568
  %vm2729 = vcmask 261120
  %v2730 = vsel %vm2729, %v2713, %v2602
  %v2731 = vsel %vm2729, %v2714, %v2604
  %v2732 = vsel %vm2729, %v2715, %v2606
  %v2733 = vsel %vm2729, %v2716, %v2608
  %v2734 = vsel %vm2729, %v2717, %v2610
  %v2735 = vsel %vm2729, %v2718, %v2612
  %v2736 = vsel %vm2729, %v2719, %v2614
  %v2737 = vsel %vm2729, %v2720, %v2616
  %v2738 = vsel %vm2729, %v2721, %v2618
  %v2739 = vsel %vm2729, %v2722, %v2620
  %v2740 = vsel %vm2729, %v2723, %v2622
  %v2741 = vsel %vm2729, %v2724, %v2624
  %v2742 = vsel %vm2729, %v2725, %v2626
  %v2743 = vsel %vm2729, %v2726, %v2628
  %v2744 = vsel %vm2729, %v2727, %v2630
  %v2745 = vsel %vm2729, %v2728, %v2632
  %vm2746 = vcmask 392192
  %v2747 = vsel %vm2746, %v2730, %v2666
  %v2748 = vsel %vm2746, %v2731, %v2668
  %v2749 = vsel %vm2746, %v2732, %v2670
  %v2750 = vsel %vm2746, %v2733, %v2672
  %v2751 = vsel %vm2746, %v2734, %v2674
  %v2752 = vsel %vm2746, %v2735, %v2676
  %v2753 = vsel %vm2746, %v2736, %v2678
  %v2754 = vsel %vm2746, %v2737, %v2680
  %v2755 = vsel %vm2746, %v2738, %v2682
  %v2756 = vsel %vm2746, %v2739, %v2684
  %v2757 = vsel %vm2746, %v2740, %v2686
  %v2758 = vsel %vm2746, %v2741, %v2688
  %v2759 = vsel %vm2746, %v2742, %v2690
  %v2760 = vsel %vm2746, %v2743, %v2692
  %v2761 = vsel %vm2746, %v2744, %v2694
  %v2762 = vsel %vm2746, %v2745, %v2696
  %v2764 = vlaneseq
  %v2765 = vshrl.u32 %v2764, 7
  %v2766 = vsub.s32 0, %v2765
  %v2767 = vrot.slane %v71, %v2766
  %v2769 = vadd.f32 %v2747, %v2767
  %v2770 = vadd.f32 %v2748, %v2767
  %v2771 = vadd.f32 %v2749, %v2767
  %v2772 = vadd.f32 %v2750, %v2767
  %v2773 = vadd.f32 %v2751, %v2767
  %v2774 = vadd.f32 %v2752, %v2767
  %v2775 = vadd.f32 %v2753, %v2767
  %v2776 = vadd.f32 %v2754, %v2767
  %v2777 = vadd.f32 %v2755, %v2767
  %v2778 = vadd.f32 %v2756, %v2767
  %v2779 = vadd.f32 %v2757, %v2767
  %v2780 = vadd.f32 %v2758, %v2767
  %v2781 = vadd.f32 %v2759, %v2767
  %v2782 = vadd.f32 %v2760, %v2767
  %v2783 = vadd.f32 %v2761, %v2767
  %v2784 = vadd.f32 %v2762, %v2767
  %v2785 = vmax.f32 %v2769, 0.0
  %v2786 = vmax.f32 %v2770, 0.0
  %v2787 = vmax.f32 %v2771, 0.0
  %v2788 = vmax.f32 %v2772, 0.0
  %v2789 = vmax.f32 %v2773, 0.0
  %v2790 = vmax.f32 %v2774, 0.0
  %v2791 = vmax.f32 %v2775, 0.0
  %v2792 = vmax.f32 %v2776, 0.0
  %v2793 = vmax.f32 %v2777, 0.0
  %v2794 = vmax.f32 %v2778, 0.0
  %v2795 = vmax.f32 %v2779, 0.0
  %v2796 = vmax.f32 %v2780, 0.0
  %v2797 = vmax.f32 %v2781, 0.0
  %v2798 = vmax.f32 %v2782, 0.0
  %v2799 = vmax.f32 %v2783, 0.0
  %v2800 = vmax.f32 %v2784, 0.0
  %v2801 = vld [vmem:[%s4] sm:$0xff]
  %v2802 = vld [vmem:[%s4 + $0x8] sm:$0xff]
  %v2803 = vld [vmem:[%s4 + $0x10] sm:$0xff]
  %v2804 = vld [vmem:[%s4 + $0x18] sm:$0xff]
  %v2805 = vld [vmem:[%s4 + $0x20] sm:$0xff]
  %v2806 = vld [vmem:[%s4 + $0x28] sm:$0xff]
  %v2807 = vld [vmem:[%s4 + $0x30] sm:$0xff]
  %v2808 = vld [vmem:[%s4 + $0x38] sm:$0xff]
  %v2809 = vld [vmem:[%s5] sm:$0xff]
  %v2810 = vld [vmem:[%s5 + $0x8] sm:$0xff]
  %v2811 = vld [vmem:[%s5 + $0x10] sm:$0xff]
  %v2812 = vld [vmem:[%s5 + $0x18] sm:$0xff]
  %v2813 = vld [vmem:[%s6] sm:$0x1]
  %v2815 = vsel %vm266, %v2785, 0
  %v2818 = vsel %vm266, %v2786, 0
  %v2821 = vsel %vm266, %v2787, 0
  %v2824 = vsel %vm266, %v2788, 0
  %v2827 = vsel %vm266, %v2789, 0
  %v2830 = vsel %vm266, %v2790, 0
  %v2833 = vsel %vm266, %v2791, 0
  %v2836 = vsel %vm266, %v2792, 0
  %v2839 = vsel %vm266, %v2793, 0
  %v2842 = vsel %vm266, %v2794, 0
  %v2845 = vsel %vm266, %v2795, 0
  %v2848 = vsel %vm266, %v2796, 0
  %v2851 = vsel %vm266, %v2797, 0
  %v2854 = vsel %vm266, %v2798, 0
  %v2857 = vsel %vm266, %v2799, 0
  %v2860 = vsel %vm266, %v2800, 0
  %2862 = vmatprep.subr.mxu0 0.0
  %2863 = vmatpush1.msra.mxu0 0.0
  %2864 = vmatprep.subr.mxu0 0.0
  %2865 = vmatpush1.msra.mxu0 0.0
  %2866 = vmatprep.subr.mxu0 0.0
  %2867 = vmatpush1.msra.mxu0 0.0
  %2868 = vmatprep.subr.mxu0 0.0
  %2869 = vmatpush1.msra.mxu0 0.0
  %2870 = vmatprep.subr.mxu0 0.0
  %2871 = vmatpush1.msra.mxu0 0.0
  %2872 = vmatprep.subr.mxu0 0.0
  %2873 = vmatpush1.msra.mxu0 0.0
  %2874 = vmatprep.subr.mxu0 0.0
  %2875 = vmatpush1.msra.mxu0 0.0
  %2876 = vmatprep.subr.mxu0 0.0
  %2877 = vmatpush1.msra.mxu0 0.0
  %2878 = vmatprep.subr.mxu0 0.0
  %2879 = vmatpush1.msra.mxu0 %v2808
  %2880 = vmatprep.subr.mxu0 0.0
  %2881 = vmatpush1.msra.mxu0 %v2807
  %2882 = vmatprep.subr.mxu0 0.0
  %2883 = vmatpush1.msra.mxu0 %v2806
  %2884 = vmatprep.subr.mxu0 0.0
  %2885 = vmatpush1.msra.mxu0 %v2805
  %2886 = vmatprep.subr.mxu0 0.0
  %2887 = vmatpush1.msra.mxu0 %v2804
  %2888 = vmatprep.subr.mxu0 0.0
  %2889 = vmatpush1.msra.mxu0 %v2803
  %2890 = vmatprep.subr.mxu0 0.0
  %2891 = vmatpush1.msra.mxu0 %v2802
  %2892 = vmatprep.subr.mxu0 0.0
  %2893 = vmatpush1.msra.mxu0 %v2801
  %2894 = vmatprep.subr.mxu0 0.0
  %2895 = vmatpush2.msra.mxu0 0.0
  %2896 = vmatprep.subr.mxu0 0.0
  %2897 = vmatpush2.msra.mxu0 0.0
  %2898 = vmatprep.subr.mxu0 0.0
  %2899 = vmatpush2.msra.mxu0 0.0
  %2900 = vmatprep.subr.mxu0 0.0
  %2901 = vmatpush2.msra.mxu0 0.0
  %2902 = vmatprep.subr.mxu0 0.0
  %2903 = vmatpush2.msra.mxu0 0.0
  %2904 = vmatprep.subr.mxu0 0.0
  %2905 = vmatpush2.msra.mxu0 0.0
  %2906 = vmatprep.subr.mxu0 0.0
  %2907 = vmatpush2.msra.mxu0 0.0
  %2908 = vmatprep.subr.mxu0 0.0
  %2909 = vmatpush2.msra.mxu0 0.0
  %2910 = vmatprep.subr.mxu0 0.0
  %2911 = vmatpush2.msra.mxu0 0.0
  %2912 = vmatprep.subr.mxu0 0.0
  %2913 = vmatpush2.msra.mxu0 0.0
  %2914 = vmatprep.subr.mxu0 0.0
  %2915 = vmatpush2.msra.mxu0 0.0
  %2916 = vmatprep.subr.mxu0 0.0
  %2917 = vmatpush2.msra.mxu0 0.0
  %2918 = vmatprep.subr.mxu0 0.0
  %2919 = vmatpush2.msra.mxu0 0.0
  %2920 = vmatprep.subr.mxu0 0.0
  %2921 = vmatpush2.msra.mxu0 0.0
  %2922 = vmatprep.subr.mxu0 0.0
  %2923 = vmatpush2.msra.mxu0 0.0
  %2924 = vmatprep.subr.mxu0 0.0
  %2925 = vmatpush2.msra.mxu0 0.0
  %2926 = vmatprep.mubr.f32.mxu0 0.0
  %2927 = vmatmul.mubr.f32.gmra.mxu0 %v2815
  %v2928 = vpop.f32.mrf.mxu0
  %v2929 = vadd.f32 0.0, %v2928
  %v2930 = vpop.f32.mrf.mxu0
  %2931 = vmatprep.mubr.f32.mxu0 0.0
  %2932 = vmatmul.mubr.f32.gmra.mxu0 %v2818
  %v2933 = vpop.f32.mrf.mxu0
  %v2934 = vadd.f32 0.0, %v2933
  %v2935 = vpop.f32.mrf.mxu0
  %2936 = vmatprep.mubr.f32.mxu0 0.0
  %2937 = vmatmul.mubr.f32.gmra.mxu0 %v2821
  %v2938 = vpop.f32.mrf.mxu0
  %v2939 = vadd.f32 0.0, %v2938
  %v2940 = vpop.f32.mrf.mxu0
  %2941 = vmatprep.mubr.f32.mxu0 0.0
  %2942 = vmatmul.mubr.f32.gmra.mxu0 %v2824
  %v2943 = vpop.f32.mrf.mxu0
  %v2944 = vadd.f32 0.0, %v2943
  %v2945 = vpop.f32.mrf.mxu0
  %2946 = vmatprep.mubr.f32.mxu0 0.0
  %2947 = vmatmul.mubr.f32.gmra.mxu0 %v2827
  %v2948 = vpop.f32.mrf.mxu0
  %v2949 = vadd.f32 0.0, %v2948
  %v2950 = vpop.f32.mrf.mxu0
  %2951 = vmatprep.mubr.f32.mxu0 0.0
  %2952 = vmatmul.mubr.f32.gmra.mxu0 %v2830
  %v2953 = vpop.f32.mrf.mxu0
  %v2954 = vadd.f32 0.0, %v2953
  %v2955 = vpop.f32.mrf.mxu0
  %2956 = vmatprep.mubr.f32.mxu0 0.0
  %2957 = vmatmul.mubr.f32.gmra.mxu0 %v2833
  %v2958 = vpop.f32.mrf.mxu0
  %v2959 = vadd.f32 0.0, %v2958
  %v2960 = vpop.f32.mrf.mxu0
  %2961 = vmatprep.mubr.f32.mxu0 0.0
  %2962 = vmatmul.mubr.f32.gmra.mxu0 %v2836
  %v2963 = vpop.f32.mrf.mxu0
  %v2964 = vadd.f32 0.0, %v2963
  %v2965 = vpop.f32.mrf.mxu0
  %2966 = vmatprep.mubr.f32.mxu0 0.0
  %2967 = vmatmul.mubr.f32.gmra.mxu0 %v2839
  %v2968 = vpop.f32.mrf.mxu0
  %v2969 = vadd.f32 0.0, %v2968
  %v2970 = vpop.f32.mrf.mxu0
  %2971 = vmatprep.mubr.f32.mxu0 0.0
  %2972 = vmatmul.mubr.f32.gmra.mxu0 %v2842
  %v2973 = vpop.f32.mrf.mxu0
  %v2974 = vadd.f32 0.0, %v2973
  %v2975 = vpop.f32.mrf.mxu0
  %2976 = vmatprep.mubr.f32.mxu0 0.0
  %2977 = vmatmul.mubr.f32.gmra.mxu0 %v2845
  %v2978 = vpop.f32.mrf.mxu0
  %v2979 = vadd.f32 0.0, %v2978
  %v2980 = vpop.f32.mrf.mxu0
  %2981 = vmatprep.mubr.f32.mxu0 0.0
  %2982 = vmatmul.mubr.f32.gmra.mxu0 %v2848
  %v2983 = vpop.f32.mrf.mxu0
  %v2984 = vadd.f32 0.0, %v2983
  %v2985 = vpop.f32.mrf.mxu0
  %2986 = vmatprep.mubr.f32.mxu0 0.0
  %2987 = vmatmul.mubr.f32.gmra.mxu0 %v2851
  %v2988 = vpop.f32.mrf.mxu0
  %v2989 = vadd.f32 0.0, %v2988
  %v2990 = vpop.f32.mrf.mxu0
  %2991 = vmatprep.mubr.f32.mxu0 0.0
  %2992 = vmatmul.mubr.f32.gmra.mxu0 %v2854
  %v2993 = vpop.f32.mrf.mxu0
  %v2994 = vadd.f32 0.0, %v2993
  %v2995 = vpop.f32.mrf.mxu0
  %2996 = vmatprep.mubr.f32.mxu0 0.0
  %2997 = vmatmul.mubr.f32.gmra.mxu0 %v2857
  %v2998 = vpop.f32.mrf.mxu0
  %v2999 = vadd.f32 0.0, %v2998
  %v3000 = vpop.f32.mrf.mxu0
  %3001 = vmatprep.mubr.f32.mxu0 0.0
  %3002 = vmatmul.mubr.f32.gmra.mxu0 %v2860
  %v3003 = vpop.f32.mrf.mxu0
  %v3004 = vadd.f32 0.0, %v3003
  %v3005 = vpop.f32.mrf.mxu0
  %3006 = vdwg.mxu0
  %v3008 = vsel %vm2729, %v2929, 0
  %v3011 = vsel %vm2729, %v2934, 0
  %v3014 = vsel %vm2729, %v2939, 0
  %v3017 = vsel %vm2729, %v2944, 0
  %v3020 = vsel %vm2729, %v2949, 0
  %v3023 = vsel %vm2729, %v2954, 0
  %v3026 = vsel %vm2729, %v2959, 0
  %v3029 = vsel %vm2729, %v2964, 0
  %v3032 = vsel %vm2729, %v2969, 0
  %v3035 = vsel %vm2729, %v2974, 0
  %v3038 = vsel %vm2729, %v2979, 0
  %v3041 = vsel %vm2729, %v2984, 0
  %v3044 = vsel %vm2729, %v2989, 0
  %v3047 = vsel %vm2729, %v2994, 0
  %v3050 = vsel %vm2729, %v2999, 0
  %v3053 = vsel %vm2729, %v3004, 0
  %3055 = vmatprep.subr.mxu0 0.0
  %3056 = vmatpush1.msra.mxu0 0.0
  %3057 = vmatprep.subr.mxu0 0.0
  %3058 = vmatpush1.msra.mxu0 0.0
  %3059 = vmatprep.subr.mxu0 0.0
  %3060 = vmatpush1.msra.mxu0 0.0
  %3061 = vmatprep.subr.mxu0 0.0
  %3062 = vmatpush1.msra.mxu0 0.0
  %3063 = vmatprep.subr.mxu0 0.0
  %3064 = vmatpush1.msra.mxu0 0.0
  %3065 = vmatprep.subr.mxu0 0.0
  %3066 = vmatpush1.msra.mxu0 0.0
  %3067 = vmatprep.subr.mxu0 0.0
  %3068 = vmatpush1.msra.mxu0 0.0
  %3069 = vmatprep.subr.mxu0 0.0
  %3070 = vmatpush1.msra.mxu0 0.0
  %3071 = vmatprep.subr.mxu0 0.0
  %3072 = vmatpush1.msra.mxu0 0.0
  %3073 = vmatprep.subr.mxu0 0.0
  %3074 = vmatpush1.msra.mxu0 0.0
  %3075 = vmatprep.subr.mxu0 0.0
  %3076 = vmatpush1.msra.mxu0 0.0
  %3077 = vmatprep.subr.mxu0 0.0
  %3078 = vmatpush1.msra.mxu0 0.0
  %3079 = vmatprep.subr.mxu0 0.0
  %3080 = vmatpush1.msra.mxu0 %v2812
  %3081 = vmatprep.subr.mxu0 0.0
  %3082 = vmatpush1.msra.mxu0 %v2811
  %3083 = vmatprep.subr.mxu0 0.0
  %3084 = vmatpush1.msra.mxu0 %v2810
  %3085 = vmatprep.subr.mxu0 0.0
  %3086 = vmatpush1.msra.mxu0 %v2809
  %3087 = vmatprep.subr.mxu0 0.0
  %3088 = vmatpush2.msra.mxu0 0.0
  %3089 = vmatprep.subr.mxu0 0.0
  %3090 = vmatpush2.msra.mxu0 0.0
  %3091 = vmatprep.subr.mxu0 0.0
  %3092 = vmatpush2.msra.mxu0 0.0
  %3093 = vmatprep.subr.mxu0 0.0
  %3094 = vmatpush2.msra.mxu0 0.0
  %3095 = vmatprep.subr.mxu0 0.0
  %3096 = vmatpush2.msra.mxu0 0.0
  %3097 = vmatprep.subr.mxu0 0.0
  %3098 = vmatpush2.msra.mxu0 0.0
  %3099 = vmatprep.subr.mxu0 0.0
  %3100 = vmatpush2.msra.mxu0 0.0
  %3101 = vmatprep.subr.mxu0 0.0
  %3102 = vmatpush2.msra.mxu0 0.0
  %3103 = vmatprep.subr.mxu0 0.0
  %3104 = vmatpush2.msra.mxu0 0.0
  %3105 = vmatprep.subr.mxu0 0.0
  %3106 = vmatpush2.msra.mxu0 0.0
  %3107 = vmatprep.subr.mxu0 0.0
  %3108 = vmatpush2.msra.mxu0 0.0
  %3109 = vmatprep.subr.mxu0 0.0
  %3110 = vmatpush2.msra.mxu0 0.0
  %3111 = vmatprep.subr.mxu0 0.0
  %3112 = vmatpush2.msra.mxu0 0.0
  %3113 = vmatprep.subr.mxu0 0.0
  %3114 = vmatpush2.msra.mxu0 0.0
  %3115 = vmatprep.subr.mxu0 0.0
  %3116 = vmatpush2.msra.mxu0 0.0
  %3117 = vmatprep.subr.mxu0 0.0
  %3118 = vmatpush2.msra.mxu0 0.0
  %3119 = vmatprep.mubr.f32.mxu0 0.0
  %3120 = vmatmul.mubr.f32.gmra.mxu0 %v3008
  %v3121 = vpop.f32.mrf.mxu0
  %v3122 = vadd.f32 0.0, %v3121
  %v3123 = vpop.f32.mrf.mxu0
  %3124 = vmatprep.mubr.f32.mxu0 0.0
  %3125 = vmatmul.mubr.f32.gmra.mxu0 %v3011
  %v3126 = vpop.f32.mrf.mxu0
  %v3127 = vadd.f32 0.0, %v3126
  %v3128 = vpop.f32.mrf.mxu0
  %3129 = vmatprep.mubr.f32.mxu0 0.0
  %3130 = vmatmul.mubr.f32.gmra.mxu0 %v3014
  %v3131 = vpop.f32.mrf.mxu0
  %v3132 = vadd.f32 0.0, %v3131
  %v3133 = vpop.f32.mrf.mxu0
  %3134 = vmatprep.mubr.f32.mxu0 0.0
  %3135 = vmatmul.mubr.f32.gmra.mxu0 %v3017
  %v3136 = vpop.f32.mrf.mxu0
  %v3137 = vadd.f32 0.0, %v3136
  %v3138 = vpop.f32.mrf.mxu0
  %3139 = vmatprep.mubr.f32.mxu0 0.0
  %3140 = vmatmul.mubr.f32.gmra.mxu0 %v3020
  %v3141 = vpop.f32.mrf.mxu0
  %v3142 = vadd.f32 0.0, %v3141
  %v3143 = vpop.f32.mrf.mxu0
  %3144 = vmatprep.mubr.f32.mxu0 0.0
  %3145 = vmatmul.mubr.f32.gmra.mxu0 %v3023
  %v3146 = vpop.f32.mrf.mxu0
  %v3147 = vadd.f32 0.0, %v3146
  %v3148 = vpop.f32.mrf.mxu0
  %3149 = vmatprep.mubr.f32.mxu0 0.0
  %3150 = vmatmul.mubr.f32.gmra.mxu0 %v3026
  %v3151 = vpop.f32.mrf.mxu0
  %v3152 = vadd.f32 0.0, %v3151
  %v3153 = vpop.f32.mrf.mxu0
  %3154 = vmatprep.mubr.f32.mxu0 0.0
  %3155 = vmatmul.mubr.f32.gmra.mxu0 %v3029
  %v3156 = vpop.f32.mrf.mxu0
  %v3157 = vadd.f32 0.0, %v3156
  %v3158 = vpop.f32.mrf.mxu0
  %3159 = vmatprep.mubr.f32.mxu0 0.0
  %3160 = vmatmul.mubr.f32.gmra.mxu0 %v3032
  %v3161 = vpop.f32.mrf.mxu0
  %v3162 = vadd.f32 0.0, %v3161
  %v3163 = vpop.f32.mrf.mxu0
  %3164 = vmatprep.mubr.f32.mxu0 0.0
  %3165 = vmatmul.mubr.f32.gmra.mxu0 %v3035
  %v3166 = vpop.f32.mrf.mxu0
  %v3167 = vadd.f32 0.0, %v3166
  %v3168 = vpop.f32.mrf.mxu0
  %3169 = vmatprep.mubr.f32.mxu0 0.0
  %3170 = vmatmul.mubr.f32.gmra.mxu0 %v3038
  %v3171 = vpop.f32.mrf.mxu0
  %v3172 = vadd.f32 0.0, %v3171
  %v3173 = vpop.f32.mrf.mxu0
  %3174 = vmatprep.mubr.f32.mxu0 0.0
  %3175 = vmatmul.mubr.f32.gmra.mxu0 %v3041
  %v3176 = vpop.f32.mrf.mxu0
  %v3177 = vadd.f32 0.0, %v3176
  %v3178 = vpop.f32.mrf.mxu0
  %3179 = vmatprep.mubr.f32.mxu0 0.0
  %3180 = vmatmul.mubr.f32.gmra.mxu0 %v3044
  %v3181 = vpop.f32.mrf.mxu0
  %v3182 = vadd.f32 0.0, %v3181
  %v3183 = vpop.f32.mrf.mxu0
  %3184 = vmatprep.mubr.f32.mxu0 0.0
  %3185 = vmatmul.mubr.f32.gmra.mxu0 %v3047
  %v3186 = vpop.f32.mrf.mxu0
  %v3187 = vadd.f32 0.0, %v3186
  %v3188 = vpop.f32.mrf.mxu0
  %3189 = vmatprep.mubr.f32.mxu0 0.0
  %3190 = vmatmul.mubr.f32.gmra.mxu0 %v3050
  %v3191 = vpop.f32.mrf.mxu0
  %v3192 = vadd.f32 0.0, %v3191
  %v3193 = vpop.f32.mrf.mxu0
  %3194 = vmatprep.mubr.f32.mxu0 0.0
  %3195 = vmatmul.mubr.f32.gmra.mxu0 %v3053
  %v3196 = vpop.f32.mrf.mxu0
  %v3197 = vadd.f32 0.0, %v3196
  %v3198 = vpop.f32.mrf.mxu0
  %3199 = vdwg.mxu0
  %3200 = vxpose.xlu0.b32.start [1/16] %v3122, 128
  %3201 = vxpose.xlu0.b32.cont [2/16] %v3127, 128
  %3202 = vxpose.xlu0.b32.cont [3/16] %v3132, 128
  %3203 = vxpose.xlu0.b32.cont [4/16] %v3137, 128
  %3204 = vxpose.xlu0.b32.cont [5/16] %v3142, 128
  %3205 = vxpose.xlu0.b32.cont [6/16] %v3147, 128
  %3206 = vxpose.xlu0.b32.cont [7/16] %v3152, 128
  %3207 = vxpose.xlu0.b32.cont [8/16] %v3157, 128
  %3208 = vxpose.xlu0.b32.cont [9/16] %v3162, 128
  %3209 = vxpose.xlu0.b32.cont [10/16] %v3167, 128
  %3210 = vxpose.xlu0.b32.cont [11/16] %v3172, 128
  %3211 = vxpose.xlu0.b32.cont [12/16] %v3177, 128
  %3212 = vxpose.xlu0.b32.cont [13/16] %v3182, 128
  %3213 = vxpose.xlu0.b32.cont [14/16] %v3187, 128
  %3214 = vxpose.xlu0.b32.cont [15/16] %v3192, 128
  %3215 = vxpose.xlu0.b32.end [16/16] %v3197, 128
  %v3216 = vpop.trf.xlu0
  %v3217 = vpop.trf.xlu0
  %v3218 = vpop.trf.xlu0
  %v3219 = vpop.trf.xlu0
  %v3220 = vpop.trf.xlu0
  %v3221 = vpop.trf.xlu0
  %v3222 = vpop.trf.xlu0
  %v3223 = vpop.trf.xlu0
  %v3224 = vpop.trf.xlu0
  %v3225 = vpop.trf.xlu0
  %v3226 = vpop.trf.xlu0
  %v3227 = vpop.trf.xlu0
  %v3228 = vpop.trf.xlu0
  %v3229 = vpop.trf.xlu0
  %v3230 = vpop.trf.xlu0
  %v3231 = vpop.trf.xlu0
  %3248 = vrot.lane.b32.xlu0 %v3122, 127
  %v3249 = vpop.permute.xlu0 %3248
  %3250 = vrot.lane.b32.xlu0 %v3127, 127
  %v3251 = vpop.permute.xlu0 %3250
  %3252 = vrot.lane.b32.xlu0 %v3132, 127
  %v3253 = vpop.permute.xlu0 %3252
  %3254 = vrot.lane.b32.xlu0 %v3137, 127
  %v3255 = vpop.permute.xlu0 %3254
  %3256 = vrot.lane.b32.xlu0 %v3142, 127
  %v3257 = vpop.permute.xlu0 %3256
  %3258 = vrot.lane.b32.xlu0 %v3147, 127
  %v3259 = vpop.permute.xlu0 %3258
  %3260 = vrot.lane.b32.xlu0 %v3152, 127
  %v3261 = vpop.permute.xlu0 %3260
  %3262 = vrot.lane.b32.xlu0 %v3157, 127
  %v3263 = vpop.permute.xlu0 %3262
  %3264 = vrot.lane.b32.xlu0 %v3162, 127
  %v3265 = vpop.permute.xlu0 %3264
  %3266 = vrot.lane.b32.xlu0 %v3167, 127
  %v3267 = vpop.permute.xlu0 %3266
  %3268 = vrot.lane.b32.xlu0 %v3172, 127
  %v3269 = vpop.permute.xlu0 %3268
  %3270 = vrot.lane.b32.xlu0 %v3177, 127
  %v3271 = vpop.permute.xlu0 %3270
  %3272 = vrot.lane.b32.xlu0 %v3182, 127
  %v3273 = vpop.permute.xlu0 %3272
  %3274 = vrot.lane.b32.xlu0 %v3187, 127
  %v3275 = vpop.permute.xlu0 %3274
  %3276 = vrot.lane.b32.xlu0 %v3192, 127
  %v3277 = vpop.permute.xlu0 %3276
  %3278 = vrot.lane.b32.xlu0 %v3197, 127
  %v3279 = vpop.permute.xlu0 %3278
  %3296 = vxpose.xlu0.b32.start [1/16] %v3249, 128
  %3297 = vxpose.xlu0.b32.cont [2/16] %v3251, 128
  %3298 = vxpose.xlu0.b32.cont [3/16] %v3253, 128
  %3299 = vxpose.xlu0.b32.cont [4/16] %v3255, 128
  %3300 = vxpose.xlu0.b32.cont [5/16] %v3257, 128
  %3301 = vxpose.xlu0.b32.cont [6/16] %v3259, 128
  %3302 = vxpose.xlu0.b32.cont [7/16] %v3261, 128
  %3303 = vxpose.xlu0.b32.cont [8/16] %v3263, 128
  %3304 = vxpose.xlu0.b32.cont [9/16] %v3265, 128
  %3305 = vxpose.xlu0.b32.cont [10/16] %v3267, 128
  %3306 = vxpose.xlu0.b32.cont [11/16] %v3269, 128
  %3307 = vxpose.xlu0.b32.cont [12/16] %v3271, 128
  %3308 = vxpose.xlu0.b32.cont [13/16] %v3273, 128
  %3309 = vxpose.xlu0.b32.cont [14/16] %v3275, 128
  %3310 = vxpose.xlu0.b32.cont [15/16] %v3277, 128
  %3311 = vxpose.xlu0.b32.end [16/16] %v3279, 128
  %v3312 = vpop.trf.xlu0
  %v3313 = vpop.trf.xlu0
  %v3314 = vpop.trf.xlu0
  %v3315 = vpop.trf.xlu0
  %v3316 = vpop.trf.xlu0
  %v3317 = vpop.trf.xlu0
  %v3318 = vpop.trf.xlu0
  %v3319 = vpop.trf.xlu0
  %v3320 = vpop.trf.xlu0
  %v3321 = vpop.trf.xlu0
  %v3322 = vpop.trf.xlu0
  %v3323 = vpop.trf.xlu0
  %v3324 = vpop.trf.xlu0
  %v3325 = vpop.trf.xlu0
  %v3326 = vpop.trf.xlu0
  %v3327 = vpop.trf.xlu0
  %v3328 = vlaneseq
  %v3329 = vshrl.u32 %v3328, 7
  %v3330 = vsub.s32 0, %v3329
  %v3331 = vrot.slane %v3216, %v3330
  %3333 = vbcast.lane.b32.xlu0 %v3331, 256
  %v3334 = vpop.permute.xlu0 %3333
  %s3336 = sor.u32 256, 8
  %3337 = vbcast.lane.b32.xlu0 %v3331, %s3336
  %v3338 = vpop.permute.xlu0 %3337
  %s3340 = sor.u32 256, 16
  %3341 = vbcast.lane.b32.xlu0 %v3331, %s3340
  %v3342 = vpop.permute.xlu0 %3341
  %s3344 = sor.u32 256, 24
  %3345 = vbcast.lane.b32.xlu0 %v3331, %s3344
  %v3346 = vpop.permute.xlu0 %3345
  %s3348 = sor.u32 256, 32
  %3349 = vbcast.lane.b32.xlu0 %v3331, %s3348
  %v3350 = vpop.permute.xlu0 %3349
  %s3352 = sor.u32 256, 40
  %3353 = vbcast.lane.b32.xlu0 %v3331, %s3352
  %v3354 = vpop.permute.xlu0 %3353
  %s3356 = sor.u32 256, 48
  %3357 = vbcast.lane.b32.xlu0 %v3331, %s3356
  %v3358 = vpop.permute.xlu0 %3357
  %s3360 = sor.u32 256, 56
  %3361 = vbcast.lane.b32.xlu0 %v3331, %s3360
  %v3362 = vpop.permute.xlu0 %3361
  %s3364 = sor.u32 256, 64
  %3365 = vbcast.lane.b32.xlu0 %v3331, %s3364
  %v3366 = vpop.permute.xlu0 %3365
  %s3368 = sor.u32 256, 72
  %3369 = vbcast.lane.b32.xlu0 %v3331, %s3368
  %v3370 = vpop.permute.xlu0 %3369
  %s3372 = sor.u32 256, 80
  %3373 = vbcast.lane.b32.xlu0 %v3331, %s3372
  %v3374 = vpop.permute.xlu0 %3373
  %s3376 = sor.u32 256, 88
  %3377 = vbcast.lane.b32.xlu0 %v3331, %s3376
  %v3378 = vpop.permute.xlu0 %3377
  %s3380 = sor.u32 256, 96
  %3381 = vbcast.lane.b32.xlu0 %v3331, %s3380
  %v3382 = vpop.permute.xlu0 %3381
  %s3384 = sor.u32 256, 104
  %3385 = vbcast.lane.b32.xlu0 %v3331, %s3384
  %v3386 = vpop.permute.xlu0 %3385
  %s3388 = sor.u32 256, 112
  %3389 = vbcast.lane.b32.xlu0 %v3331, %s3388
  %v3390 = vpop.permute.xlu0 %3389
  %s3392 = sor.u32 256, 120
  %3393 = vbcast.lane.b32.xlu0 %v3331, %s3392
  %v3394 = vpop.permute.xlu0 %3393
  %v3395 = vlaneseq
  %v3396 = vshrl.u32 %v3395, 7
  %v3397 = vsub.s32 0, %v3396
  %v3398 = vrot.slane %v3312, %v3397
  %v3399 = vadd.f32 %v3334, %v3398
  %v3400 = vadd.f32 %v3338, %v3398
  %v3401 = vadd.f32 %v3342, %v3398
  %v3402 = vadd.f32 %v3346, %v3398
  %v3403 = vadd.f32 %v3350, %v3398
  %v3404 = vadd.f32 %v3354, %v3398
  %v3405 = vadd.f32 %v3358, %v3398
  %v3406 = vadd.f32 %v3362, %v3398
  %v3407 = vadd.f32 %v3366, %v3398
  %v3408 = vadd.f32 %v3370, %v3398
  %v3409 = vadd.f32 %v3374, %v3398
  %v3410 = vadd.f32 %v3378, %v3398
  %v3411 = vadd.f32 %v3382, %v3398
  %v3412 = vadd.f32 %v3386, %v3398
  %v3413 = vadd.f32 %v3390, %v3398
  %v3414 = vadd.f32 %v3394, %v3398
  %vm3415 = vcmp.gt.f32.partialorder %v3399, 0.0
  %vm3416 = vcmp.gt.f32.partialorder %v3400, 0.0
  %vm3417 = vcmp.gt.f32.partialorder %v3401, 0.0
  %vm3418 = vcmp.gt.f32.partialorder %v3402, 0.0
  %vm3419 = vcmp.gt.f32.partialorder %v3403, 0.0
  %vm3420 = vcmp.gt.f32.partialorder %v3404, 0.0
  %vm3421 = vcmp.gt.f32.partialorder %v3405, 0.0
  %vm3422 = vcmp.gt.f32.partialorder %v3406, 0.0
  %vm3423 = vcmp.gt.f32.partialorder %v3407, 0.0
  %vm3424 = vcmp.gt.f32.partialorder %v3408, 0.0
  %vm3425 = vcmp.gt.f32.partialorder %v3409, 0.0
  %vm3426 = vcmp.gt.f32.partialorder %v3410, 0.0
  %vm3427 = vcmp.gt.f32.partialorder %v3411, 0.0
  %vm3428 = vcmp.gt.f32.partialorder %v3412, 0.0
  %vm3429 = vcmp.gt.f32.partialorder %v3413, 0.0
  %vm3430 = vcmp.gt.f32.partialorder %v3414, 0.0
  %v3431 = vmul.f32 %v3399, 0.2
  %v3432 = vmul.f32 %v3400, 0.2
  %v3433 = vmul.f32 %v3401, 0.2
  %v3434 = vmul.f32 %v3402, 0.2
  %v3435 = vmul.f32 %v3403, 0.2
  %v3436 = vmul.f32 %v3404, 0.2
  %v3437 = vmul.f32 %v3405, 0.2
  %v3438 = vmul.f32 %v3406, 0.2
  %v3439 = vmul.f32 %v3407, 0.2
  %v3440 = vmul.f32 %v3408, 0.2
  %v3441 = vmul.f32 %v3409, 0.2
  %v3442 = vmul.f32 %v3410, 0.2
  %v3443 = vmul.f32 %v3411, 0.2
  %v3444 = vmul.f32 %v3412, 0.2
  %v3445 = vmul.f32 %v3413, 0.2
  %v3446 = vmul.f32 %v3414, 0.2
  %v3447 = vsel %vm3415, %v3399, %v3431
  %v3448 = vsel %vm3416, %v3400, %v3432
  %v3449 = vsel %vm3417, %v3401, %v3433
  %v3450 = vsel %vm3418, %v3402, %v3434
  %v3451 = vsel %vm3419, %v3403, %v3435
  %v3452 = vsel %vm3420, %v3404, %v3436
  %v3453 = vsel %vm3421, %v3405, %v3437
  %v3454 = vsel %vm3422, %v3406, %v3438
  %v3455 = vsel %vm3423, %v3407, %v3439
  %v3456 = vsel %vm3424, %v3408, %v3440
  %v3457 = vsel %vm3425, %v3409, %v3441
  %v3458 = vsel %vm3426, %v3410, %v3442
  %v3459 = vsel %vm3427, %v3411, %v3443
  %v3460 = vsel %vm3428, %v3412, %v3444
  %v3461 = vsel %vm3429, %v3413, %v3445
  %v3462 = vsel %vm3430, %v3414, %v3446
  %v3463 = vadd.f32 %v3447, %v29
  %v3464 = vadd.f32 %v3448, %v30
  %v3465 = vadd.f32 %v3449, %v31
  %v3466 = vadd.f32 %v3450, %v32
  %v3467 = vadd.f32 %v3451, %v33
  %v3468 = vadd.f32 %v3452, %v34
  %v3469 = vadd.f32 %v3453, %v35
  %v3470 = vadd.f32 %v3454, %v36
  %v3471 = vadd.f32 %v3455, %v37
  %v3472 = vadd.f32 %v3456, %v38
  %v3473 = vadd.f32 %v3457, %v39
  %v3474 = vadd.f32 %v3458, %v40
  %v3475 = vadd.f32 %v3459, %v41
  %v3476 = vadd.f32 %v3460, %v42
  %v3477 = vadd.f32 %v3461, %v43
  %v3478 = vadd.f32 %v3462, %v44
  %3479 = vmax.xlane.f32.xlu0 %v3463
  %v3480 = vpop.xlane.xlu0 %3479
  %3481 = vmax.xlane.f32.xlu0 %v3464
  %v3482 = vpop.xlane.xlu0 %3481
  %3483 = vmax.xlane.f32.xlu0 %v3465
  %v3484 = vpop.xlane.xlu0 %3483
  %3485 = vmax.xlane.f32.xlu0 %v3466
  %v3486 = vpop.xlane.xlu0 %3485
  %3487 = vmax.xlane.f32.xlu0 %v3467
  %v3488 = vpop.xlane.xlu0 %3487
  %3489 = vmax.xlane.f32.xlu0 %v3468
  %v3490 = vpop.xlane.xlu0 %3489
  %3491 = vmax.xlane.f32.xlu0 %v3469
  %v3492 = vpop.xlane.xlu0 %3491
  %3493 = vmax.xlane.f32.xlu0 %v3470
  %v3494 = vpop.xlane.xlu0 %3493
  %3495 = vmax.xlane.f32.xlu0 %v3471
  %v3496 = vpop.xlane.xlu0 %3495
  %3497 = vmax.xlane.f32.xlu0 %v3472
  %v3498 = vpop.xlane.xlu0 %3497
  %3499 = vmax.xlane.f32.xlu0 %v3473
  %v3500 = vpop.xlane.xlu0 %3499
  %3501 = vmax.xlane.f32.xlu0 %v3474
  %v3502 = vpop.xlane.xlu0 %3501
  %3503 = vmax.xlane.f32.xlu0 %v3475
  %v3504 = vpop.xlane.xlu0 %3503
  %3505 = vmax.xlane.f32.xlu0 %v3476
  %v3506 = vpop.xlane.xlu0 %3505
  %3507 = vmax.xlane.f32.xlu0 %v3477
  %v3508 = vpop.xlane.xlu0 %3507
  %3509 = vmax.xlane.f32.xlu0 %v3478
  %v3510 = vpop.xlane.xlu0 %3509
  %v3511 = vsub.f32 %v3463, %v3480
  %v3512 = vsub.f32 %v3464, %v3482
  %v3513 = vsub.f32 %v3465, %v3484
  %v3514 = vsub.f32 %v3466, %v3486
  %v3515 = vsub.f32 %v3467, %v3488
  %v3516 = vsub.f32 %v3468, %v3490
  %v3517 = vsub.f32 %v3469, %v3492
  %v3518 = vsub.f32 %v3470, %v3494
  %v3519 = vsub.f32 %v3471, %v3496
  %v3520 = vsub.f32 %v3472, %v3498
  %v3521 = vsub.f32 %v3473, %v3500
  %v3522 = vsub.f32 %v3474, %v3502
  %v3523 = vsub.f32 %v3475, %v3504
  %v3524 = vsub.f32 %v3476, %v3506
  %v3525 = vsub.f32 %v3477, %v3508
  %v3526 = vsub.f32 %v3478, %v3510
  %v3527 = vmul.f32 %v3511, 1.442695
  %v3528 = vpow.pop %v3527
  %v3529 = vmul.f32 %v3512, 1.442695
  %v3530 = vpow.pop %v3529
  %v3531 = vmul.f32 %v3513, 1.442695
  %v3532 = vpow.pop %v3531
  %v3533 = vmul.f32 %v3514, 1.442695
  %v3534 = vpow.pop %v3533
  %v3535 = vmul.f32 %v3515, 1.442695
  %v3536 = vpow.pop %v3535
  %v3537 = vmul.f32 %v3516, 1.442695
  %v3538 = vpow.pop %v3537
  %v3539 = vmul.f32 %v3517, 1.442695
  %v3540 = vpow.pop %v3539
  %v3541 = vmul.f32 %v3518, 1.442695
  %v3542 = vpow.pop %v3541
  %v3543 = vmul.f32 %v3519, 1.442695
  %v3544 = vpow.pop %v3543
  %v3545 = vmul.f32 %v3520, 1.442695
  %v3546 = vpow.pop %v3545
  %v3547 = vmul.f32 %v3521, 1.442695
  %v3548 = vpow.pop %v3547
  %v3549 = vmul.f32 %v3522, 1.442695
  %v3550 = vpow.pop %v3549
  %v3551 = vmul.f32 %v3523, 1.442695
  %v3552 = vpow.pop %v3551
  %v3553 = vmul.f32 %v3524, 1.442695
  %v3554 = vpow.pop %v3553
  %v3555 = vmul.f32 %v3525, 1.442695
  %v3556 = vpow.pop %v3555
  %v3557 = vmul.f32 %v3526, 1.442695
  %v3558 = vpow.pop %v3557
  %3559 = vadd.xlane.f32.xlu0 %v3528
  %v3560 = vpop.xlane.xlu0 %3559
  %3561 = vadd.xlane.f32.xlu0 %v3530
  %v3562 = vpop.xlane.xlu0 %3561
  %3563 = vadd.xlane.f32.xlu0 %v3532
  %v3564 = vpop.xlane.xlu0 %3563
  %3565 = vadd.xlane.f32.xlu0 %v3534
  %v3566 = vpop.xlane.xlu0 %3565
  %3567 = vadd.xlane.f32.xlu0 %v3536
  %v3568 = vpop.xlane.xlu0 %3567
  %3569 = vadd.xlane.f32.xlu0 %v3538
  %v3570 = vpop.xlane.xlu0 %3569
  %3571 = vadd.xlane.f32.xlu0 %v3540
  %v3572 = vpop.xlane.xlu0 %3571
  %3573 = vadd.xlane.f32.xlu0 %v3542
  %v3574 = vpop.xlane.xlu0 %3573
  %3575 = vadd.xlane.f32.xlu0 %v3544
  %v3576 = vpop.xlane.xlu0 %3575
  %3577 = vadd.xlane.f32.xlu0 %v3546
  %v3578 = vpop.xlane.xlu0 %3577
  %3579 = vadd.xlane.f32.xlu0 %v3548
  %v3580 = vpop.xlane.xlu0 %3579
  %3581 = vadd.xlane.f32.xlu0 %v3550
  %v3582 = vpop.xlane.xlu0 %3581
  %3583 = vadd.xlane.f32.xlu0 %v3552
  %v3584 = vpop.xlane.xlu0 %3583
  %3585 = vadd.xlane.f32.xlu0 %v3554
  %v3586 = vpop.xlane.xlu0 %3585
  %3587 = vadd.xlane.f32.xlu0 %v3556
  %v3588 = vpop.xlane.xlu0 %3587
  %3589 = vadd.xlane.f32.xlu0 %v3558
  %v3590 = vpop.xlane.xlu0 %3589
  %v3591 = vrcp.pop %v3560
  %v3592 = vrcp.pop %v3562
  %v3593 = vrcp.pop %v3564
  %v3594 = vrcp.pop %v3566
  %v3595 = vrcp.pop %v3568
  %v3596 = vrcp.pop %v3570
  %v3597 = vrcp.pop %v3572
  %v3598 = vrcp.pop %v3574
  %v3599 = vrcp.pop %v3576
  %v3600 = vrcp.pop %v3578
  %v3601 = vrcp.pop %v3580
  %v3602 = vrcp.pop %v3582
  %v3603 = vrcp.pop %v3584
  %v3604 = vrcp.pop %v3586
  %v3605 = vrcp.pop %v3588
  %v3606 = vrcp.pop %v3590
  %v3607 = vmul.f32 %v3528, %v3591
  %v3608 = vmul.f32 %v3530, %v3592
  %v3609 = vmul.f32 %v3532, %v3593
  %v3610 = vmul.f32 %v3534, %v3594
  %v3611 = vmul.f32 %v3536, %v3595
  %v3612 = vmul.f32 %v3538, %v3596
  %v3613 = vmul.f32 %v3540, %v3597
  %v3614 = vmul.f32 %v3542, %v3598
  %v3615 = vmul.f32 %v3544, %v3599
  %v3616 = vmul.f32 %v3546, %v3600
  %v3617 = vmul.f32 %v3548, %v3601
  %v3618 = vmul.f32 %v3550, %v3602
  %v3619 = vmul.f32 %v3552, %v3603
  %v3620 = vmul.f32 %v3554, %v3604
  %v3621 = vmul.f32 %v3556, %v3605
  %v3622 = vmul.f32 %v3558, %v3606
  %v3624 = vlaneseq
  %v3625 = vshrl.u32 %v3624, 7
  %v3626 = vsub.s32 0, %v3625
  %v3627 = vrot.slane %v2813, %v3626
  %3629 = vmatprep.subr.mxu0 0.0
  %3630 = vmatpush1.msra.mxu0 %v3004
  %3631 = vmatprep.subr.mxu0 0.0
  %3632 = vmatpush1.msra.mxu0 %v2999
  %3633 = vmatprep.subr.mxu0 0.0
  %3634 = vmatpush1.msra.mxu0 %v2994
  %3635 = vmatprep.subr.mxu0 0.0
  %3636 = vmatpush1.msra.mxu0 %v2989
  %3637 = vmatprep.subr.mxu0 0.0
  %3638 = vmatpush1.msra.mxu0 %v2984
  %3639 = vmatprep.subr.mxu0 0.0
  %3640 = vmatpush1.msra.mxu0 %v2979
  %3641 = vmatprep.subr.mxu0 0.0
  %3642 = vmatpush1.msra.mxu0 %v2974
  %3643 = vmatprep.subr.mxu0 0.0
  %3644 = vmatpush1.msra.mxu0 %v2969
  %3645 = vmatprep.subr.mxu0 0.0
  %3646 = vmatpush1.msra.mxu0 %v2964
  %3647 = vmatprep.subr.mxu0 0.0
  %3648 = vmatpush1.msra.mxu0 %v2959
  %3649 = vmatprep.subr.mxu0 0.0
  %3650 = vmatpush1.msra.mxu0 %v2954
  %3651 = vmatprep.subr.mxu0 0.0
  %3652 = vmatpush1.msra.mxu0 %v2949
  %3653 = vmatprep.subr.mxu0 0.0
  %3654 = vmatpush1.msra.mxu0 %v2944
  %3655 = vmatprep.subr.mxu0 0.0
  %3656 = vmatpush1.msra.mxu0 %v2939
  %3657 = vmatprep.subr.mxu0 0.0
  %3658 = vmatpush1.msra.mxu0 %v2934
  %3659 = vmatprep.subr.mxu0 0.0
  %3660 = vmatpush1.msra.mxu0 %v2929
  %3661 = vmatprep.subr.mxu0 0.0
  %3662 = vmatpush2.msra.mxu0 0.0
  %3663 = vmatprep.subr.mxu0 0.0
  %3664 = vmatpush2.msra.mxu0 0.0
  %3665 = vmatprep.subr.mxu0 0.0
  %3666 = vmatpush2.msra.mxu0 0.0
  %3667 = vmatprep.subr.mxu0 0.0
  %3668 = vmatpush2.msra.mxu0 0.0
  %3669 = vmatprep.subr.mxu0 0.0
  %3670 = vmatpush2.msra.mxu0 0.0
  %3671 = vmatprep.subr.mxu0 0.0
  %3672 = vmatpush2.msra.mxu0 0.0
  %3673 = vmatprep.subr.mxu0 0.0
  %3674 = vmatpush2.msra.mxu0 0.0
  %3675 = vmatprep.subr.mxu0 0.0
  %3676 = vmatpush2.msra.mxu0 0.0
  %3677 = vmatprep.subr.mxu0 0.0
  %3678 = vmatpush2.msra.mxu0 0.0
  %3679 = vmatprep.subr.mxu0 0.0
  %3680 = vmatpush2.msra.mxu0 0.0
  %3681 = vmatprep.subr.mxu0 0.0
  %3682 = vmatpush2.msra.mxu0 0.0
  %3683 = vmatprep.subr.mxu0 0.0
  %3684 = vmatpush2.msra.mxu0 0.0
  %3685 = vmatprep.subr.mxu0 0.0
  %3686 = vmatpush2.msra.mxu0 0.0
  %3687 = vmatprep.subr.mxu0 0.0
  %3688 = vmatpush2.msra.mxu0 0.0
  %3689 = vmatprep.subr.mxu0 0.0
  %3690 = vmatpush2.msra.mxu0 0.0
  %3691 = vmatprep.subr.mxu0 0.0
  %3692 = vmatpush2.msra.mxu0 0.0
  %3693 = vmatprep.mubr.f32.mxu0 0.0
  %3694 = vmatmul.mubr.f32.gmra.mxu0 %v3607
  %v3695 = vpop.f32.mrf.mxu0
  %v3696 = vadd.f32 %v3627, %v3695
  %v3697 = vpop.f32.mrf.mxu0
  %3698 = vmatprep.mubr.f32.mxu0 0.0
  %3699 = vmatmul.mubr.f32.gmra.mxu0 %v3608
  %v3700 = vpop.f32.mrf.mxu0
  %v3701 = vadd.f32 %v3627, %v3700
  %v3702 = vpop.f32.mrf.mxu0
  %3703 = vmatprep.mubr.f32.mxu0 0.0
  %3704 = vmatmul.mubr.f32.gmra.mxu0 %v3609
  %v3705 = vpop.f32.mrf.mxu0
  %v3706 = vadd.f32 %v3627, %v3705
  %v3707 = vpop.f32.mrf.mxu0
  %3708 = vmatprep.mubr.f32.mxu0 0.0
  %3709 = vmatmul.mubr.f32.gmra.mxu0 %v3610
  %v3710 = vpop.f32.mrf.mxu0
  %v3711 = vadd.f32 %v3627, %v3710
  %v3712 = vpop.f32.mrf.mxu0
  %3713 = vmatprep.mubr.f32.mxu0 0.0
  %3714 = vmatmul.mubr.f32.gmra.mxu0 %v3611
  %v3715 = vpop.f32.mrf.mxu0
  %v3716 = vadd.f32 %v3627, %v3715
  %v3717 = vpop.f32.mrf.mxu0
  %3718 = vmatprep.mubr.f32.mxu0 0.0
  %3719 = vmatmul.mubr.f32.gmra.mxu0 %v3612
  %v3720 = vpop.f32.mrf.mxu0
  %v3721 = vadd.f32 %v3627, %v3720
  %v3722 = vpop.f32.mrf.mxu0
  %3723 = vmatprep.mubr.f32.mxu0 0.0
  %3724 = vmatmul.mubr.f32.gmra.mxu0 %v3613
  %v3725 = vpop.f32.mrf.mxu0
  %v3726 = vadd.f32 %v3627, %v3725
  %v3727 = vpop.f32.mrf.mxu0
  %3728 = vmatprep.mubr.f32.mxu0 0.0
  %3729 = vmatmul.mubr.f32.gmra.mxu0 %v3614
  %v3730 = vpop.f32.mrf.mxu0
  %v3731 = vadd.f32 %v3627, %v3730
  %v3732 = vpop.f32.mrf.mxu0
  %3733 = vmatprep.mubr.f32.mxu0 0.0
  %3734 = vmatmul.mubr.f32.gmra.mxu0 %v3615
  %v3735 = vpop.f32.mrf.mxu0
  %v3736 = vadd.f32 %v3627, %v3735
  %v3737 = vpop.f32.mrf.mxu0
  %3738 = vmatprep.mubr.f32.mxu0 0.0
  %3739 = vmatmul.mubr.f32.gmra.mxu0 %v3616
  %v3740 = vpop.f32.mrf.mxu0
  %v3741 = vadd.f32 %v3627, %v3740
  %v3742 = vpop.f32.mrf.mxu0
  %3743 = vmatprep.mubr.f32.mxu0 0.0
  %3744 = vmatmul.mubr.f32.gmra.mxu0 %v3617
  %v3745 = vpop.f32.mrf.mxu0
  %v3746 = vadd.f32 %v3627, %v3745
  %v3747 = vpop.f32.mrf.mxu0
  %3748 = vmatprep.mubr.f32.mxu0 0.0
  %3749 = vmatmul.mubr.f32.gmra.mxu0 %v3618
  %v3750 = vpop.f32.mrf.mxu0
  %v3751 = vadd.f32 %v3627, %v3750
  %v3752 = vpop.f32.mrf.mxu0
  %3753 = vmatprep.mubr.f32.mxu0 0.0
  %3754 = vmatmul.mubr.f32.gmra.mxu0 %v3619
  %v3755 = vpop.f32.mrf.mxu0
  %v3756 = vadd.f32 %v3627, %v3755
  %v3757 = vpop.f32.mrf.mxu0
  %3758 = vmatprep.mubr.f32.mxu0 0.0
  %3759 = vmatmul.mubr.f32.gmra.mxu0 %v3620
  %v3760 = vpop.f32.mrf.mxu0
  %v3761 = vadd.f32 %v3627, %v3760
  %v3762 = vpop.f32.mrf.mxu0
  %3763 = vmatprep.mubr.f32.mxu0 0.0
  %3764 = vmatmul.mubr.f32.gmra.mxu0 %v3621
  %v3765 = vpop.f32.mrf.mxu0
  %v3766 = vadd.f32 %v3627, %v3765
  %v3767 = vpop.f32.mrf.mxu0
  %3768 = vmatprep.mubr.f32.mxu0 0.0
  %3769 = vmatmul.mubr.f32.gmra.mxu0 %v3622
  %v3770 = vpop.f32.mrf.mxu0
  %v3771 = vadd.f32 %v3627, %v3770
  %v3772 = vpop.f32.mrf.mxu0
  %3773 = vdwg.mxu0
  %v3774 = vmax.f32 %v3696, 0.0
  %v3775 = vmax.f32 %v3701, 0.0
  %v3776 = vmax.f32 %v3706, 0.0
  %v3777 = vmax.f32 %v3711, 0.0
  %v3778 = vmax.f32 %v3716, 0.0
  %v3779 = vmax.f32 %v3721, 0.0
  %v3780 = vmax.f32 %v3726, 0.0
  %v3781 = vmax.f32 %v3731, 0.0
  %v3782 = vmax.f32 %v3736, 0.0
  %v3783 = vmax.f32 %v3741, 0.0
  %v3784 = vmax.f32 %v3746, 0.0
  %v3785 = vmax.f32 %v3751, 0.0
  %v3786 = vmax.f32 %v3756, 0.0
  %v3787 = vmax.f32 %v3761, 0.0
  %v3788 = vmax.f32 %v3766, 0.0
  %v3789 = vmax.f32 %v3771, 0.0
  %3790 = vst.msk [vmem:[%s8] sm:$0xff] %vm2729, %v3774
  %3791 = vst.msk [vmem:[%s8 + $0x8] sm:$0xff] %vm2729, %v3775
  %3792 = vst.msk [vmem:[%s8 + $0x10] sm:$0xff] %vm2729, %v3776
  %3793 = vst.msk [vmem:[%s8 + $0x18] sm:$0xff] %vm2729, %v3777
  %3794 = vst.msk [vmem:[%s8 + $0x20] sm:$0xff] %vm2729, %v3778
  %3795 = vst.msk [vmem:[%s8 + $0x28] sm:$0xff] %vm2729, %v3779
  %3796 = vst.msk [vmem:[%s8 + $0x30] sm:$0xff] %vm2729, %v3780
  %3797 = vst.msk [vmem:[%s8 + $0x38] sm:$0xff] %vm2729, %v3781
  %3798 = vst.msk [vmem:[%s8 + $0x40] sm:$0xff] %vm2729, %v3782
  %3799 = vst.msk [vmem:[%s8 + $0x48] sm:$0xff] %vm2729, %v3783
  %3800 = vst.msk [vmem:[%s8 + $0x50] sm:$0xff] %vm2729, %v3784
  %3801 = vst.msk [vmem:[%s8 + $0x58] sm:$0xff] %vm2729, %v3785
  %3802 = vst.msk [vmem:[%s8 + $0x60] sm:$0xff] %vm2729, %v3786
  %3803 = vst.msk [vmem:[%s8 + $0x68] sm:$0xff] %vm2729, %v3787
  %3804 = vst.msk [vmem:[%s8 + $0x70] sm:$0xff] %vm2729, %v3788
  %3805 = vst.msk [vmem:[%s8 + $0x78] sm:$0xff] %vm2729, %v3789
  // Predicated region
  $region34: #{tpu_custom_call.1} parent=0 // pred_check
    _
  $region35: #{tpu_custom_call.1} parent=0 // pred_check_branch
    %3807 = sbr.rel (0) target = $region37
  $region36: #{tpu_custom_call.1} parent=0 // pred_region
    _
  $region37: #{tpu_custom_call.1} parent=0 // pred_fallthru
    _
  // Predicated region
  $region38: #{tpu_custom_call.1} parent=0 // pred_check
    _
  $region39: #{tpu_custom_call.1} parent=0 // pred_check_branch
    %3809 = sbr.rel (0) target = $region41
  $region40: #{tpu_custom_call.1} parent=0 // pred_region
    _
  $region41: #{tpu_custom_call.1} parent=0 // pred_fallthru
    _

</llo_original>
